<compile_context>
chip_gen: v7x
topology: tpu7x:2x2x1
jax: 0.10.0
libtpu: 0.0.40
codegen_flags: <defaults>
</compile_context>

<pallas_src>
import functools
import math

import jax
import jax.numpy as jnp
from jax.experimental import pallas as pl
from jax.experimental.pallas import tpu as pltpu

EMBED = 256
HEADS = 8
SEQ = 8
BATCH = 2
LN_EPS = 1e-5


def _layernorm(v, w, b):
    # single-pass moments: mean and mean-of-squares computed together
    # (independent reductions, no dependent (x - mu)^2 second pass).
    mu = jnp.mean(v, axis=-1, keepdims=True)
    ms = jnp.mean(v * v, axis=-1, keepdims=True)
    inv = jax.lax.rsqrt(ms - mu * mu + LN_EPS)
    return (v - mu) * inv * w + b


def transformer_block_kernel(
    # ---- inputs ------------------------------------------------------------
    x_ref,                                    # (R=N*L, E) f32   VMEM
    ln1w_ref, ln1b_ref, ln2w_ref, ln2b_ref,   # (1, E)    f32   VMEM
    wqkv_ref,                                 # (E, 3E)   bf16  VMEM  per-head [q|k|v] col groups, q pre-scaled
    bqkv_ref,                                 # (1, 3E)   f32   VMEM  same grouping
    wo_hbm,                                   # (E, E)    bf16  HBM   out_proj.weight.T
    bo_ref,                                   # (1, E)    f32   VMEM
    w1_hbm,                                   # (E, 4E)   bf16  HBM   fc1 weight.T
    b1_ref,                                   # (1, 4E)   f32   VMEM
    w2_hbm,                                   # (4E, E)   bf16  HBM   fc2 weight.T
    b2_ref,                                   # (1, E)    f32   VMEM
    # ---- outputs -----------------------------------------------------------
    o_ref,                                    # (R, E)    f32
    # ---- scratch -----------------------------------------------------------
    wo_vmem, w1_vmem, w2_vmem, dma_sem,
    *, n_batch, seq, embed, heads,
):
    f32, bf16 = jnp.float32, jnp.bfloat16
    hd = embed // heads
    rows = n_batch * seq

    # Kick off the big weight DMAs immediately, in order of first use, so the
    # HBM->VMEM streams for out_proj / fc1 / fc2 overlap the attention math.
    cp_wo = pltpu.make_async_copy(wo_hbm, wo_vmem, dma_sem.at[0]); cp_wo.start()
    cp_w1 = pltpu.make_async_copy(w1_hbm, w1_vmem, dma_sem.at[1]); cp_w1.start()
    cp_w2 = pltpu.make_async_copy(w2_hbm, w2_vmem, dma_sem.at[2]); cp_w2.start()

    x = x_ref[...].astype(f32)                                        # (R, E)

    # ---- attention branch ---------------------------------------------------
    h1 = _layernorm(x, ln1w_ref[...], ln1b_ref[...]).astype(bf16)
    # one lane-dense QKV projection; columns pre-grouped per head as [q|k|v]
    qkv = (jnp.dot(h1, wqkv_ref[...], preferred_element_type=f32)
           + bqkv_ref[...]).astype(bf16)                              # (R, 3E)

    # head split: one 96-lane slice per head, then a pure leading/sublane
    # regrouping reshape.  batch index b = h*N + n (batches never mix).
    per_head = jnp.stack(
        [qkv[:, h * 3 * hd:(h + 1) * 3 * hd] for h in range(heads)], axis=0)
    per_head = per_head.reshape(heads * n_batch, seq, 3 * hd)         # (B, L, 3*hd)
    q_b = per_head[:, :, 0:hd]                # 1/sqrt(hd) folded into weights/bias
    k_b = per_head[:, :, hd:2 * hd]
    v_b = per_head[:, :, 2 * hd:3 * hd]

    # heads*batch-batched attention core
    s = jnp.einsum('bqd,bkd->bqk', q_b, k_b, preferred_element_type=f32)  # (B, L, L)
    s = s - jnp.max(s, axis=-1, keepdims=True)
    p = jnp.exp(s)
    p = p * pl.reciprocal(jnp.sum(p, axis=-1, keepdims=True), approx=True)
    ctx = jnp.einsum('bqk,bkd->bqd', p.astype(bf16), v_b,
                     preferred_element_type=f32)                          # (B, L, hd)

    # merge heads back to (R, E) with cols (h, d), then ONE K=256 out-projection
    ctx_h = ctx.astype(bf16).reshape(heads, rows, hd)                     # (H, R, hd)
    ctx_cat = jnp.concatenate([ctx_h[h] for h in range(heads)], axis=-1)  # (R, E)

    cp_wo.wait()
    attn = jnp.dot(ctx_cat, wo_vmem[...], preferred_element_type=f32) + bo_ref[...]
    x1 = x + attn

    # ---- MLP branch ----------------------------------------------------------
    h2 = _layernorm(x1, ln2w_ref[...], ln2b_ref[...]).astype(bf16)
    cp_w1.wait()
    m = jnp.dot(h2, w1_vmem[...], preferred_element_type=f32) + b1_ref[...]
    # exact (erf-based) GELU, matching torch.nn.GELU(approximate='none')
    m = 0.5 * m * (1.0 + jax.lax.erf(m * jnp.float32(1.0 / math.sqrt(2.0))))
    cp_w2.wait()
    y = jnp.dot(m.astype(bf16), w2_vmem[...], preferred_element_type=f32) + b2_ref[...]

    o_ref[...] = (x1 + y).astype(o_ref.dtype)


def prepare_params(params, *, heads=HEADS):
    """One-time packing of PyTorch-layout params into kernel layouts.

    Pre-transposes the linear weights, groups the QKV projection columns per
    head ([q|k|v] blocks so the kernel's head split is 8 slices, not 24),
    folds the 1/sqrt(head_dim) scale into the q projection, and casts weight
    matrices to bfloat16.  Call ONCE outside the hot path.
    """
    f32, bf16 = jnp.float32, jnp.bfloat16
    E = params["ln1_w"].shape[0]
    hd = E // heads
    scale = 1.0 / math.sqrt(hd)

    w_in = params["w_in"].astype(f32)          # (3E, E): rows [q; k; v], each (h, d)
    b_in = params["b_in"].astype(f32)
    wq, wk, wv = w_in[0:E], w_in[E:2 * E], w_in[2 * E:3 * E]
    bq, bk, bv = b_in[0:E], b_in[E:2 * E], b_in[2 * E:3 * E]
    wq, bq = wq * scale, bq * scale            # fold attention scale into q

    head_rows = lambda w: w.reshape(heads, hd, E)      # (E, E) -> (H, hd, E)
    w_grouped = jnp.concatenate(
        [head_rows(wq), head_rows(wk), head_rows(wv)], axis=1).reshape(3 * E, E)
    b_grouped = jnp.concatenate(
        [bq.reshape(heads, hd), bk.reshape(heads, hd), bv.reshape(heads, hd)],
        axis=1).reshape(1, 3 * E)

    row = lambda a: a.astype(f32).reshape(1, -1)
    return {
        "ln1_w": row(params["ln1_w"]), "ln1_b": row(params["ln1_b"]),
        "ln2_w": row(params["ln2_w"]), "ln2_b": row(params["ln2_b"]),
        "w_qkv_t": w_grouped.T.astype(bf16),                      # (E, 3E)
        "b_qkv": b_grouped,                                       # (1, 3E)
        "wo_t": params["w_out"].astype(f32).T.astype(bf16),       # (E, E)
        "b_out": row(params["b_out"]),
        "w1_t": params["w1"].astype(f32).T.astype(bf16),          # (E, 4E)
        "b1": row(params["b1"]),
        "w2_t": params["w2"].astype(f32).T.astype(bf16),          # (4E, E)
        "b2": row(params["b2"]),
    }


def transformer_block(x, kp, *, heads=HEADS):
    """x: (L, N, E) float32 — PyTorch nn.MultiheadAttention default layout."""
    L, N, E = x.shape
    # fold batch into the matmul M dimension: (L, N, E) -> (N*L, E), rows (n, l)
    x2 = jnp.transpose(x, (1, 0, 2)).reshape(N * L, E)

    vmem = pl.BlockSpec(memory_space=pltpu.MemorySpace.VMEM)
    hbm = pl.BlockSpec(memory_space=pl.ANY)      # raw HBM ref: DMA'd manually in-kernel
    out2 = pl.pallas_call(
        functools.partial(transformer_block_kernel,
                          n_batch=N, seq=L, embed=E, heads=heads),
        out_shape=jax.ShapeDtypeStruct((N * L, E), x.dtype),
        in_specs=[vmem, vmem, vmem, vmem, vmem,   # x, ln1w, ln1b, ln2w, ln2b
                  vmem, vmem,                      # wqkv, bqkv
                  hbm, vmem,                       # wo (HBM), bo
                  hbm, vmem,                       # w1 (HBM), b1
                  hbm, vmem],                      # w2 (HBM), b2
        out_specs=vmem,
        scratch_shapes=[
            pltpu.VMEM((E, E), jnp.bfloat16),      # wo staging
            pltpu.VMEM((E, 4 * E), jnp.bfloat16),  # w1 staging
            pltpu.VMEM((4 * E, E), jnp.bfloat16),  # w2 staging
            pltpu.SemaphoreType.DMA((3,)),
        ],
    )(
        x2,
        kp["ln1_w"], kp["ln1_b"], kp["ln2_w"], kp["ln2_b"],
        kp["w_qkv_t"], kp["b_qkv"],
        kp["wo_t"], kp["b_out"],
        kp["w1_t"], kp["b1"],
        kp["w2_t"], kp["b2"],
    )
    return out2.reshape(N, L, E).transpose(1, 0, 2)                  # back to (L, N, E)


def transformer_block_reference(x, params, *, heads=HEADS):
    """Pure-JAX f32 reference mirroring PyTorch semantics, for validation."""
    L, N, E = x.shape
    hd = E // heads

    def ln(v, w, b):
        mu = v.mean(-1, keepdims=True)
        var = ((v - mu) ** 2).mean(-1, keepdims=True)
        return (v - mu) / jnp.sqrt(var + LN_EPS) * w + b

    with jax.default_matmul_precision("float32"):
        h1 = ln(x, params["ln1_w"], params["ln1_b"])
        qkv = h1 @ params["w_in"].T + params["b_in"]      # (L, N, 3E)
        q, k, v = jnp.split(qkv, 3, axis=-1)

        def split_heads(t):                               # (L, N, E) -> (N, H, L, hd)
            return t.reshape(L, N, heads, hd).transpose(1, 2, 0, 3)

        qh, kh, vh = map(split_heads, (q, k, v))
        s = jnp.einsum("nhqd,nhkd->nhqk", qh, kh) / math.sqrt(hd)
        p = jax.nn.softmax(s, axis=-1)
        ctx = jnp.einsum("nhqk,nhkd->nhqd", p, vh)
        ctx = ctx.transpose(2, 0, 1, 3).reshape(L, N, E)
        attn = ctx @ params["w_out"].T + params["b_out"]
        x1 = x + attn

        h2 = ln(x1, params["ln2_w"], params["ln2_b"])
        m = h2 @ params["w1"].T + params["b1"]
        m = 0.5 * m * (1.0 + jax.lax.erf(m / math.sqrt(2.0)))
        out = x1 + m @ params["w2"].T + params["b2"]
    return out


def init_params(key, embed):
    ks = jax.random.split(key, 12)
    s = 0.05
    f32 = jnp.float32
    return {
        "ln1_w": 1.0 + s * jax.random.normal(ks[0], (embed,), f32),
        "ln1_b": s * jax.random.normal(ks[1], (embed,), f32),
        "ln2_w": 1.0 + s * jax.random.normal(ks[2], (embed,), f32),
        "ln2_b": s * jax.random.normal(ks[3], (embed,), f32),
        "w_in": s * jax.random.normal(ks[4], (3 * embed, embed), f32),
        "b_in": s * jax.random.normal(ks[5], (3 * embed,), f32),
        "w_out": s * jax.random.normal(ks[6], (embed, embed), f32),
        "b_out": s * jax.random.normal(ks[7], (embed,), f32),
        "w1": s * jax.random.normal(ks[8], (4 * embed, embed), f32),
        "b1": s * jax.random.normal(ks[9], (4 * embed,), f32),
        "w2": s * jax.random.normal(ks[10], (embed, 4 * embed), f32),
        "b2": s * jax.random.normal(ks[11], (embed,), f32),
    }


if __name__ == "__main__":
    key = jax.random.PRNGKey(0)
    pkey, xkey = jax.random.split(key)
    params = init_params(pkey, EMBED)
    x = jax.random.normal(xkey, (SEQ, BATCH, EMBED), jnp.float32)   # (L, N, E)

    # one-time weight packing (transpose / per-head grouping / bf16 cast) outside the hot path
    kparams = prepare_params(params, heads=HEADS)

    run = jax.jit(functools.partial(transformer_block, heads=HEADS))
    out = jax.block_until_ready(run(x, kparams))
    ref = jax.block_until_ready(transformer_block_reference(x, params, heads=HEADS))

    assert out.shape == (SEQ, BATCH, EMBED)
    max_err = float(jnp.max(jnp.abs(out - ref)))
    # kernel matmuls run in bf16 with f32 accumulation; widen the f32-reference
    # tolerance accordingly — real layout/semantics bugs would be >1e-1.
    assert max_err < 3e-2, f"mismatch vs reference: max abs err {max_err}"
    print("KERNEL_OK")
</pallas_src>

<mosaic_0001>
module attributes {stable_mosaic.version = 11 : i64} {
  func.func @transformer_block_kernel(%arg0: memref<16x256xf32, #tpu.memory_space<vmem>>, %arg1: memref<1x256xf32, #tpu.memory_space<vmem>>, %arg2: memref<1x256xf32, #tpu.memory_space<vmem>>, %arg3: memref<1x256xf32, #tpu.memory_space<vmem>>, %arg4: memref<1x256xf32, #tpu.memory_space<vmem>>, %arg5: memref<256x768xbf16, #tpu.memory_space<vmem>>, %arg6: memref<1x768xf32, #tpu.memory_space<vmem>>, %arg7: memref<256x256xbf16, #tpu.memory_space<any>>, %arg8: memref<1x256xf32, #tpu.memory_space<vmem>>, %arg9: memref<256x1024xbf16, #tpu.memory_space<any>>, %arg10: memref<1x1024xf32, #tpu.memory_space<vmem>>, %arg11: memref<1024x256xbf16, #tpu.memory_space<any>>, %arg12: memref<1x256xf32, #tpu.memory_space<vmem>>, %arg13: memref<16x256xf32, #tpu.memory_space<vmem>>, %arg14: memref<256x256xbf16, #tpu.memory_space<vmem>>, %arg15: memref<256x1024xbf16, #tpu.memory_space<vmem>>, %arg16: memref<1024x256xbf16, #tpu.memory_space<vmem>>, %arg17: memref<3x!tpu.dma_semaphore, #tpu.memory_space<semaphore_mem>>) attributes {dimension_semantics = [], scalar_prefetch = 0 : i64, scratch_operands = 4 : i64, tpu.core_type = #tpu.core_type<tc>} {
    %c0_i32 = arith.constant 0 : i32
    %0 = tpu.memref_slice %arg17[%c0_i32] : memref<3x!tpu.dma_semaphore, #tpu.memory_space<semaphore_mem>> -> memref<1x!tpu.dma_semaphore, #tpu.memory_space<semaphore_mem>>
    %1 = tpu.memref_squeeze %0 : memref<1x!tpu.dma_semaphore, #tpu.memory_space<semaphore_mem>> -> memref<!tpu.dma_semaphore, #tpu.memory_space<semaphore_mem>>
    tpu.enqueue_dma source(%arg7 : memref<256x256xbf16, #tpu.memory_space<any>>) target(%arg14 : memref<256x256xbf16, #tpu.memory_space<vmem>>) target_semaphore(%1 : memref<!tpu.dma_semaphore, #tpu.memory_space<semaphore_mem>>)
    %c1_i32 = arith.constant 1 : i32
    %2 = tpu.memref_slice %arg17[%c1_i32] : memref<3x!tpu.dma_semaphore, #tpu.memory_space<semaphore_mem>> -> memref<1x!tpu.dma_semaphore, #tpu.memory_space<semaphore_mem>>
    %3 = tpu.memref_squeeze %2 : memref<1x!tpu.dma_semaphore, #tpu.memory_space<semaphore_mem>> -> memref<!tpu.dma_semaphore, #tpu.memory_space<semaphore_mem>>
    tpu.enqueue_dma source(%arg9 : memref<256x1024xbf16, #tpu.memory_space<any>>) target(%arg15 : memref<256x1024xbf16, #tpu.memory_space<vmem>>) target_semaphore(%3 : memref<!tpu.dma_semaphore, #tpu.memory_space<semaphore_mem>>)
    %c2_i32 = arith.constant 2 : i32
    %4 = tpu.memref_slice %arg17[%c2_i32] : memref<3x!tpu.dma_semaphore, #tpu.memory_space<semaphore_mem>> -> memref<1x!tpu.dma_semaphore, #tpu.memory_space<semaphore_mem>>
    %5 = tpu.memref_squeeze %4 : memref<1x!tpu.dma_semaphore, #tpu.memory_space<semaphore_mem>> -> memref<!tpu.dma_semaphore, #tpu.memory_space<semaphore_mem>>
    tpu.enqueue_dma source(%arg11 : memref<1024x256xbf16, #tpu.memory_space<any>>) target(%arg16 : memref<1024x256xbf16, #tpu.memory_space<vmem>>) target_semaphore(%5 : memref<!tpu.dma_semaphore, #tpu.memory_space<semaphore_mem>>)
    %c0 = arith.constant 0 : index
    %c0_0 = arith.constant 0 : index
    %6 = vector.load %arg0[%c0, %c0_0] : memref<16x256xf32, #tpu.memory_space<vmem>>, vector<16x256xf32>
    %c0_1 = arith.constant 0 : index
    %c0_2 = arith.constant 0 : index
    %7 = vector.load %arg1[%c0_1, %c0_2] : memref<1x256xf32, #tpu.memory_space<vmem>>, vector<1x256xf32>
    %c0_3 = arith.constant 0 : index
    %c0_4 = arith.constant 0 : index
    %8 = vector.load %arg2[%c0_3, %c0_4] : memref<1x256xf32, #tpu.memory_space<vmem>>, vector<1x256xf32>
    %cst = arith.constant dense<0.000000e+00> : vector<16xf32>
    %9 = vector.multi_reduction <add>, %6, %cst [1] : vector<16x256xf32> to vector<16xf32>
    %10 = vector.shape_cast %9 : vector<16xf32> to vector<16x1xf32>
    %cst_5 = arith.constant 2.560000e+02 : f32
    %11 = vector.broadcast %cst_5 : f32 to vector<16x1xf32>
    %12 = arith.divf %10, %11 : vector<16x1xf32>
    %13 = arith.mulf %6, %6 : vector<16x256xf32>
    %cst_6 = arith.constant dense<0.000000e+00> : vector<16xf32>
    %14 = vector.multi_reduction <add>, %13, %cst_6 [1] : vector<16x256xf32> to vector<16xf32>
    %15 = vector.shape_cast %14 : vector<16xf32> to vector<16x1xf32>
    %cst_7 = arith.constant 2.560000e+02 : f32
    %16 = vector.broadcast %cst_7 : f32 to vector<16x1xf32>
    %17 = arith.divf %15, %16 : vector<16x1xf32>
    %18 = arith.mulf %12, %12 : vector<16x1xf32>
    %19 = arith.subf %17, %18 : vector<16x1xf32>
    %cst_8 = arith.constant 9.99999974E-6 : f32
    %20 = vector.broadcast %cst_8 : f32 to vector<16x1xf32>
    %21 = arith.addf %19, %20 : vector<16x1xf32>
    %22 = math.rsqrt %21 : vector<16x1xf32>
    %23 = vector.broadcast %12 : vector<16x1xf32> to vector<16x256xf32>
    %24 = arith.subf %6, %23 : vector<16x256xf32>
    %25 = vector.broadcast %22 : vector<16x1xf32> to vector<16x256xf32>
    %26 = arith.mulf %24, %25 : vector<16x256xf32>
    %27 = vector.broadcast %7 : vector<1x256xf32> to vector<16x256xf32>
    %28 = arith.mulf %26, %27 : vector<16x256xf32>
    %29 = vector.broadcast %8 : vector<1x256xf32> to vector<16x256xf32>
    %30 = arith.addf %28, %29 : vector<16x256xf32>
    %31 = arith.truncf %30 : vector<16x256xf32> to vector<16x256xbf16>
    %c0_9 = arith.constant 0 : index
    %c0_10 = arith.constant 0 : index
    %32 = vector.load %arg5[%c0_9, %c0_10] : memref<256x768xbf16, #tpu.memory_space<vmem>>, vector<256x768xbf16>
    %cst_11 = arith.constant dense<0.000000e+00> : vector<16x768xf32>
    %33 = tpu.matmul %31, %32, %cst_11 {dimension_numbers = #tpu.dot_dimension_numbers<[1], [0], [0], [1], [0, 0, 1, 1], [], []>} : vector<16x256xbf16>, vector<256x768xbf16>, vector<16x768xf32> -> vector<16x768xf32>
    %c0_12 = arith.constant 0 : index
    %c0_13 = arith.constant 0 : index
    %34 = vector.load %arg6[%c0_12, %c0_13] : memref<1x768xf32, #tpu.memory_space<vmem>>, vector<1x768xf32>
    %35 = vector.broadcast %34 : vector<1x768xf32> to vector<16x768xf32>
    %36 = arith.addf %33, %35 : vector<16x768xf32>
    %37 = arith.truncf %36 : vector<16x768xf32> to vector<16x768xbf16>
    %38 = vector.extract_strided_slice %37 {offsets = [0, 0], sizes = [16, 96], strides = [1, 1]} : vector<16x768xbf16> to vector<16x96xbf16>
    %39 = vector.extract_strided_slice %37 {offsets = [0, 96], sizes = [16, 96], strides = [1, 1]} : vector<16x768xbf16> to vector<16x96xbf16>
    %40 = vector.extract_strided_slice %37 {offsets = [0, 192], sizes = [16, 96], strides = [1, 1]} : vector<16x768xbf16> to vector<16x96xbf16>
    %41 = vector.extract_strided_slice %37 {offsets = [0, 288], sizes = [16, 96], strides = [1, 1]} : vector<16x768xbf16> to vector<16x96xbf16>
    %42 = vector.extract_strided_slice %37 {offsets = [0, 384], sizes = [16, 96], strides = [1, 1]} : vector<16x768xbf16> to vector<16x96xbf16>
    %43 = vector.extract_strided_slice %37 {offsets = [0, 480], sizes = [16, 96], strides = [1, 1]} : vector<16x768xbf16> to vector<16x96xbf16>
    %44 = vector.extract_strided_slice %37 {offsets = [0, 576], sizes = [16, 96], strides = [1, 1]} : vector<16x768xbf16> to vector<16x96xbf16>
    %45 = vector.extract_strided_slice %37 {offsets = [0, 672], sizes = [16, 96], strides = [1, 1]} : vector<16x768xbf16> to vector<16x96xbf16>
    %46 = vector.shape_cast %38 : vector<16x96xbf16> to vector<1x16x96xbf16>
    %47 = vector.shape_cast %39 : vector<16x96xbf16> to vector<1x16x96xbf16>
    %48 = vector.shape_cast %40 : vector<16x96xbf16> to vector<1x16x96xbf16>
    %49 = vector.shape_cast %41 : vector<16x96xbf16> to vector<1x16x96xbf16>
    %50 = vector.shape_cast %42 : vector<16x96xbf16> to vector<1x16x96xbf16>
    %51 = vector.shape_cast %43 : vector<16x96xbf16> to vector<1x16x96xbf16>
    %52 = vector.shape_cast %44 : vector<16x96xbf16> to vector<1x16x96xbf16>
    %53 = vector.shape_cast %45 : vector<16x96xbf16> to vector<1x16x96xbf16>
    %54 = tpu.concatenate %46, %47, %48, %49, %50, %51, %52, %53 in 0 : vector<1x16x96xbf16>, vector<1x16x96xbf16>, vector<1x16x96xbf16>, vector<1x16x96xbf16>, vector<1x16x96xbf16>, vector<1x16x96xbf16>, vector<1x16x96xbf16>, vector<1x16x96xbf16> -> vector<8x16x96xbf16>
    %55 = vector.shape_cast %54 : vector<8x16x96xbf16> to vector<16x8x96xbf16>
    %56 = vector.extract_strided_slice %55 {offsets = [0, 0, 0], sizes = [16, 8, 32], strides = [1, 1, 1]} : vector<16x8x96xbf16> to vector<16x8x32xbf16>
    %57 = vector.extract_strided_slice %55 {offsets = [0, 0, 32], sizes = [16, 8, 32], strides = [1, 1, 1]} : vector<16x8x96xbf16> to vector<16x8x32xbf16>
    %58 = vector.extract_strided_slice %55 {offsets = [0, 0, 64], sizes = [16, 8, 32], strides = [1, 1, 1]} : vector<16x8x96xbf16> to vector<16x8x32xbf16>
    "tpu.trace_start"() <{level = 10 : i32, message = "bqd,bkd->bqk"}> : () -> ()
    %cst_14 = arith.constant dense<0.000000e+00> : vector<16x8x8xf32>
    %59 = tpu.matmul %56, %57, %cst_14 {dimension_numbers = #tpu.dot_dimension_numbers<[2], [2], [1], [1], [0, 0, 0, 1, 1, 1], [0], [0]>} : vector<16x8x32xbf16>, vector<16x8x32xbf16>, vector<16x8x8xf32> -> vector<16x8x8xf32>
    "tpu.trace_stop"() : () -> ()
    %cst_15 = arith.constant dense<0xFF800000> : vector<16x8xf32>
    %60 = vector.multi_reduction <maximumf>, %59, %cst_15 [2] : vector<16x8x8xf32> to vector<16x8xf32>
    %61 = vector.shape_cast %60 : vector<16x8xf32> to vector<16x8x1xf32>
    %62 = vector.broadcast %61 : vector<16x8x1xf32> to vector<16x8x8xf32>
    %63 = arith.subf %59, %62 : vector<16x8x8xf32>
    %64 = math.exp %63 : vector<16x8x8xf32>
    %cst_16 = arith.constant dense<0.000000e+00> : vector<16x8xf32>
    %65 = vector.multi_reduction <add>, %64, %cst_16 [2] : vector<16x8x8xf32> to vector<16x8xf32>
    %66 = vector.shape_cast %65 : vector<16x8xf32> to vector<16x8x1xf32>
    %67 = tpu.reciprocal %66 {approx = true} : vector<16x8x1xf32> -> vector<16x8x1xf32>
    %68 = vector.broadcast %67 : vector<16x8x1xf32> to vector<16x8x8xf32>
    %69 = arith.mulf %64, %68 : vector<16x8x8xf32>
    %70 = arith.truncf %69 : vector<16x8x8xf32> to vector<16x8x8xbf16>
    "tpu.trace_start"() <{level = 10 : i32, message = "bqk,bkd->bqd"}> : () -> ()
    %cst_17 = arith.constant dense<0.000000e+00> : vector<16x8x32xf32>
    %71 = tpu.matmul %70, %58, %cst_17 {dimension_numbers = #tpu.dot_dimension_numbers<[2], [1], [1], [2], [0, 0, 0, 1, 1, 2], [0], [0]>} : vector<16x8x8xbf16>, vector<16x8x32xbf16>, vector<16x8x32xf32> -> vector<16x8x32xf32>
    "tpu.trace_stop"() : () -> ()
    %72 = arith.truncf %71 : vector<16x8x32xf32> to vector<16x8x32xbf16>
    %73 = vector.shape_cast %72 : vector<16x8x32xbf16> to vector<8x16x32xbf16>
    %74 = vector.extract_strided_slice %73 {offsets = [0, 0, 0], sizes = [1, 16, 32], strides = [1, 1, 1]} : vector<8x16x32xbf16> to vector<1x16x32xbf16>
    %75 = vector.shape_cast %74 : vector<1x16x32xbf16> to vector<16x32xbf16>
    %76 = vector.extract_strided_slice %73 {offsets = [1, 0, 0], sizes = [1, 16, 32], strides = [1, 1, 1]} : vector<8x16x32xbf16> to vector<1x16x32xbf16>
    %77 = vector.shape_cast %76 : vector<1x16x32xbf16> to vector<16x32xbf16>
    %78 = vector.extract_strided_slice %73 {offsets = [2, 0, 0], sizes = [1, 16, 32], strides = [1, 1, 1]} : vector<8x16x32xbf16> to vector<1x16x32xbf16>
    %79 = vector.shape_cast %78 : vector<1x16x32xbf16> to vector<16x32xbf16>
    %80 = vector.extract_strided_slice %73 {offsets = [3, 0, 0], sizes = [1, 16, 32], strides = [1, 1, 1]} : vector<8x16x32xbf16> to vector<1x16x32xbf16>
    %81 = vector.shape_cast %80 : vector<1x16x32xbf16> to vector<16x32xbf16>
    %82 = vector.extract_strided_slice %73 {offsets = [4, 0, 0], sizes = [1, 16, 32], strides = [1, 1, 1]} : vector<8x16x32xbf16> to vector<1x16x32xbf16>
    %83 = vector.shape_cast %82 : vector<1x16x32xbf16> to vector<16x32xbf16>
    %84 = vector.extract_strided_slice %73 {offsets = [5, 0, 0], sizes = [1, 16, 32], strides = [1, 1, 1]} : vector<8x16x32xbf16> to vector<1x16x32xbf16>
    %85 = vector.shape_cast %84 : vector<1x16x32xbf16> to vector<16x32xbf16>
    %86 = vector.extract_strided_slice %73 {offsets = [6, 0, 0], sizes = [1, 16, 32], strides = [1, 1, 1]} : vector<8x16x32xbf16> to vector<1x16x32xbf16>
    %87 = vector.shape_cast %86 : vector<1x16x32xbf16> to vector<16x32xbf16>
    %88 = vector.extract_strided_slice %73 {offsets = [7, 0, 0], sizes = [1, 16, 32], strides = [1, 1, 1]} : vector<8x16x32xbf16> to vector<1x16x32xbf16>
    %89 = vector.shape_cast %88 : vector<1x16x32xbf16> to vector<16x32xbf16>
    %90 = tpu.concatenate %75, %77, %79, %81, %83, %85, %87, %89 in 1 : vector<16x32xbf16>, vector<16x32xbf16>, vector<16x32xbf16>, vector<16x32xbf16>, vector<16x32xbf16>, vector<16x32xbf16>, vector<16x32xbf16>, vector<16x32xbf16> -> vector<16x256xbf16>
    %c0_i32_18 = arith.constant 0 : i32
    %91 = tpu.memref_slice %arg17[%c0_i32_18] : memref<3x!tpu.dma_semaphore, #tpu.memory_space<semaphore_mem>> -> memref<1x!tpu.dma_semaphore, #tpu.memory_space<semaphore_mem>>
    %92 = tpu.memref_squeeze %91 : memref<1x!tpu.dma_semaphore, #tpu.memory_space<semaphore_mem>> -> memref<!tpu.dma_semaphore, #tpu.memory_space<semaphore_mem>>
    tpu.wait_dma2 semaphore(%92 : memref<!tpu.dma_semaphore, #tpu.memory_space<semaphore_mem>>) src(%arg7 : memref<256x256xbf16, #tpu.memory_space<any>>) dst(%arg14 : memref<256x256xbf16, #tpu.memory_space<vmem>>)
    %c0_19 = arith.constant 0 : index
    %c0_20 = arith.constant 0 : index
    %93 = vector.load %arg14[%c0_19, %c0_20] : memref<256x256xbf16, #tpu.memory_space<vmem>>, vector<256x256xbf16>
    %cst_21 = arith.constant dense<0.000000e+00> : vector<16x256xf32>
    %94 = tpu.matmul %90, %93, %cst_21 {dimension_numbers = #tpu.dot_dimension_numbers<[1], [0], [0], [1], [0, 0, 1, 1], [], []>} : vector<16x256xbf16>, vector<256x256xbf16>, vector<16x256xf32> -> vector<16x256xf32>
    %c0_22 = arith.constant 0 : index
    %c0_23 = arith.constant 0 : index
    %95 = vector.load %arg8[%c0_22, %c0_23] : memref<1x256xf32, #tpu.memory_space<vmem>>, vector<1x256xf32>
    %96 = vector.broadcast %95 : vector<1x256xf32> to vector<16x256xf32>
    %97 = arith.addf %94, %96 : vector<16x256xf32>
    %98 = arith.addf %6, %97 : vector<16x256xf32>
    %c0_24 = arith.constant 0 : index
    %c0_25 = arith.constant 0 : index
    %99 = vector.load %arg3[%c0_24, %c0_25] : memref<1x256xf32, #tpu.memory_space<vmem>>, vector<1x256xf32>
    %c0_26 = arith.constant 0 : index
    %c0_27 = arith.constant 0 : index
    %100 = vector.load %arg4[%c0_26, %c0_27] : memref<1x256xf32, #tpu.memory_space<vmem>>, vector<1x256xf32>
    %cst_28 = arith.constant dense<0.000000e+00> : vector<16xf32>
    %101 = vector.multi_reduction <add>, %98, %cst_28 [1] : vector<16x256xf32> to vector<16xf32>
    %102 = vector.shape_cast %101 : vector<16xf32> to vector<16x1xf32>
    %cst_29 = arith.constant 2.560000e+02 : f32
    %103 = vector.broadcast %cst_29 : f32 to vector<16x1xf32>
    %104 = arith.divf %102, %103 : vector<16x1xf32>
    %105 = arith.mulf %98, %98 : vector<16x256xf32>
    %cst_30 = arith.constant dense<0.000000e+00> : vector<16xf32>
    %106 = vector.multi_reduction <add>, %105, %cst_30 [1] : vector<16x256xf32> to vector<16xf32>
    %107 = vector.shape_cast %106 : vector<16xf32> to vector<16x1xf32>
    %cst_31 = arith.constant 2.560000e+02 : f32
    %108 = vector.broadcast %cst_31 : f32 to vector<16x1xf32>
    %109 = arith.divf %107, %108 : vector<16x1xf32>
    %110 = arith.mulf %104, %104 : vector<16x1xf32>
    %111 = arith.subf %109, %110 : vector<16x1xf32>
    %cst_32 = arith.constant 9.99999974E-6 : f32
    %112 = vector.broadcast %cst_32 : f32 to vector<16x1xf32>
    %113 = arith.addf %111, %112 : vector<16x1xf32>
    %114 = math.rsqrt %113 : vector<16x1xf32>
    %115 = vector.broadcast %104 : vector<16x1xf32> to vector<16x256xf32>
    %116 = arith.subf %98, %115 : vector<16x256xf32>
    %117 = vector.broadcast %114 : vector<16x1xf32> to vector<16x256xf32>
    %118 = arith.mulf %116, %117 : vector<16x256xf32>
    %119 = vector.broadcast %99 : vector<1x256xf32> to vector<16x256xf32>
    %120 = arith.mulf %118, %119 : vector<16x256xf32>
    %121 = vector.broadcast %100 : vector<1x256xf32> to vector<16x256xf32>
    %122 = arith.addf %120, %121 : vector<16x256xf32>
    %123 = arith.truncf %122 : vector<16x256xf32> to vector<16x256xbf16>
    %c1_i32_33 = arith.constant 1 : i32
    %124 = tpu.memref_slice %arg17[%c1_i32_33] : memref<3x!tpu.dma_semaphore, #tpu.memory_space<semaphore_mem>> -> memref<1x!tpu.dma_semaphore, #tpu.memory_space<semaphore_mem>>
    %125 = tpu.memref_squeeze %124 : memref<1x!tpu.dma_semaphore, #tpu.memory_space<semaphore_mem>> -> memref<!tpu.dma_semaphore, #tpu.memory_space<semaphore_mem>>
    tpu.wait_dma2 semaphore(%125 : memref<!tpu.dma_semaphore, #tpu.memory_space<semaphore_mem>>) src(%arg9 : memref<256x1024xbf16, #tpu.memory_space<any>>) dst(%arg15 : memref<256x1024xbf16, #tpu.memory_space<vmem>>)
    %c0_34 = arith.constant 0 : index
    %c0_35 = arith.constant 0 : index
    %126 = vector.load %arg15[%c0_34, %c0_35] : memref<256x1024xbf16, #tpu.memory_space<vmem>>, vector<256x1024xbf16>
    %cst_36 = arith.constant dense<0.000000e+00> : vector<16x1024xf32>
    %127 = tpu.matmul %123, %126, %cst_36 {dimension_numbers = #tpu.dot_dimension_numbers<[1], [0], [0], [1], [0, 0, 1, 1], [], []>} : vector<16x256xbf16>, vector<256x1024xbf16>, vector<16x1024xf32> -> vector<16x1024xf32>
    %c0_37 = arith.constant 0 : index
    %c0_38 = arith.constant 0 : index
    %128 = vector.load %arg10[%c0_37, %c0_38] : memref<1x1024xf32, #tpu.memory_space<vmem>>, vector<1x1024xf32>
    %129 = vector.broadcast %128 : vector<1x1024xf32> to vector<16x1024xf32>
    %130 = arith.addf %127, %129 : vector<16x1024xf32>
    %cst_39 = arith.constant 5.000000e-01 : f32
    %131 = vector.broadcast %cst_39 : f32 to vector<16x1024xf32>
    %132 = arith.mulf %131, %130 : vector<16x1024xf32>
    %cst_40 = arith.constant 0.707106769 : f32
    %133 = vector.broadcast %cst_40 : f32 to vector<16x1024xf32>
    %134 = arith.mulf %130, %133 : vector<16x1024xf32>
    %135 = math.erf %134 : vector<16x1024xf32>
    %cst_41 = arith.constant 1.000000e+00 : f32
    %136 = vector.broadcast %cst_41 : f32 to vector<16x1024xf32>
    %137 = arith.addf %136, %135 : vector<16x1024xf32>
    %138 = arith.mulf %132, %137 : vector<16x1024xf32>
    %c2_i32_42 = arith.constant 2 : i32
    %139 = tpu.memref_slice %arg17[%c2_i32_42] : memref<3x!tpu.dma_semaphore, #tpu.memory_space<semaphore_mem>> -> memref<1x!tpu.dma_semaphore, #tpu.memory_space<semaphore_mem>>
    %140 = tpu.memref_squeeze %139 : memref<1x!tpu.dma_semaphore, #tpu.memory_space<semaphore_mem>> -> memref<!tpu.dma_semaphore, #tpu.memory_space<semaphore_mem>>
    tpu.wait_dma2 semaphore(%140 : memref<!tpu.dma_semaphore, #tpu.memory_space<semaphore_mem>>) src(%arg11 : memref<1024x256xbf16, #tpu.memory_space<any>>) dst(%arg16 : memref<1024x256xbf16, #tpu.memory_space<vmem>>)
    %141 = arith.truncf %138 : vector<16x1024xf32> to vector<16x1024xbf16>
    %c0_43 = arith.constant 0 : index
    %c0_44 = arith.constant 0 : index
    %142 = vector.load %arg16[%c0_43, %c0_44] : memref<1024x256xbf16, #tpu.memory_space<vmem>>, vector<1024x256xbf16>
    %cst_45 = arith.constant dense<0.000000e+00> : vector<16x256xf32>
    %143 = tpu.matmul %141, %142, %cst_45 {dimension_numbers = #tpu.dot_dimension_numbers<[1], [0], [0], [1], [0, 0, 1, 1], [], []>} : vector<16x1024xbf16>, vector<1024x256xbf16>, vector<16x256xf32> -> vector<16x256xf32>
    %c0_46 = arith.constant 0 : index
    %c0_47 = arith.constant 0 : index
    %144 = vector.load %arg12[%c0_46, %c0_47] : memref<1x256xf32, #tpu.memory_space<vmem>>, vector<1x256xf32>
    %145 = vector.broadcast %144 : vector<1x256xf32> to vector<16x256xf32>
    %146 = arith.addf %143, %145 : vector<16x256xf32>
    %147 = arith.addf %98, %146 : vector<16x256xf32>
    %c0_48 = arith.constant 0 : index
    %c0_49 = arith.constant 0 : index
    %148 = vector.load %arg13[%c0_48, %c0_49] : memref<16x256xf32, #tpu.memory_space<vmem>>, vector<16x256xf32>
    tpu.vector_store %arg13[%c0_48, %c0_49], %147 {strides = array<i32>} : memref<16x256xf32, #tpu.memory_space<vmem>>, vector<16x256xf32>,
    return
  }
}

</mosaic_0001>

<llo_original>
// kernel: transformer_block.1
$region0: #{transformer_block.1}
  #allocation0 [shape = 'u32[]', space=smem, size = 0x4, offset = 0x4, fixed_abs, tag = 'smem constant byte address 0x4 - core index']
  #allocation1 [shape = 'u32[144,128]{1,0:T(1,128)}', space=vmem, size = 0x12000, scoped, tag = 'internal scratch']
  #allocation2 [shape = 'bf16[256,256]{1,0:T(16,128)(2,1)}', space=vmem, size = 0x20000, scoped, tag = 'scratch operand']
  #allocation3 [shape = 'bf16[256,1024]{1,0:T(16,128)(2,1)}', space=vmem, size = 0x80000, scoped, tag = 'scratch operand']
  #allocation4 [shape = 'bf16[1024,256]{1,0:T(16,128)(2,1)}', space=vmem, size = 0x80000, scoped, tag = 'scratch operand']
  #allocation5 [shape = 's32[3]{0}', space=sflag, size = 0xc, scoped, tag = 'scratch operand']
  #allocation8 [shape = 's32[]', space=sflag, size = 0x4, offset = 0, fixed_abs, tag = 'sflag constant byte address 0x0 - dummy sync flag']
  #allocation10 [shape = 's32[]', space=sflag, size = 0x4, offset = 0, fixed_abs, tag = 'sflag constant byte address 0x0 - dummy sync flag']
  #allocation12 [shape = 's32[]', space=sflag, size = 0x4, offset = 0, fixed_abs, tag = 'sflag constant byte address 0x0 - dummy sync flag']
  %s0 = inlined_call_operand.vmem [shape: f32[16,256], index: 0, kind: input, shape index: {}]
  %s1 = inlined_call_operand.vmem [shape: f32[1,256], index: 1, kind: input, shape index: {}]
  %s2 = inlined_call_operand.vmem [shape: f32[1,256], index: 2, kind: input, shape index: {}]
  %s3 = inlined_call_operand.vmem [shape: f32[1,256], index: 3, kind: input, shape index: {}]
  %s4 = inlined_call_operand.vmem [shape: f32[1,256], index: 4, kind: input, shape index: {}]
  %s5 = inlined_call_operand.hbm [shape: bf16[256,768], index: 5, kind: input, shape index: {}]
  %s6 = inlined_call_operand.vmem [shape: f32[1,768], index: 6, kind: input, shape index: {}]
  %s7 = inlined_call_operand.hbm [shape: bf16[256,256], index: 7, kind: input, shape index: {}]
  %s8 = inlined_call_operand.vmem [shape: f32[1,256], index: 8, kind: input, shape index: {}]
  %s9 = inlined_call_operand.hbm [shape: bf16[256,1024], index: 9, kind: input, shape index: {}]
  %s10 = inlined_call_operand.vmem [shape: f32[1,1024], index: 10, kind: input, shape index: {}]
  %s11 = inlined_call_operand.hbm [shape: bf16[1024,256], index: 11, kind: input, shape index: {}]
  %s12 = inlined_call_operand.vmem [shape: f32[1,256], index: 12, kind: input, shape index: {}]
  %s13 = inlined_call_operand.vmem [shape: f32[16,256], index: 13, kind: output, shape index: {}]
  %s14 = sld [smem:[#allocation0]]
  $region54: #{transformer_block.1} parent=0
    _
  %s16 = ssub.s32 1, %s14
  %s17 = scalar_select 0, %s16, %s14
  $region1: #{transformer_block.1} parent=0
    #allocation6 [shape = 'u8[393216]{0}', space=vmem, size = 0x60000, scoped, tag = 'input window, operand 5, single buffered']
    #allocation7 [shape = 's32[1]{0}', space=sflag, size = 0x4, scoped, tag = 'scoped memory for transformer_block.1']
    #allocation9 [shape = 'u32[9]{0}', space=smem, size = 0x24, scoped, tag = 'DMA stride descriptor']
    #allocation11 [shape = 'u32[9]{0}', space=smem, size = 0x24, scoped, tag = 'DMA stride descriptor']
    #allocation13 [shape = 'u32[9]{0}', space=smem, size = 0x24, scoped, tag = 'DMA stride descriptor']
    %18 = vsyncpa [#allocation7], 0
    // Predicated region
    $region2: #{transformer_block.1} parent=1 // pred_check
      _
    $region3: #{transformer_block.1} parent=1 // pred_check_branch
      %20 = sbr.rel (0) target = $region5
    $region4: #{transformer_block.1} parent=1 // pred_region
      _
    $region5: #{transformer_block.1} parent=1 // pred_fallthru
      _
    // Predicated region
    $region6: #{transformer_block.1} parent=1 // pred_check
      _
    $region7: #{transformer_block.1} parent=1 // pred_check_branch
      %22 = sbr.rel (0) target = $region9
    $region8: #{transformer_block.1} parent=1 // pred_region
      _
    $region9: #{transformer_block.1} parent=1 // pred_fallthru
      _
    // Predicated region
    $region10: #{transformer_block.1} parent=1 // pred_check
      _
    $region11: #{transformer_block.1} parent=1 // pred_check_branch
      %24 = sbr.rel (0) target = $region13
    $region12: #{transformer_block.1} parent=1 // pred_region
      _
    $region13: #{transformer_block.1} parent=1 // pred_fallthru
      _
    // Predicated region
    $region14: #{transformer_block.1} parent=1 // pred_check
      _
    $region15: #{transformer_block.1} parent=1 // pred_check_branch
      %26 = sbr.rel (0) target = $region17
    $region16: #{transformer_block.1} parent=1 // pred_region
      _
    $region17: #{transformer_block.1} parent=1 // pred_fallthru
      _
    // Predicated region
    $region18: #{transformer_block.1} parent=1 // pred_check
      _
    $region19: #{transformer_block.1} parent=1 // pred_check_branch
      %28 = sbr.rel (0) target = $region21
    $region20: #{transformer_block.1} parent=1 // pred_region
      _
    $region21: #{transformer_block.1} parent=1 // pred_fallthru
      _
    // Predicated region
    $region22: #{transformer_block.1} parent=1 // pred_check
      _
    $region23: #{transformer_block.1} parent=1 // pred_check_branch
      %30 = sbr.rel (0) target = $region25
    $region24: #{transformer_block.1} parent=1 // pred_region
      %s32 = ssub.s32 12288, 12288
      %33 = vsyncadd [#allocation7], %s32
      %s34 = sshll.u32 [#allocation6], 4
      %s35 = int_to_ptr.vmem [resolvable:$true] %s34
      %40 = dma.hbm_to_vmem [thread:$0]  %s5, 12288, %s35, [#allocation7], 384, 384, 24
    $region25: #{transformer_block.1} parent=1 // pred_fallthru
      _
    // Predicated region
    $region26: #{transformer_block.1} parent=1 // pred_check
      _
    $region27: #{transformer_block.1} parent=1 // pred_check_branch
      %42 = sbr.rel (0) target = $region29
    $region28: #{transformer_block.1} parent=1 // pred_region
      _
    $region29: #{transformer_block.1} parent=1 // pred_fallthru
      _
    // Predicated region
    $region30: #{transformer_block.1} parent=1 // pred_check
      _
    $region31: #{transformer_block.1} parent=1 // pred_check_branch
      %44 = sbr.rel (0) target = $region33
    $region32: #{transformer_block.1} parent=1 // pred_region
      _
    $region33: #{transformer_block.1} parent=1 // pred_fallthru
      _
    // Predicated region
    $region34: #{transformer_block.1} parent=1 // pred_check
      _
    $region35: #{transformer_block.1} parent=1 // pred_check_branch
      %46 = sbr.rel (0) target = $region37
    $region36: #{transformer_block.1} parent=1 // pred_region
      _
    $region37: #{transformer_block.1} parent=1 // pred_fallthru
      _
    // Predicated region
    $region38: #{transformer_block.1} parent=1 // pred_check
      _
    $region39: #{transformer_block.1} parent=1 // pred_check_branch
      %48 = sbr.rel (0) target = $region41
    $region40: #{transformer_block.1} parent=1 // pred_region
      _
    $region41: #{transformer_block.1} parent=1 // pred_fallthru
      _
    // Predicated region
    $region42: #{transformer_block.1} parent=1 // pred_check
      _
    $region43: #{transformer_block.1} parent=1 // pred_check_branch
      %50 = sbr.rel (0) target = $region45
    $region44: #{transformer_block.1} parent=1 // pred_region
      %51 = dma.done [#allocation7], 12288
    $region45: #{transformer_block.1} parent=1 // pred_fallthru
      _
    %s54 = sshll.u32 1, 14
    %s55 = sxor.u32 4294967295, %s54
    %s57 = sld [smem:[#allocation0]]
    %s58 = sadd.s32 2, %s57
    %s60 = sshll.u32 7, 26
    %s61 = sxor.u32 4294967295, %s60
    %s62 = sand.u32 0, %s61
    %s63 = sshll.u32 %s58, 26
    %s64 = sor.u32 %s62, %s63
    %s65 = sshll.u32 [#allocation2], 4
    %s66 = int_to_ptr.vmem [resolvable:$true] %s65
    %69 = sst [smem:[#allocation9]] 256
    %s70 = scalar_lea.smem [#allocation9], 1
    %71 = sst [smem:[%s70]] 256
    %s72 = scalar_lea.smem [#allocation9], 2
    %73 = sst [smem:[%s72]] 2
    %s74 = scalar_lea.smem [#allocation9], 3
    %75 = sst [smem:[%s74]] 64
    %s76 = scalar_lea.smem [#allocation9], 4
    %77 = sst [smem:[%s76]] 128
    %s78 = scalar_lea.smem [#allocation9], 5
    %79 = sst [smem:[%s78]] 2
    %s80 = scalar_lea.smem [#allocation9], 6
    %81 = sst [smem:[%s80]] 128
    %s82 = scalar_lea.smem [#allocation9], 7
    %83 = sst [smem:[%s82]] 64
    %s84 = scalar_lea.smem [#allocation9], 8
    %85 = sst [smem:[%s84]] 4
    %87 = dma.general %s7, 4096, %s66, [#allocation5], [#allocation8], [#allocation9], %s64, 0
    %s88 = scalar_lea.sflag [#allocation5], 1
    %s90 = sshll.u32 1, 14
    %s91 = sxor.u32 4294967295, %s90
    %s93 = sadd.s32 2, %s57
    %s95 = sshll.u32 7, 26
    %s96 = sxor.u32 4294967295, %s95
    %s97 = sand.u32 0, %s96
    %s98 = sshll.u32 %s93, 26
    %s99 = sor.u32 %s97, %s98
    %s100 = sshll.u32 [#allocation3], 4
    %s101 = int_to_ptr.vmem [resolvable:$true] %s100
    %104 = sst [smem:[#allocation11]] 1024
    %s105 = scalar_lea.smem [#allocation11], 1
    %106 = sst [smem:[%s105]] 1024
    %s107 = scalar_lea.smem [#allocation11], 2
    %108 = sst [smem:[%s107]] 8
    %s109 = scalar_lea.smem [#allocation11], 3
    %110 = sst [smem:[%s109]] 64
    %s111 = scalar_lea.smem [#allocation11], 4
    %112 = sst [smem:[%s111]] 128
    %s113 = scalar_lea.smem [#allocation11], 5
    %114 = sst [smem:[%s113]] 2
    %s115 = scalar_lea.smem [#allocation11], 6
    %116 = sst [smem:[%s115]] 512
    %s117 = scalar_lea.smem [#allocation11], 7
    %118 = sst [smem:[%s117]] 64
    %s119 = scalar_lea.smem [#allocation11], 8
    %120 = sst [smem:[%s119]] 4
    %122 = dma.general %s9, 16384, %s101, %s88, [#allocation10], [#allocation11], %s99, 0
    %s123 = scalar_lea.sflag [#allocation5], 2
    %s125 = sshll.u32 1, 14
    %s126 = sxor.u32 4294967295, %s125
    %s128 = sadd.s32 2, %s57
    %s130 = sshll.u32 7, 26
    %s131 = sxor.u32 4294967295, %s130
    %s132 = sand.u32 0, %s131
    %s133 = sshll.u32 %s128, 26
    %s134 = sor.u32 %s132, %s133
    %s135 = sshll.u32 [#allocation4], 4
    %s136 = int_to_ptr.vmem [resolvable:$true] %s135
    %139 = sst [smem:[#allocation13]] 256
    %s140 = scalar_lea.smem [#allocation13], 1
    %141 = sst [smem:[%s140]] 256
    %s142 = scalar_lea.smem [#allocation13], 2
    %143 = sst [smem:[%s142]] 2
    %s144 = scalar_lea.smem [#allocation13], 3
    %145 = sst [smem:[%s144]] 64
    %s146 = scalar_lea.smem [#allocation13], 4
    %147 = sst [smem:[%s146]] 128
    %s148 = scalar_lea.smem [#allocation13], 5
    %149 = sst [smem:[%s148]] 2
    %s150 = scalar_lea.smem [#allocation13], 6
    %151 = sst [smem:[%s150]] 128
    %s152 = scalar_lea.smem [#allocation13], 7
    %153 = sst [smem:[%s152]] 64
    %s154 = scalar_lea.smem [#allocation13], 8
    %155 = sst [smem:[%s154]] 4
    %157 = dma.general %s11, 16384, %s136, %s123, [#allocation12], [#allocation13], %s134, 0
    %v158 = vld [vmem:[%s0] sm:$0xff]
    %v159 = vld [vmem:[%s0 + $0x8] sm:$0xff]
    %v160 = vld [vmem:[%s0 + $0x10] sm:$0xff]
    %v161 = vld [vmem:[%s0 + $0x18] sm:$0xff]
    %v162 = vld [vmem:[%s1] sm:$0x3]
    %v163 = vld [vmem:[%s2] sm:$0x3]
    %v164 = vadd.f32 %v158, %v159
    %165 = vadd.xlane.f32.xlu0 %v164
    %v166 = vpop.xlane.xlu0 %165
    %v167 = vadd.f32 %v160, %v161
    %168 = vadd.xlane.f32.xlu0 %v167
    %v169 = vpop.xlane.xlu0 %168
    %v170 = vrcp.pop 256.0
    %v171 = vmul.f32 %v166, %v170
    %v172 = vmul.f32 %v169, %v170
    %v173 = vmul.f32 %v158, %v158
    %v174 = vmul.f32 %v159, %v159
    %v175 = vmul.f32 %v160, %v160
    %v176 = vmul.f32 %v161, %v161
    %v177 = vadd.f32 %v173, %v174
    %178 = vadd.xlane.f32.xlu0 %v177
    %v179 = vpop.xlane.xlu0 %178
    %v180 = vadd.f32 %v175, %v176
    %181 = vadd.xlane.f32.xlu0 %v180
    %v182 = vpop.xlane.xlu0 %181
    %v183 = vmul.f32 %v179, %v170
    %v184 = vmul.f32 %v182, %v170
    %v185 = vmul.f32 %v171, %v171
    %v186 = vmul.f32 %v172, %v172
    %v187 = vsub.f32 %v183, %v185
    %v188 = vsub.f32 %v184, %v186
    %v189 = vadd.f32 %v187, 1e-05
    %v190 = vadd.f32 %v188, 1e-05
    %v191 = vrsqrt.pop %v189
    %v192 = vrsqrt.pop %v190
    %v193 = vsub.f32 %v158, %v171
    %v194 = vsub.f32 %v159, %v171
    %v195 = vsub.f32 %v160, %v172
    %v196 = vsub.f32 %v161, %v172
    %v197 = vmul.f32 %v193, %v191
    %v198 = vmul.f32 %v194, %v191
    %v199 = vmul.f32 %v195, %v192
    %v200 = vmul.f32 %v196, %v192
    %v202 = vlaneseq
    %v203 = vshrl.u32 %v202, 7
    %v204 = vsub.s32 0, %v203
    %v205 = vrot.slane %v162, %v204
    %v206 = vlaneseq
    %v207 = vshrl.u32 %v206, 7
    %v208 = vsub.s32 1, %v207
    %v209 = vrot.slane %v162, %v208
    %v212 = vmul.f32 %v197, %v205
    %v213 = vmul.f32 %v198, %v209
    %v214 = vmul.f32 %v199, %v205
    %v215 = vmul.f32 %v200, %v209
    %v217 = vlaneseq
    %v218 = vshrl.u32 %v217, 7
    %v219 = vsub.s32 0, %v218
    %v220 = vrot.slane %v163, %v219
    %v221 = vlaneseq
    %v222 = vshrl.u32 %v221, 7
    %v223 = vsub.s32 1, %v222
    %v224 = vrot.slane %v163, %v223
    %v227 = vadd.f32 %v212, %v220
    %v228 = vadd.f32 %v213, %v224
    %v229 = vadd.f32 %v214, %v220
    %v230 = vadd.f32 %v215, %v224
    %v231 = vpack.c.bf16 %v229, %v227
    %v232 = vpack.c.bf16 %v230, %v228
    %v233 = vld [vmem:[#allocation6] sm:$0xff]
    %v234 = vld [vmem:[#allocation6 + $0x8] sm:$0xff]
    %v235 = vld [vmem:[#allocation6 + $0x10] sm:$0xff]
    %v236 = vld [vmem:[#allocation6 + $0x18] sm:$0xff]
    %v237 = vld [vmem:[#allocation6 + $0x20] sm:$0xff]
    %v238 = vld [vmem:[#allocation6 + $0x28] sm:$0xff]
    %v239 = vld [vmem:[#allocation6 + $0x30] sm:$0xff]
    %v240 = vld [vmem:[#allocation6 + $0x38] sm:$0xff]
    %v241 = vld [vmem:[#allocation6 + $0x40] sm:$0xff]
    %v242 = vld [vmem:[#allocation6 + $0x48] sm:$0xff]
    %v243 = vld [vmem:[#allocation6 + $0x50] sm:$0xff]
    %v244 = vld [vmem:[#allocation6 + $0x58] sm:$0xff]
    %v245 = vld [vmem:[#allocation6 + $0x60] sm:$0xff]
    %v246 = vld [vmem:[#allocation6 + $0x68] sm:$0xff]
    %v247 = vld [vmem:[#allocation6 + $0x70] sm:$0xff]
    %v248 = vld [vmem:[#allocation6 + $0x78] sm:$0xff]
    %v249 = vld [vmem:[#allocation6 + $0x80] sm:$0xff]
    %v250 = vld [vmem:[#allocation6 + $0x88] sm:$0xff]
    %v251 = vld [vmem:[#allocation6 + $0x90] sm:$0xff]
    %v252 = vld [vmem:[#allocation6 + $0x98] sm:$0xff]
    %v253 = vld [vmem:[#allocation6 + $0xa0] sm:$0xff]
    %v254 = vld [vmem:[#allocation6 + $0xa8] sm:$0xff]
    %v255 = vld [vmem:[#allocation6 + $0xb0] sm:$0xff]
    %v256 = vld [vmem:[#allocation6 + $0xb8] sm:$0xff]
    %v257 = vld [vmem:[#allocation6 + $0xc0] sm:$0xff]
    %v258 = vld [vmem:[#allocation6 + $0xc8] sm:$0xff]
    %v259 = vld [vmem:[#allocation6 + $0xd0] sm:$0xff]
    %v260 = vld [vmem:[#allocation6 + $0xd8] sm:$0xff]
    %v261 = vld [vmem:[#allocation6 + $0xe0] sm:$0xff]
    %v262 = vld [vmem:[#allocation6 + $0xe8] sm:$0xff]
    %v263 = vld [vmem:[#allocation6 + $0xf0] sm:$0xff]
    %v264 = vld [vmem:[#allocation6 + $0xf8] sm:$0xff]
    %v265 = vld [vmem:[#allocation6 + $0x100] sm:$0xff]
    %v266 = vld [vmem:[#allocation6 + $0x108] sm:$0xff]
    %v267 = vld [vmem:[#allocation6 + $0x110] sm:$0xff]
    %v268 = vld [vmem:[#allocation6 + $0x118] sm:$0xff]
    %v269 = vld [vmem:[#allocation6 + $0x120] sm:$0xff]
    %v270 = vld [vmem:[#allocation6 + $0x128] sm:$0xff]
    %v271 = vld [vmem:[#allocation6 + $0x130] sm:$0xff]
    %v272 = vld [vmem:[#allocation6 + $0x138] sm:$0xff]
    %v273 = vld [vmem:[#allocation6 + $0x140] sm:$0xff]
    %v274 = vld [vmem:[#allocation6 + $0x148] sm:$0xff]
    %v275 = vld [vmem:[#allocation6 + $0x150] sm:$0xff]
    %v276 = vld [vmem:[#allocation6 + $0x158] sm:$0xff]
    %v277 = vld [vmem:[#allocation6 + $0x160] sm:$0xff]
    %v278 = vld [vmem:[#allocation6 + $0x168] sm:$0xff]
    %v279 = vld [vmem:[#allocation6 + $0x170] sm:$0xff]
    %v280 = vld [vmem:[#allocation6 + $0x178] sm:$0xff]
    %v281 = vld [vmem:[#allocation6 + $0x180] sm:$0xff]
    %v282 = vld [vmem:[#allocation6 + $0x188] sm:$0xff]
    %v283 = vld [vmem:[#allocation6 + $0x190] sm:$0xff]
    %v284 = vld [vmem:[#allocation6 + $0x198] sm:$0xff]
    %v285 = vld [vmem:[#allocation6 + $0x1a0] sm:$0xff]
    %v286 = vld [vmem:[#allocation6 + $0x1a8] sm:$0xff]
    %v287 = vld [vmem:[#allocation6 + $0x1b0] sm:$0xff]
    %v288 = vld [vmem:[#allocation6 + $0x1b8] sm:$0xff]
    %v289 = vld [vmem:[#allocation6 + $0x1c0] sm:$0xff]
    %v290 = vld [vmem:[#allocation6 + $0x1c8] sm:$0xff]
    %v291 = vld [vmem:[#allocation6 + $0x1d0] sm:$0xff]
    %v292 = vld [vmem:[#allocation6 + $0x1d8] sm:$0xff]
    %v293 = vld [vmem:[#allocation6 + $0x1e0] sm:$0xff]
    %v294 = vld [vmem:[#allocation6 + $0x1e8] sm:$0xff]
    %v295 = vld [vmem:[#allocation6 + $0x1f0] sm:$0xff]
    %v296 = vld [vmem:[#allocation6 + $0x1f8] sm:$0xff]
    %v297 = vld [vmem:[#allocation6 + $0x200] sm:$0xff]
    %v298 = vld [vmem:[#allocation6 + $0x208] sm:$0xff]
    %v299 = vld [vmem:[#allocation6 + $0x210] sm:$0xff]
    %v300 = vld [vmem:[#allocation6 + $0x218] sm:$0xff]
    %v301 = vld [vmem:[#allocation6 + $0x220] sm:$0xff]
    %v302 = vld [vmem:[#allocation6 + $0x228] sm:$0xff]
    %v303 = vld [vmem:[#allocation6 + $0x230] sm:$0xff]
    %v304 = vld [vmem:[#allocation6 + $0x238] sm:$0xff]
    %v305 = vld [vmem:[#allocation6 + $0x240] sm:$0xff]
    %v306 = vld [vmem:[#allocation6 + $0x248] sm:$0xff]
    %v307 = vld [vmem:[#allocation6 + $0x250] sm:$0xff]
    %v308 = vld [vmem:[#allocation6 + $0x258] sm:$0xff]
    %v309 = vld [vmem:[#allocation6 + $0x260] sm:$0xff]
    %v310 = vld [vmem:[#allocation6 + $0x268] sm:$0xff]
    %v311 = vld [vmem:[#allocation6 + $0x270] sm:$0xff]
    %v312 = vld [vmem:[#allocation6 + $0x278] sm:$0xff]
    %v313 = vld [vmem:[#allocation6 + $0x280] sm:$0xff]
    %v314 = vld [vmem:[#allocation6 + $0x288] sm:$0xff]
    %v315 = vld [vmem:[#allocation6 + $0x290] sm:$0xff]
    %v316 = vld [vmem:[#allocation6 + $0x298] sm:$0xff]
    %v317 = vld [vmem:[#allocation6 + $0x2a0] sm:$0xff]
    %v318 = vld [vmem:[#allocation6 + $0x2a8] sm:$0xff]
    %v319 = vld [vmem:[#allocation6 + $0x2b0] sm:$0xff]
    %v320 = vld [vmem:[#allocation6 + $0x2b8] sm:$0xff]
    %v321 = vld [vmem:[#allocation6 + $0x2c0] sm:$0xff]
    %v322 = vld [vmem:[#allocation6 + $0x2c8] sm:$0xff]
    %v323 = vld [vmem:[#allocation6 + $0x2d0] sm:$0xff]
    %v324 = vld [vmem:[#allocation6 + $0x2d8] sm:$0xff]
    %v325 = vld [vmem:[#allocation6 + $0x2e0] sm:$0xff]
    %v326 = vld [vmem:[#allocation6 + $0x2e8] sm:$0xff]
    %v327 = vld [vmem:[#allocation6 + $0x2f0] sm:$0xff]
    %v328 = vld [vmem:[#allocation6 + $0x2f8] sm:$0xff]
    %v329 = vld [vmem:[%s6] sm:$0x3f]
    %v331 = vlaneseq
    %v332 = vshrl.u32 %v331, 7
    %v333 = vsub.s32 0, %v332
    %v334 = vrot.slane %v329, %v333
    %v335 = vlaneseq
    %v336 = vshrl.u32 %v335, 7
    %v337 = vsub.s32 1, %v336
    %v338 = vrot.slane %v329, %v337
    %v339 = vlaneseq
    %v340 = vshrl.u32 %v339, 7
    %v341 = vsub.s32 2, %v340
    %v342 = vrot.slane %v329, %v341
    %v343 = vlaneseq
    %v344 = vshrl.u32 %v343, 7
    %v345 = vsub.s32 3, %v344
    %v346 = vrot.slane %v329, %v345
    %v347 = vlaneseq
    %v348 = vshrl.u32 %v347, 7
    %v349 = vsub.s32 4, %v348
    %v350 = vrot.slane %v329, %v349
    %v351 = vlaneseq
    %v352 = vshrl.u32 %v351, 7
    %v353 = vsub.s32 5, %v352
    %v354 = vrot.slane %v329, %v353
    %v457 = vunpack.c.l.b16 %v233
    %v458 = vunpack.c.h.b16 %v233
    %v459 = vunpack.c.l.b16 %v234
    %v460 = vunpack.c.h.b16 %v234
    %v461 = vunpack.c.l.b16 %v235
    %v462 = vunpack.c.h.b16 %v235
    %v463 = vunpack.c.l.b16 %v236
    %v464 = vunpack.c.h.b16 %v236
    %v465 = vunpack.c.l.b16 %v237
    %v466 = vunpack.c.h.b16 %v237
    %v467 = vunpack.c.l.b16 %v238
    %v468 = vunpack.c.h.b16 %v238
    %v469 = vunpack.c.l.b16 %v239
    %v470 = vunpack.c.h.b16 %v239
    %v471 = vunpack.c.l.b16 %v240
    %v472 = vunpack.c.h.b16 %v240
    %v473 = vunpack.c.l.b16 %v241
    %v474 = vunpack.c.h.b16 %v241
    %v475 = vunpack.c.l.b16 %v242
    %v476 = vunpack.c.h.b16 %v242
    %v477 = vunpack.c.l.b16 %v243
    %v478 = vunpack.c.h.b16 %v243
    %v479 = vunpack.c.l.b16 %v244
    %v480 = vunpack.c.h.b16 %v244
    %v481 = vunpack.c.l.b16 %v245
    %v482 = vunpack.c.h.b16 %v245
    %v483 = vunpack.c.l.b16 %v246
    %v484 = vunpack.c.h.b16 %v246
    %v485 = vunpack.c.l.b16 %v247
    %v486 = vunpack.c.h.b16 %v247
    %v487 = vunpack.c.l.b16 %v248
    %v488 = vunpack.c.h.b16 %v248
    %v489 = vunpack.c.l.b16 %v249
    %v490 = vunpack.c.h.b16 %v249
    %v491 = vunpack.c.l.b16 %v250
    %v492 = vunpack.c.h.b16 %v250
    %v493 = vunpack.c.l.b16 %v251
    %v494 = vunpack.c.h.b16 %v251
    %v495 = vunpack.c.l.b16 %v252
    %v496 = vunpack.c.h.b16 %v252
    %v497 = vunpack.c.l.b16 %v253
    %v498 = vunpack.c.h.b16 %v253
    %v499 = vunpack.c.l.b16 %v254
    %v500 = vunpack.c.h.b16 %v254
    %v501 = vunpack.c.l.b16 %v255
    %v502 = vunpack.c.h.b16 %v255
    %v503 = vunpack.c.l.b16 %v256
    %v504 = vunpack.c.h.b16 %v256
    %v505 = vunpack.c.l.b16 %v257
    %v506 = vunpack.c.h.b16 %v257
    %v507 = vunpack.c.l.b16 %v258
    %v508 = vunpack.c.h.b16 %v258
    %v509 = vunpack.c.l.b16 %v259
    %v510 = vunpack.c.h.b16 %v259
    %v511 = vunpack.c.l.b16 %v260
    %v512 = vunpack.c.h.b16 %v260
    %v513 = vunpack.c.l.b16 %v261
    %v514 = vunpack.c.h.b16 %v261
    %v515 = vunpack.c.l.b16 %v262
    %v516 = vunpack.c.h.b16 %v262
    %v517 = vunpack.c.l.b16 %v263
    %v518 = vunpack.c.h.b16 %v263
    %v519 = vunpack.c.l.b16 %v264
    %v520 = vunpack.c.h.b16 %v264
    %v521 = vunpack.c.l.b16 %v265
    %v522 = vunpack.c.h.b16 %v265
    %v523 = vunpack.c.l.b16 %v266
    %v524 = vunpack.c.h.b16 %v266
    %v525 = vunpack.c.l.b16 %v267
    %v526 = vunpack.c.h.b16 %v267
    %v527 = vunpack.c.l.b16 %v268
    %v528 = vunpack.c.h.b16 %v268
    %v529 = vunpack.c.l.b16 %v269
    %v530 = vunpack.c.h.b16 %v269
    %v531 = vunpack.c.l.b16 %v270
    %v532 = vunpack.c.h.b16 %v270
    %v533 = vunpack.c.l.b16 %v271
    %v534 = vunpack.c.h.b16 %v271
    %v535 = vunpack.c.l.b16 %v272
    %v536 = vunpack.c.h.b16 %v272
    %v537 = vunpack.c.l.b16 %v273
    %v538 = vunpack.c.h.b16 %v273
    %v539 = vunpack.c.l.b16 %v274
    %v540 = vunpack.c.h.b16 %v274
    %v541 = vunpack.c.l.b16 %v275
    %v542 = vunpack.c.h.b16 %v275
    %v543 = vunpack.c.l.b16 %v276
    %v544 = vunpack.c.h.b16 %v276
    %v545 = vunpack.c.l.b16 %v277
    %v546 = vunpack.c.h.b16 %v277
    %v547 = vunpack.c.l.b16 %v278
    %v548 = vunpack.c.h.b16 %v278
    %v549 = vunpack.c.l.b16 %v279
    %v550 = vunpack.c.h.b16 %v279
    %v551 = vunpack.c.l.b16 %v280
    %v552 = vunpack.c.h.b16 %v280
    %v553 = vunpack.c.l.b16 %v281
    %v554 = vunpack.c.h.b16 %v281
    %v555 = vunpack.c.l.b16 %v282
    %v556 = vunpack.c.h.b16 %v282
    %v557 = vunpack.c.l.b16 %v283
    %v558 = vunpack.c.h.b16 %v283
    %v559 = vunpack.c.l.b16 %v284
    %v560 = vunpack.c.h.b16 %v284
    %v561 = vunpack.c.l.b16 %v285
    %v562 = vunpack.c.h.b16 %v285
    %v563 = vunpack.c.l.b16 %v286
    %v564 = vunpack.c.h.b16 %v286
    %v565 = vunpack.c.l.b16 %v287
    %v566 = vunpack.c.h.b16 %v287
    %v567 = vunpack.c.l.b16 %v288
    %v568 = vunpack.c.h.b16 %v288
    %v569 = vunpack.c.l.b16 %v289
    %v570 = vunpack.c.h.b16 %v289
    %v571 = vunpack.c.l.b16 %v290
    %v572 = vunpack.c.h.b16 %v290
    %v573 = vunpack.c.l.b16 %v291
    %v574 = vunpack.c.h.b16 %v291
    %v575 = vunpack.c.l.b16 %v292
    %v576 = vunpack.c.h.b16 %v292
    %v577 = vunpack.c.l.b16 %v293
    %v578 = vunpack.c.h.b16 %v293
    %v579 = vunpack.c.l.b16 %v294
    %v580 = vunpack.c.h.b16 %v294
    %v581 = vunpack.c.l.b16 %v295
    %v582 = vunpack.c.h.b16 %v295
    %v583 = vunpack.c.l.b16 %v296
    %v584 = vunpack.c.h.b16 %v296
    %v585 = vunpack.c.l.b16 %v297
    %v586 = vunpack.c.h.b16 %v297
    %v587 = vunpack.c.l.b16 %v298
    %v588 = vunpack.c.h.b16 %v298
    %v589 = vunpack.c.l.b16 %v299
    %v590 = vunpack.c.h.b16 %v299
    %v591 = vunpack.c.l.b16 %v300
    %v592 = vunpack.c.h.b16 %v300
    %v593 = vunpack.c.l.b16 %v301
    %v594 = vunpack.c.h.b16 %v301
    %v595 = vunpack.c.l.b16 %v302
    %v596 = vunpack.c.h.b16 %v302
    %v597 = vunpack.c.l.b16 %v303
    %v598 = vunpack.c.h.b16 %v303
    %v599 = vunpack.c.l.b16 %v304
    %v600 = vunpack.c.h.b16 %v304
    %v601 = vunpack.c.l.b16 %v305
    %v602 = vunpack.c.h.b16 %v305
    %v603 = vunpack.c.l.b16 %v306
    %v604 = vunpack.c.h.b16 %v306
    %v605 = vunpack.c.l.b16 %v307
    %v606 = vunpack.c.h.b16 %v307
    %v607 = vunpack.c.l.b16 %v308
    %v608 = vunpack.c.h.b16 %v308
    %v609 = vunpack.c.l.b16 %v309
    %v610 = vunpack.c.h.b16 %v309
    %v611 = vunpack.c.l.b16 %v310
    %v612 = vunpack.c.h.b16 %v310
    %v613 = vunpack.c.l.b16 %v311
    %v614 = vunpack.c.h.b16 %v311
    %v615 = vunpack.c.l.b16 %v312
    %v616 = vunpack.c.h.b16 %v312
    %v617 = vunpack.c.l.b16 %v313
    %v618 = vunpack.c.h.b16 %v313
    %v619 = vunpack.c.l.b16 %v314
    %v620 = vunpack.c.h.b16 %v314
    %v621 = vunpack.c.l.b16 %v315
    %v622 = vunpack.c.h.b16 %v315
    %v623 = vunpack.c.l.b16 %v316
    %v624 = vunpack.c.h.b16 %v316
    %v625 = vunpack.c.l.b16 %v317
    %v626 = vunpack.c.h.b16 %v317
    %v627 = vunpack.c.l.b16 %v318
    %v628 = vunpack.c.h.b16 %v318
    %v629 = vunpack.c.l.b16 %v319
    %v630 = vunpack.c.h.b16 %v319
    %v631 = vunpack.c.l.b16 %v320
    %v632 = vunpack.c.h.b16 %v320
    %v633 = vunpack.c.l.b16 %v321
    %v634 = vunpack.c.h.b16 %v321
    %v635 = vunpack.c.l.b16 %v322
    %v636 = vunpack.c.h.b16 %v322
    %v637 = vunpack.c.l.b16 %v323
    %v638 = vunpack.c.h.b16 %v323
    %v639 = vunpack.c.l.b16 %v324
    %v640 = vunpack.c.h.b16 %v324
    %v641 = vunpack.c.l.b16 %v325
    %v642 = vunpack.c.h.b16 %v325
    %v643 = vunpack.c.l.b16 %v326
    %v644 = vunpack.c.h.b16 %v326
    %v645 = vunpack.c.l.b16 %v327
    %v646 = vunpack.c.h.b16 %v327
    %v647 = vunpack.c.l.b16 %v328
    %v648 = vunpack.c.h.b16 %v328
    %v649 = vpack.c.b16 %v463, %v457
    %v650 = vpack.c.b16 %v464, %v458
    %v651 = vpack.c.b16 %v465, %v459
    %v652 = vpack.c.b16 %v466, %v460
    %v653 = vpack.c.b16 %v467, %v461
    %v654 = vpack.c.b16 %v468, %v462
    %v655 = vpack.c.b16 %v475, %v469
    %v656 = vpack.c.b16 %v476, %v470
    %v657 = vpack.c.b16 %v477, %v471
    %v658 = vpack.c.b16 %v478, %v472
    %v659 = vpack.c.b16 %v479, %v473
    %v660 = vpack.c.b16 %v480, %v474
    %v661 = vpack.c.b16 %v487, %v481
    %v662 = vpack.c.b16 %v488, %v482
    %v663 = vpack.c.b16 %v489, %v483
    %v664 = vpack.c.b16 %v490, %v484
    %v665 = vpack.c.b16 %v491, %v485
    %v666 = vpack.c.b16 %v492, %v486
    %v667 = vpack.c.b16 %v499, %v493
    %v668 = vpack.c.b16 %v500, %v494
    %v669 = vpack.c.b16 %v501, %v495
    %v670 = vpack.c.b16 %v502, %v496
    %v671 = vpack.c.b16 %v503, %v497
    %v672 = vpack.c.b16 %v504, %v498
    %v673 = vpack.c.b16 %v511, %v505
    %v674 = vpack.c.b16 %v512, %v506
    %v675 = vpack.c.b16 %v513, %v507
    %v676 = vpack.c.b16 %v514, %v508
    %v677 = vpack.c.b16 %v515, %v509
    %v678 = vpack.c.b16 %v516, %v510
    %v679 = vpack.c.b16 %v523, %v517
    %v680 = vpack.c.b16 %v524, %v518
    %v681 = vpack.c.b16 %v525, %v519
    %v682 = vpack.c.b16 %v526, %v520
    %v683 = vpack.c.b16 %v527, %v521
    %v684 = vpack.c.b16 %v528, %v522
    %v685 = vpack.c.b16 %v535, %v529
    %v686 = vpack.c.b16 %v536, %v530
    %v687 = vpack.c.b16 %v537, %v531
    %v688 = vpack.c.b16 %v538, %v532
    %v689 = vpack.c.b16 %v539, %v533
    %v690 = vpack.c.b16 %v540, %v534
    %v691 = vpack.c.b16 %v547, %v541
    %v692 = vpack.c.b16 %v548, %v542
    %v693 = vpack.c.b16 %v549, %v543
    %v694 = vpack.c.b16 %v550, %v544
    %v695 = vpack.c.b16 %v551, %v545
    %v696 = vpack.c.b16 %v552, %v546
    %v697 = vpack.c.b16 %v559, %v553
    %v698 = vpack.c.b16 %v560, %v554
    %v699 = vpack.c.b16 %v561, %v555
    %v700 = vpack.c.b16 %v562, %v556
    %v701 = vpack.c.b16 %v563, %v557
    %v702 = vpack.c.b16 %v564, %v558
    %v703 = vpack.c.b16 %v571, %v565
    %v704 = vpack.c.b16 %v572, %v566
    %v705 = vpack.c.b16 %v573, %v567
    %v706 = vpack.c.b16 %v574, %v568
    %v707 = vpack.c.b16 %v575, %v569
    %v708 = vpack.c.b16 %v576, %v570
    %v709 = vpack.c.b16 %v583, %v577
    %v710 = vpack.c.b16 %v584, %v578
    %v711 = vpack.c.b16 %v585, %v579
    %v712 = vpack.c.b16 %v586, %v580
    %v713 = vpack.c.b16 %v587, %v581
    %v714 = vpack.c.b16 %v588, %v582
    %v715 = vpack.c.b16 %v595, %v589
    %v716 = vpack.c.b16 %v596, %v590
    %v717 = vpack.c.b16 %v597, %v591
    %v718 = vpack.c.b16 %v598, %v592
    %v719 = vpack.c.b16 %v599, %v593
    %v720 = vpack.c.b16 %v600, %v594
    %v721 = vpack.c.b16 %v607, %v601
    %v722 = vpack.c.b16 %v608, %v602
    %v723 = vpack.c.b16 %v609, %v603
    %v724 = vpack.c.b16 %v610, %v604
    %v725 = vpack.c.b16 %v611, %v605
    %v726 = vpack.c.b16 %v612, %v606
    %v727 = vpack.c.b16 %v619, %v613
    %v728 = vpack.c.b16 %v620, %v614
    %v729 = vpack.c.b16 %v621, %v615
    %v730 = vpack.c.b16 %v622, %v616
    %v731 = vpack.c.b16 %v623, %v617
    %v732 = vpack.c.b16 %v624, %v618
    %v733 = vpack.c.b16 %v631, %v625
    %v734 = vpack.c.b16 %v632, %v626
    %v735 = vpack.c.b16 %v633, %v627
    %v736 = vpack.c.b16 %v634, %v628
    %v737 = vpack.c.b16 %v635, %v629
    %v738 = vpack.c.b16 %v636, %v630
    %v739 = vpack.c.b16 %v643, %v637
    %v740 = vpack.c.b16 %v644, %v638
    %v741 = vpack.c.b16 %v645, %v639
    %v742 = vpack.c.b16 %v646, %v640
    %v743 = vpack.c.b16 %v647, %v641
    %v744 = vpack.c.b16 %v648, %v642
    %841 = vmatprep.subr.bf16.mxu0 %v650
    %842 = vmatpush1.bf16.msra.mxu0 %v649
    %843 = vmatprep.subr.bf16.mxu0 %v656
    %844 = vmatpush1.bf16.msra.mxu0 %v655
    %845 = vmatprep.subr.bf16.mxu0 %v662
    %846 = vmatpush1.bf16.msra.mxu0 %v661
    %847 = vmatprep.subr.bf16.mxu0 %v668
    %848 = vmatpush1.bf16.msra.mxu0 %v667
    %849 = vmatprep.subr.bf16.mxu0 %v674
    %850 = vmatpush1.bf16.msra.mxu0 %v673
    %851 = vmatprep.subr.bf16.mxu0 %v680
    %852 = vmatpush1.bf16.msra.mxu0 %v679
    %853 = vmatprep.subr.bf16.mxu0 %v686
    %854 = vmatpush1.bf16.msra.mxu0 %v685
    %855 = vmatprep.subr.bf16.mxu0 %v692
    %856 = vmatpush1.bf16.msra.mxu0 %v691
    %857 = vmatprep.subr.bf16.mxu0 %v698
    %858 = vmatpush1.bf16.msra.mxu0 %v697
    %859 = vmatprep.subr.bf16.mxu0 %v704
    %860 = vmatpush1.bf16.msra.mxu0 %v703
    %861 = vmatprep.subr.bf16.mxu0 %v710
    %862 = vmatpush1.bf16.msra.mxu0 %v709
    %863 = vmatprep.subr.bf16.mxu0 %v716
    %864 = vmatpush1.bf16.msra.mxu0 %v715
    %865 = vmatprep.subr.bf16.mxu0 %v722
    %866 = vmatpush1.bf16.msra.mxu0 %v721
    %867 = vmatprep.subr.bf16.mxu0 %v728
    %868 = vmatpush1.bf16.msra.mxu0 %v727
    %869 = vmatprep.subr.bf16.mxu0 %v734
    %870 = vmatpush1.bf16.msra.mxu0 %v733
    %871 = vmatprep.subr.bf16.mxu0 %v740
    %872 = vmatpush1.bf16.msra.mxu0 %v739
    %873 = vmatprep.mubr.bf16.mxu0 %v232
    %874 = vmatmul.mubr.bf16.gmra.mrb[0].mxu0 %v231
    %v875 = vpop.f32.mrb[0].mxu0
    %v876 = vadd.f32 %v334, %v875
    %v877 = vpop.f32.mrb[0].mxu0
    %v878 = vadd.f32 %v338, %v877
    %v879 = vpop.f32.mrb[0].mxu0
    %v880 = vadd.f32 %v334, %v879
    %v881 = vpop.f32.mrb[0].mxu0
    %v882 = vadd.f32 %v338, %v881
    %883 = vdwg.mxu0
    %884 = vmatprep.subr.bf16.mxu0 %v652
    %885 = vmatpush1.bf16.msra.mxu0 %v651
    %886 = vmatprep.subr.bf16.mxu0 %v658
    %887 = vmatpush1.bf16.msra.mxu0 %v657
    %888 = vmatprep.subr.bf16.mxu0 %v664
    %889 = vmatpush1.bf16.msra.mxu0 %v663
    %890 = vmatprep.subr.bf16.mxu0 %v670
    %891 = vmatpush1.bf16.msra.mxu0 %v669
    %892 = vmatprep.subr.bf16.mxu0 %v676
    %893 = vmatpush1.bf16.msra.mxu0 %v675
    %894 = vmatprep.subr.bf16.mxu0 %v682
    %895 = vmatpush1.bf16.msra.mxu0 %v681
    %896 = vmatprep.subr.bf16.mxu0 %v688
    %897 = vmatpush1.bf16.msra.mxu0 %v687
    %898 = vmatprep.subr.bf16.mxu0 %v694
    %899 = vmatpush1.bf16.msra.mxu0 %v693
    %900 = vmatprep.subr.bf16.mxu0 %v700
    %901 = vmatpush1.bf16.msra.mxu0 %v699
    %902 = vmatprep.subr.bf16.mxu0 %v706
    %903 = vmatpush1.bf16.msra.mxu0 %v705
    %904 = vmatprep.subr.bf16.mxu0 %v712
    %905 = vmatpush1.bf16.msra.mxu0 %v711
    %906 = vmatprep.subr.bf16.mxu0 %v718
    %907 = vmatpush1.bf16.msra.mxu0 %v717
    %908 = vmatprep.subr.bf16.mxu0 %v724
    %909 = vmatpush1.bf16.msra.mxu0 %v723
    %910 = vmatprep.subr.bf16.mxu0 %v730
    %911 = vmatpush1.bf16.msra.mxu0 %v729
    %912 = vmatprep.subr.bf16.mxu0 %v736
    %913 = vmatpush1.bf16.msra.mxu0 %v735
    %914 = vmatprep.subr.bf16.mxu0 %v742
    %915 = vmatpush1.bf16.msra.mxu0 %v741
    %916 = vmatprep.mubr.bf16.mxu0 %v232
    %917 = vmatmul.mubr.bf16.gmra.mrb[0].mxu0 %v231
    %v918 = vpop.f32.mrb[0].mxu0
    %v919 = vadd.f32 %v342, %v918
    %v920 = vpop.f32.mrb[0].mxu0
    %v921 = vadd.f32 %v346, %v920
    %v922 = vpop.f32.mrb[0].mxu0
    %v923 = vadd.f32 %v342, %v922
    %v924 = vpop.f32.mrb[0].mxu0
    %v925 = vadd.f32 %v346, %v924
    %926 = vdwg.mxu0
    %927 = vmatprep.subr.bf16.mxu0 %v654
    %928 = vmatpush1.bf16.msra.mxu0 %v653
    %929 = vmatprep.subr.bf16.mxu0 %v660
    %930 = vmatpush1.bf16.msra.mxu0 %v659
    %931 = vmatprep.subr.bf16.mxu0 %v666
    %932 = vmatpush1.bf16.msra.mxu0 %v665
    %933 = vmatprep.subr.bf16.mxu0 %v672
    %934 = vmatpush1.bf16.msra.mxu0 %v671
    %935 = vmatprep.subr.bf16.mxu0 %v678
    %936 = vmatpush1.bf16.msra.mxu0 %v677
    %937 = vmatprep.subr.bf16.mxu0 %v684
    %938 = vmatpush1.bf16.msra.mxu0 %v683
    %939 = vmatprep.subr.bf16.mxu0 %v690
    %940 = vmatpush1.bf16.msra.mxu0 %v689
    %941 = vmatprep.subr.bf16.mxu0 %v696
    %942 = vmatpush1.bf16.msra.mxu0 %v695
    %943 = vmatprep.subr.bf16.mxu0 %v702
    %944 = vmatpush1.bf16.msra.mxu0 %v701
    %945 = vmatprep.subr.bf16.mxu0 %v708
    %946 = vmatpush1.bf16.msra.mxu0 %v707
    %947 = vmatprep.subr.bf16.mxu0 %v714
    %948 = vmatpush1.bf16.msra.mxu0 %v713
    %949 = vmatprep.subr.bf16.mxu0 %v720
    %950 = vmatpush1.bf16.msra.mxu0 %v719
    %951 = vmatprep.subr.bf16.mxu0 %v726
    %952 = vmatpush1.bf16.msra.mxu0 %v725
    %953 = vmatprep.subr.bf16.mxu0 %v732
    %954 = vmatpush1.bf16.msra.mxu0 %v731
    %955 = vmatprep.subr.bf16.mxu0 %v738
    %956 = vmatpush1.bf16.msra.mxu0 %v737
    %957 = vmatprep.subr.bf16.mxu0 %v744
    %958 = vmatpush1.bf16.msra.mxu0 %v743
    %959 = vmatprep.mubr.bf16.mxu0 %v232
    %960 = vmatmul.mubr.bf16.gmra.mrb[0].mxu0 %v231
    %v961 = vpop.f32.mrb[0].mxu0
    %v962 = vadd.f32 %v350, %v961
    %v963 = vpop.f32.mrb[0].mxu0
    %v964 = vadd.f32 %v354, %v963
    %v965 = vpop.f32.mrb[0].mxu0
    %v966 = vadd.f32 %v350, %v965
    %v967 = vpop.f32.mrb[0].mxu0
    %v968 = vadd.f32 %v354, %v967
    %969 = vdwg.mxu0
    %v970 = vpack.c.bf16 %v880, %v876
    %v971 = vpack.c.bf16 %v882, %v878
    %v972 = vpack.c.bf16 %v923, %v919
    %v973 = vpack.c.bf16 %v925, %v921
    %v974 = vpack.c.bf16 %v966, %v962
    %v975 = vpack.c.bf16 %v968, %v964
    %978 = vrot.lane.b32.xlu0 %v970, 32
    %v979 = vpop.permute.xlu0 %978
    %980 = vrot.lane.b32.xlu0 %v971, 32
    %v981 = vpop.permute.xlu0 %980
    %vm982 = vcmask 261120
    %v983 = vsel %vm982, %v979, %v981
    %985 = vrot.lane.b32.xlu0 %v971, 64
    %v986 = vpop.permute.xlu0 %985
    %987 = vrot.lane.b32.xlu0 %v972, 64
    %v988 = vpop.permute.xlu0 %987
    %vm989 = vcmask 523264
    %v990 = vsel %vm989, %v986, %v988
    %991 = vrot.lane.b32.xlu0 %v972, 96
    %v992 = vpop.permute.xlu0 %991
    %995 = vrot.lane.b32.xlu0 %v973, 32
    %v996 = vpop.permute.xlu0 %995
    %997 = vrot.lane.b32.xlu0 %v974, 32
    %v998 = vpop.permute.xlu0 %997
    %v999 = vsel %vm982, %v996, %v998
    %1001 = vrot.lane.b32.xlu0 %v974, 64
    %v1002 = vpop.permute.xlu0 %1001
    %1003 = vrot.lane.b32.xlu0 %v975, 64
    %v1004 = vpop.permute.xlu0 %1003
    %v1005 = vsel %vm989, %v1002, %v1004
    %1006 = vrot.lane.b32.xlu0 %v975, 96
    %v1007 = vpop.permute.xlu0 %1006
    %v1008 = vunpack.c.l.b16 %v970
    %v1009 = vunpack.c.h.b16 %v970
    %v1010 = vunpack.c.l.b16 %v983
    %v1011 = vunpack.c.h.b16 %v983
    %v1012 = vunpack.c.l.b16 %v990
    %v1013 = vunpack.c.h.b16 %v990
    %v1014 = vunpack.c.l.b16 %v992
    %v1015 = vunpack.c.h.b16 %v992
    %v1016 = vunpack.c.l.b16 %v973
    %v1017 = vunpack.c.h.b16 %v973
    %v1018 = vunpack.c.l.b16 %v999
    %v1019 = vunpack.c.h.b16 %v999
    %v1020 = vunpack.c.l.b16 %v1005
    %v1021 = vunpack.c.h.b16 %v1005
    %v1022 = vunpack.c.l.b16 %v1007
    %v1023 = vunpack.c.h.b16 %v1007
    %v1024 = vpack.c.b16 %v1008, %v1008
    %v1025 = vpack.c.b16 %v1009, %v1009
    %v1026 = vpack.c.b16 %v1010, %v1010
    %v1027 = vpack.c.b16 %v1011, %v1011
    %v1028 = vpack.c.b16 %v1012, %v1012
    %v1029 = vpack.c.b16 %v1013, %v1013
    %v1030 = vpack.c.b16 %v1014, %v1014
    %v1031 = vpack.c.b16 %v1015, %v1015
    %v1032 = vpack.c.b16 %v1016, %v1016
    %v1033 = vpack.c.b16 %v1017, %v1017
    %v1034 = vpack.c.b16 %v1018, %v1018
    %v1035 = vpack.c.b16 %v1019, %v1019
    %v1036 = vpack.c.b16 %v1020, %v1020
    %v1037 = vpack.c.b16 %v1021, %v1021
    %v1038 = vpack.c.b16 %v1022, %v1022
    %v1039 = vpack.c.b16 %v1023, %v1023
    %1040 = vrot.lane.b32.xlu0 %v1024, 96
    %v1041 = vpop.permute.xlu0 %1040
    %vm1042 = vcmask 261120
    %v1044 = vsel %vm1042, %v1024, 0
    %v1047 = vsel %vm1042, %v1041, 0
    %1049 = vmatprep.subr.bf16.mxu0 0
    %1050 = vmatpush1.bf16.xpose.msra.mxu0 %v1047
    %1051 = vmatprep.subr.bf16.mxu0 0
    %1052 = vmatpush1.bf16.xpose.msra.mxu0 0
    %1053 = vmatprep.subr.bf16.mxu0 0
    %1054 = vmatpush1.bf16.xpose.msra.mxu0 0
    %1055 = vmatprep.subr.bf16.mxu0 0
    %1056 = vmatpush1.bf16.xpose.msra.mxu0 0
    %1057 = vmatprep.subr.bf16.mxu0 0
    %1058 = vmatpush1.bf16.xpose.msra.mxu0 0
    %1059 = vmatprep.subr.bf16.mxu0 0
    %1060 = vmatpush1.bf16.xpose.msra.mxu0 0
    %1061 = vmatprep.subr.bf16.mxu0 0
    %1062 = vmatpush1.bf16.xpose.msra.mxu0 0
    %1063 = vmatprep.subr.bf16.mxu0 0
    %1064 = vmatpush1.bf16.xpose.msra.mxu0 0
    %1065 = vmatprep.subr.bf16.mxu0 0
    %1066 = vmatpush1.bf16.xpose.msra.mxu0 0
    %1067 = vmatprep.subr.bf16.mxu0 0
    %1068 = vmatpush1.bf16.xpose.msra.mxu0 0
    %1069 = vmatprep.subr.bf16.mxu0 0
    %1070 = vmatpush1.bf16.xpose.msra.mxu0 0
    %1071 = vmatprep.subr.bf16.mxu0 0
    %1072 = vmatpush1.bf16.xpose.msra.mxu0 0
    %1073 = vmatprep.subr.bf16.mxu0 0
    %1074 = vmatpush1.bf16.xpose.msra.mxu0 0
    %1075 = vmatprep.subr.bf16.mxu0 0
    %1076 = vmatpush1.bf16.xpose.msra.mxu0 0
    %1077 = vmatprep.subr.bf16.mxu0 0
    %1078 = vmatpush1.bf16.xpose.msra.mxu0 0
    %1079 = vmatprep.subr.bf16.mxu0 0
    %1080 = vmatpush1.bf16.xpose.msra.mxu0 0
    %1081 = vmatprep.mubr.bf16.mxu0 0
    %1082 = vmatmul.mubr.bf16.gmra.mrb[0].mxu0 %v1044
    %v1083 = vpop.f32.mrb[0].mxu0
    %v1084 = vadd.f32 0.0, %v1083
    %v1085 = vpop.f32.mrb[0].mxu0
    %v1086 = vpop.f32.mrb[0].mxu0
    %v1087 = vpop.f32.mrb[0].mxu0
    %1088 = vdwg.mxu0
    %1089 = vrot.lane.b32.xlu0 %v1025, 96
    %v1090 = vpop.permute.xlu0 %1089
    %v1092 = vsel %vm1042, %v1025, 0
    %v1095 = vsel %vm1042, %v1090, 0
    %1097 = vmatprep.subr.bf16.mxu0 0
    %1098 = vmatpush1.bf16.xpose.msra.mxu0 %v1095
    %1099 = vmatprep.subr.bf16.mxu0 0
    %1100 = vmatpush1.bf16.xpose.msra.mxu0 0
    %1101 = vmatprep.subr.bf16.mxu0 0
    %1102 = vmatpush1.bf16.xpose.msra.mxu0 0
    %1103 = vmatprep.subr.bf16.mxu0 0
    %1104 = vmatpush1.bf16.xpose.msra.mxu0 0
    %1105 = vmatprep.subr.bf16.mxu0 0
    %1106 = vmatpush1.bf16.xpose.msra.mxu0 0
    %1107 = vmatprep.subr.bf16.mxu0 0
    %1108 = vmatpush1.bf16.xpose.msra.mxu0 0
    %1109 = vmatprep.subr.bf16.mxu0 0
    %1110 = vmatpush1.bf16.xpose.msra.mxu0 0
    %1111 = vmatprep.subr.bf16.mxu0 0
    %1112 = vmatpush1.bf16.xpose.msra.mxu0 0
    %1113 = vmatprep.subr.bf16.mxu0 0
    %1114 = vmatpush1.bf16.xpose.msra.mxu0 0
    %1115 = vmatprep.subr.bf16.mxu0 0
    %1116 = vmatpush1.bf16.xpose.msra.mxu0 0
    %1117 = vmatprep.subr.bf16.mxu0 0
    %1118 = vmatpush1.bf16.xpose.msra.mxu0 0
    %1119 = vmatprep.subr.bf16.mxu0 0
    %1120 = vmatpush1.bf16.xpose.msra.mxu0 0
    %1121 = vmatprep.subr.bf16.mxu0 0
    %1122 = vmatpush1.bf16.xpose.msra.mxu0 0
    %1123 = vmatprep.subr.bf16.mxu0 0
    %1124 = vmatpush1.bf16.xpose.msra.mxu0 0
    %1125 = vmatprep.subr.bf16.mxu0 0
    %1126 = vmatpush1.bf16.xpose.msra.mxu0 0
    %1127 = vmatprep.subr.bf16.mxu0 0
    %1128 = vmatpush1.bf16.xpose.msra.mxu0 0
    %1129 = vmatprep.mubr.bf16.mxu0 0
    %1130 = vmatmul.mubr.bf16.gmra.mrb[0].mxu0 %v1092
    %v1131 = vpop.f32.mrb[0].mxu0
    %v1132 = vadd.f32 0.0, %v1131
    %v1133 = vpop.f32.mrb[0].mxu0
    %v1134 = vpop.f32.mrb[0].mxu0
    %v1135 = vpop.f32.mrb[0].mxu0
    %1136 = vdwg.mxu0
    %1137 = vrot.lane.b32.xlu0 %v1026, 96
    %v1138 = vpop.permute.xlu0 %1137
    %v1140 = vsel %vm1042, %v1026, 0
    %v1143 = vsel %vm1042, %v1138, 0
    %1145 = vmatprep.subr.bf16.mxu0 0
    %1146 = vmatpush1.bf16.xpose.msra.mxu0 %v1143
    %1147 = vmatprep.subr.bf16.mxu0 0
    %1148 = vmatpush1.bf16.xpose.msra.mxu0 0
    %1149 = vmatprep.subr.bf16.mxu0 0
    %1150 = vmatpush1.bf16.xpose.msra.mxu0 0
    %1151 = vmatprep.subr.bf16.mxu0 0
    %1152 = vmatpush1.bf16.xpose.msra.mxu0 0
    %1153 = vmatprep.subr.bf16.mxu0 0
    %1154 = vmatpush1.bf16.xpose.msra.mxu0 0
    %1155 = vmatprep.subr.bf16.mxu0 0
    %1156 = vmatpush1.bf16.xpose.msra.mxu0 0
    %1157 = vmatprep.subr.bf16.mxu0 0
    %1158 = vmatpush1.bf16.xpose.msra.mxu0 0
    %1159 = vmatprep.subr.bf16.mxu0 0
    %1160 = vmatpush1.bf16.xpose.msra.mxu0 0
    %1161 = vmatprep.subr.bf16.mxu0 0
    %1162 = vmatpush1.bf16.xpose.msra.mxu0 0
    %1163 = vmatprep.subr.bf16.mxu0 0
    %1164 = vmatpush1.bf16.xpose.msra.mxu0 0
    %1165 = vmatprep.subr.bf16.mxu0 0
    %1166 = vmatpush1.bf16.xpose.msra.mxu0 0
    %1167 = vmatprep.subr.bf16.mxu0 0
    %1168 = vmatpush1.bf16.xpose.msra.mxu0 0
    %1169 = vmatprep.subr.bf16.mxu0 0
    %1170 = vmatpush1.bf16.xpose.msra.mxu0 0
    %1171 = vmatprep.subr.bf16.mxu0 0
    %1172 = vmatpush1.bf16.xpose.msra.mxu0 0
    %1173 = vmatprep.subr.bf16.mxu0 0
    %1174 = vmatpush1.bf16.xpose.msra.mxu0 0
    %1175 = vmatprep.subr.bf16.mxu0 0
    %1176 = vmatpush1.bf16.xpose.msra.mxu0 0
    %1177 = vmatprep.mubr.bf16.mxu0 0
    %1178 = vmatmul.mubr.bf16.gmra.mrb[0].mxu0 %v1140
    %v1179 = vpop.f32.mrb[0].mxu0
    %v1180 = vadd.f32 0.0, %v1179
    %v1181 = vpop.f32.mrb[0].mxu0
    %v1182 = vpop.f32.mrb[0].mxu0
    %v1183 = vpop.f32.mrb[0].mxu0
    %1184 = vdwg.mxu0
    %1185 = vrot.lane.b32.xlu0 %v1027, 96
    %v1186 = vpop.permute.xlu0 %1185
    %v1188 = vsel %vm1042, %v1027, 0
    %v1191 = vsel %vm1042, %v1186, 0
    %1193 = vmatprep.subr.bf16.mxu0 0
    %1194 = vmatpush1.bf16.xpose.msra.mxu0 %v1191
    %1195 = vmatprep.subr.bf16.mxu0 0
    %1196 = vmatpush1.bf16.xpose.msra.mxu0 0
    %1197 = vmatprep.subr.bf16.mxu0 0
    %1198 = vmatpush1.bf16.xpose.msra.mxu0 0
    %1199 = vmatprep.subr.bf16.mxu0 0
    %1200 = vmatpush1.bf16.xpose.msra.mxu0 0
    %1201 = vmatprep.subr.bf16.mxu0 0
    %1202 = vmatpush1.bf16.xpose.msra.mxu0 0
    %1203 = vmatprep.subr.bf16.mxu0 0
    %1204 = vmatpush1.bf16.xpose.msra.mxu0 0
    %1205 = vmatprep.subr.bf16.mxu0 0
    %1206 = vmatpush1.bf16.xpose.msra.mxu0 0
    %1207 = vmatprep.subr.bf16.mxu0 0
    %1208 = vmatpush1.bf16.xpose.msra.mxu0 0
    %1209 = vmatprep.subr.bf16.mxu0 0
    %1210 = vmatpush1.bf16.xpose.msra.mxu0 0
    %1211 = vmatprep.subr.bf16.mxu0 0
    %1212 = vmatpush1.bf16.xpose.msra.mxu0 0
    %1213 = vmatprep.subr.bf16.mxu0 0
    %1214 = vmatpush1.bf16.xpose.msra.mxu0 0
    %1215 = vmatprep.subr.bf16.mxu0 0
    %1216 = vmatpush1.bf16.xpose.msra.mxu0 0
    %1217 = vmatprep.subr.bf16.mxu0 0
    %1218 = vmatpush1.bf16.xpose.msra.mxu0 0
    %1219 = vmatprep.subr.bf16.mxu0 0
    %1220 = vmatpush1.bf16.xpose.msra.mxu0 0
    %1221 = vmatprep.subr.bf16.mxu0 0
    %1222 = vmatpush1.bf16.xpose.msra.mxu0 0
    %1223 = vmatprep.subr.bf16.mxu0 0
    %1224 = vmatpush1.bf16.xpose.msra.mxu0 0
    %1225 = vmatprep.mubr.bf16.mxu0 0
    %1226 = vmatmul.mubr.bf16.gmra.mrb[0].mxu0 %v1188
    %v1227 = vpop.f32.mrb[0].mxu0
    %v1228 = vadd.f32 0.0, %v1227
    %v1229 = vpop.f32.mrb[0].mxu0
    %v1230 = vpop.f32.mrb[0].mxu0
    %v1231 = vpop.f32.mrb[0].mxu0
    %1232 = vdwg.mxu0
    %1233 = vrot.lane.b32.xlu0 %v1028, 96
    %v1234 = vpop.permute.xlu0 %1233
    %v1236 = vsel %vm1042, %v1028, 0
    %v1239 = vsel %vm1042, %v1234, 0
    %1241 = vmatprep.subr.bf16.mxu0 0
    %1242 = vmatpush1.bf16.xpose.msra.mxu0 %v1239
    %1243 = vmatprep.subr.bf16.mxu0 0
    %1244 = vmatpush1.bf16.xpose.msra.mxu0 0
    %1245 = vmatprep.subr.bf16.mxu0 0
    %1246 = vmatpush1.bf16.xpose.msra.mxu0 0
    %1247 = vmatprep.subr.bf16.mxu0 0
    %1248 = vmatpush1.bf16.xpose.msra.mxu0 0
    %1249 = vmatprep.subr.bf16.mxu0 0
    %1250 = vmatpush1.bf16.xpose.msra.mxu0 0
    %1251 = vmatprep.subr.bf16.mxu0 0
    %1252 = vmatpush1.bf16.xpose.msra.mxu0 0
    %1253 = vmatprep.subr.bf16.mxu0 0
    %1254 = vmatpush1.bf16.xpose.msra.mxu0 0
    %1255 = vmatprep.subr.bf16.mxu0 0
    %1256 = vmatpush1.bf16.xpose.msra.mxu0 0
    %1257 = vmatprep.subr.bf16.mxu0 0
    %1258 = vmatpush1.bf16.xpose.msra.mxu0 0
    %1259 = vmatprep.subr.bf16.mxu0 0
    %1260 = vmatpush1.bf16.xpose.msra.mxu0 0
    %1261 = vmatprep.subr.bf16.mxu0 0
    %1262 = vmatpush1.bf16.xpose.msra.mxu0 0
    %1263 = vmatprep.subr.bf16.mxu0 0
    %1264 = vmatpush1.bf16.xpose.msra.mxu0 0
    %1265 = vmatprep.subr.bf16.mxu0 0
    %1266 = vmatpush1.bf16.xpose.msra.mxu0 0
    %1267 = vmatprep.subr.bf16.mxu0 0
    %1268 = vmatpush1.bf16.xpose.msra.mxu0 0
    %1269 = vmatprep.subr.bf16.mxu0 0
    %1270 = vmatpush1.bf16.xpose.msra.mxu0 0
    %1271 = vmatprep.subr.bf16.mxu0 0
    %1272 = vmatpush1.bf16.xpose.msra.mxu0 0
    %1273 = vmatprep.mubr.bf16.mxu0 0
    %1274 = vmatmul.mubr.bf16.gmra.mrb[0].mxu0 %v1236
    %v1275 = vpop.f32.mrb[0].mxu0
    %v1276 = vadd.f32 0.0, %v1275
    %v1277 = vpop.f32.mrb[0].mxu0
    %v1278 = vpop.f32.mrb[0].mxu0
    %v1279 = vpop.f32.mrb[0].mxu0
    %1280 = vdwg.mxu0
    %1281 = vrot.lane.b32.xlu0 %v1029, 96
    %v1282 = vpop.permute.xlu0 %1281
    %v1284 = vsel %vm1042, %v1029, 0
    %v1287 = vsel %vm1042, %v1282, 0
    %1289 = vmatprep.subr.bf16.mxu0 0
    %1290 = vmatpush1.bf16.xpose.msra.mxu0 %v1287
    %1291 = vmatprep.subr.bf16.mxu0 0
    %1292 = vmatpush1.bf16.xpose.msra.mxu0 0
    %1293 = vmatprep.subr.bf16.mxu0 0
    %1294 = vmatpush1.bf16.xpose.msra.mxu0 0
    %1295 = vmatprep.subr.bf16.mxu0 0
    %1296 = vmatpush1.bf16.xpose.msra.mxu0 0
    %1297 = vmatprep.subr.bf16.mxu0 0
    %1298 = vmatpush1.bf16.xpose.msra.mxu0 0
    %1299 = vmatprep.subr.bf16.mxu0 0
    %1300 = vmatpush1.bf16.xpose.msra.mxu0 0
    %1301 = vmatprep.subr.bf16.mxu0 0
    %1302 = vmatpush1.bf16.xpose.msra.mxu0 0
    %1303 = vmatprep.subr.bf16.mxu0 0
    %1304 = vmatpush1.bf16.xpose.msra.mxu0 0
    %1305 = vmatprep.subr.bf16.mxu0 0
    %1306 = vmatpush1.bf16.xpose.msra.mxu0 0
    %1307 = vmatprep.subr.bf16.mxu0 0
    %1308 = vmatpush1.bf16.xpose.msra.mxu0 0
    %1309 = vmatprep.subr.bf16.mxu0 0
    %1310 = vmatpush1.bf16.xpose.msra.mxu0 0
    %1311 = vmatprep.subr.bf16.mxu0 0
    %1312 = vmatpush1.bf16.xpose.msra.mxu0 0
    %1313 = vmatprep.subr.bf16.mxu0 0
    %1314 = vmatpush1.bf16.xpose.msra.mxu0 0
    %1315 = vmatprep.subr.bf16.mxu0 0
    %1316 = vmatpush1.bf16.xpose.msra.mxu0 0
    %1317 = vmatprep.subr.bf16.mxu0 0
    %1318 = vmatpush1.bf16.xpose.msra.mxu0 0
    %1319 = vmatprep.subr.bf16.mxu0 0
    %1320 = vmatpush1.bf16.xpose.msra.mxu0 0
    %1321 = vmatprep.mubr.bf16.mxu0 0
    %1322 = vmatmul.mubr.bf16.gmra.mrb[0].mxu0 %v1284
    %v1323 = vpop.f32.mrb[0].mxu0
    %v1324 = vadd.f32 0.0, %v1323
    %v1325 = vpop.f32.mrb[0].mxu0
    %v1326 = vpop.f32.mrb[0].mxu0
    %v1327 = vpop.f32.mrb[0].mxu0
    %1328 = vdwg.mxu0
    %1329 = vrot.lane.b32.xlu0 %v1030, 96
    %v1330 = vpop.permute.xlu0 %1329
    %v1332 = vsel %vm1042, %v1030, 0
    %v1335 = vsel %vm1042, %v1330, 0
    %1337 = vmatprep.subr.bf16.mxu0 0
    %1338 = vmatpush1.bf16.xpose.msra.mxu0 %v1335
    %1339 = vmatprep.subr.bf16.mxu0 0
    %1340 = vmatpush1.bf16.xpose.msra.mxu0 0
    %1341 = vmatprep.subr.bf16.mxu0 0
    %1342 = vmatpush1.bf16.xpose.msra.mxu0 0
    %1343 = vmatprep.subr.bf16.mxu0 0
    %1344 = vmatpush1.bf16.xpose.msra.mxu0 0
    %1345 = vmatprep.subr.bf16.mxu0 0
    %1346 = vmatpush1.bf16.xpose.msra.mxu0 0
    %1347 = vmatprep.subr.bf16.mxu0 0
    %1348 = vmatpush1.bf16.xpose.msra.mxu0 0
    %1349 = vmatprep.subr.bf16.mxu0 0
    %1350 = vmatpush1.bf16.xpose.msra.mxu0 0
    %1351 = vmatprep.subr.bf16.mxu0 0
    %1352 = vmatpush1.bf16.xpose.msra.mxu0 0
    %1353 = vmatprep.subr.bf16.mxu0 0
    %1354 = vmatpush1.bf16.xpose.msra.mxu0 0
    %1355 = vmatprep.subr.bf16.mxu0 0
    %1356 = vmatpush1.bf16.xpose.msra.mxu0 0
    %1357 = vmatprep.subr.bf16.mxu0 0
    %1358 = vmatpush1.bf16.xpose.msra.mxu0 0
    %1359 = vmatprep.subr.bf16.mxu0 0
    %1360 = vmatpush1.bf16.xpose.msra.mxu0 0
    %1361 = vmatprep.subr.bf16.mxu0 0
    %1362 = vmatpush1.bf16.xpose.msra.mxu0 0
    %1363 = vmatprep.subr.bf16.mxu0 0
    %1364 = vmatpush1.bf16.xpose.msra.mxu0 0
    %1365 = vmatprep.subr.bf16.mxu0 0
    %1366 = vmatpush1.bf16.xpose.msra.mxu0 0
    %1367 = vmatprep.subr.bf16.mxu0 0
    %1368 = vmatpush1.bf16.xpose.msra.mxu0 0
    %1369 = vmatprep.mubr.bf16.mxu0 0
    %1370 = vmatmul.mubr.bf16.gmra.mrb[0].mxu0 %v1332
    %v1371 = vpop.f32.mrb[0].mxu0
    %v1372 = vadd.f32 0.0, %v1371
    %v1373 = vpop.f32.mrb[0].mxu0
    %v1374 = vpop.f32.mrb[0].mxu0
    %v1375 = vpop.f32.mrb[0].mxu0
    %1376 = vdwg.mxu0
    %1377 = vrot.lane.b32.xlu0 %v1031, 96
    %v1378 = vpop.permute.xlu0 %1377
    %v1380 = vsel %vm1042, %v1031, 0
    %v1383 = vsel %vm1042, %v1378, 0
    %1385 = vmatprep.subr.bf16.mxu0 0
    %1386 = vmatpush1.bf16.xpose.msra.mxu0 %v1383
    %1387 = vmatprep.subr.bf16.mxu0 0
    %1388 = vmatpush1.bf16.xpose.msra.mxu0 0
    %1389 = vmatprep.subr.bf16.mxu0 0
    %1390 = vmatpush1.bf16.xpose.msra.mxu0 0
    %1391 = vmatprep.subr.bf16.mxu0 0
    %1392 = vmatpush1.bf16.xpose.msra.mxu0 0
    %1393 = vmatprep.subr.bf16.mxu0 0
    %1394 = vmatpush1.bf16.xpose.msra.mxu0 0
    %1395 = vmatprep.subr.bf16.mxu0 0
    %1396 = vmatpush1.bf16.xpose.msra.mxu0 0
    %1397 = vmatprep.subr.bf16.mxu0 0
    %1398 = vmatpush1.bf16.xpose.msra.mxu0 0
    %1399 = vmatprep.subr.bf16.mxu0 0
    %1400 = vmatpush1.bf16.xpose.msra.mxu0 0
    %1401 = vmatprep.subr.bf16.mxu0 0
    %1402 = vmatpush1.bf16.xpose.msra.mxu0 0
    %1403 = vmatprep.subr.bf16.mxu0 0
    %1404 = vmatpush1.bf16.xpose.msra.mxu0 0
    %1405 = vmatprep.subr.bf16.mxu0 0
    %1406 = vmatpush1.bf16.xpose.msra.mxu0 0
    %1407 = vmatprep.subr.bf16.mxu0 0
    %1408 = vmatpush1.bf16.xpose.msra.mxu0 0
    %1409 = vmatprep.subr.bf16.mxu0 0
    %1410 = vmatpush1.bf16.xpose.msra.mxu0 0
    %1411 = vmatprep.subr.bf16.mxu0 0
    %1412 = vmatpush1.bf16.xpose.msra.mxu0 0
    %1413 = vmatprep.subr.bf16.mxu0 0
    %1414 = vmatpush1.bf16.xpose.msra.mxu0 0
    %1415 = vmatprep.subr.bf16.mxu0 0
    %1416 = vmatpush1.bf16.xpose.msra.mxu0 0
    %1417 = vmatprep.mubr.bf16.mxu0 0
    %1418 = vmatmul.mubr.bf16.gmra.mrb[0].mxu0 %v1380
    %v1419 = vpop.f32.mrb[0].mxu0
    %v1420 = vadd.f32 0.0, %v1419
    %v1421 = vpop.f32.mrb[0].mxu0
    %v1422 = vpop.f32.mrb[0].mxu0
    %v1423 = vpop.f32.mrb[0].mxu0
    %1424 = vdwg.mxu0
    %1425 = vrot.lane.b32.xlu0 %v1032, 96
    %v1426 = vpop.permute.xlu0 %1425
    %v1428 = vsel %vm1042, %v1032, 0
    %v1431 = vsel %vm1042, %v1426, 0
    %1433 = vmatprep.subr.bf16.mxu0 0
    %1434 = vmatpush1.bf16.xpose.msra.mxu0 %v1431
    %1435 = vmatprep.subr.bf16.mxu0 0
    %1436 = vmatpush1.bf16.xpose.msra.mxu0 0
    %1437 = vmatprep.subr.bf16.mxu0 0
    %1438 = vmatpush1.bf16.xpose.msra.mxu0 0
    %1439 = vmatprep.subr.bf16.mxu0 0
    %1440 = vmatpush1.bf16.xpose.msra.mxu0 0
    %1441 = vmatprep.subr.bf16.mxu0 0
    %1442 = vmatpush1.bf16.xpose.msra.mxu0 0
    %1443 = vmatprep.subr.bf16.mxu0 0
    %1444 = vmatpush1.bf16.xpose.msra.mxu0 0
    %1445 = vmatprep.subr.bf16.mxu0 0
    %1446 = vmatpush1.bf16.xpose.msra.mxu0 0
    %1447 = vmatprep.subr.bf16.mxu0 0
    %1448 = vmatpush1.bf16.xpose.msra.mxu0 0
    %1449 = vmatprep.subr.bf16.mxu0 0
    %1450 = vmatpush1.bf16.xpose.msra.mxu0 0
    %1451 = vmatprep.subr.bf16.mxu0 0
    %1452 = vmatpush1.bf16.xpose.msra.mxu0 0
    %1453 = vmatprep.subr.bf16.mxu0 0
    %1454 = vmatpush1.bf16.xpose.msra.mxu0 0
    %1455 = vmatprep.subr.bf16.mxu0 0
    %1456 = vmatpush1.bf16.xpose.msra.mxu0 0
    %1457 = vmatprep.subr.bf16.mxu0 0
    %1458 = vmatpush1.bf16.xpose.msra.mxu0 0
    %1459 = vmatprep.subr.bf16.mxu0 0
    %1460 = vmatpush1.bf16.xpose.msra.mxu0 0
    %1461 = vmatprep.subr.bf16.mxu0 0
    %1462 = vmatpush1.bf16.xpose.msra.mxu0 0
    %1463 = vmatprep.subr.bf16.mxu0 0
    %1464 = vmatpush1.bf16.xpose.msra.mxu0 0
    %1465 = vmatprep.mubr.bf16.mxu0 0
    %1466 = vmatmul.mubr.bf16.gmra.mrb[0].mxu0 %v1428
    %v1467 = vpop.f32.mrb[0].mxu0
    %v1468 = vadd.f32 0.0, %v1467
    %v1469 = vpop.f32.mrb[0].mxu0
    %v1470 = vpop.f32.mrb[0].mxu0
    %v1471 = vpop.f32.mrb[0].mxu0
    %1472 = vdwg.mxu0
    %1473 = vrot.lane.b32.xlu0 %v1033, 96
    %v1474 = vpop.permute.xlu0 %1473
    %v1476 = vsel %vm1042, %v1033, 0
    %v1479 = vsel %vm1042, %v1474, 0
    %1481 = vmatprep.subr.bf16.mxu0 0
    %1482 = vmatpush1.bf16.xpose.msra.mxu0 %v1479
    %1483 = vmatprep.subr.bf16.mxu0 0
    %1484 = vmatpush1.bf16.xpose.msra.mxu0 0
    %1485 = vmatprep.subr.bf16.mxu0 0
    %1486 = vmatpush1.bf16.xpose.msra.mxu0 0
    %1487 = vmatprep.subr.bf16.mxu0 0
    %1488 = vmatpush1.bf16.xpose.msra.mxu0 0
    %1489 = vmatprep.subr.bf16.mxu0 0
    %1490 = vmatpush1.bf16.xpose.msra.mxu0 0
    %1491 = vmatprep.subr.bf16.mxu0 0
    %1492 = vmatpush1.bf16.xpose.msra.mxu0 0
    %1493 = vmatprep.subr.bf16.mxu0 0
    %1494 = vmatpush1.bf16.xpose.msra.mxu0 0
    %1495 = vmatprep.subr.bf16.mxu0 0
    %1496 = vmatpush1.bf16.xpose.msra.mxu0 0
    %1497 = vmatprep.subr.bf16.mxu0 0
    %1498 = vmatpush1.bf16.xpose.msra.mxu0 0
    %1499 = vmatprep.subr.bf16.mxu0 0
    %1500 = vmatpush1.bf16.xpose.msra.mxu0 0
    %1501 = vmatprep.subr.bf16.mxu0 0
    %1502 = vmatpush1.bf16.xpose.msra.mxu0 0
    %1503 = vmatprep.subr.bf16.mxu0 0
    %1504 = vmatpush1.bf16.xpose.msra.mxu0 0
    %1505 = vmatprep.subr.bf16.mxu0 0
    %1506 = vmatpush1.bf16.xpose.msra.mxu0 0
    %1507 = vmatprep.subr.bf16.mxu0 0
    %1508 = vmatpush1.bf16.xpose.msra.mxu0 0
    %1509 = vmatprep.subr.bf16.mxu0 0
    %1510 = vmatpush1.bf16.xpose.msra.mxu0 0
    %1511 = vmatprep.subr.bf16.mxu0 0
    %1512 = vmatpush1.bf16.xpose.msra.mxu0 0
    %1513 = vmatprep.mubr.bf16.mxu0 0
    %1514 = vmatmul.mubr.bf16.gmra.mrb[0].mxu0 %v1476
    %v1515 = vpop.f32.mrb[0].mxu0
    %v1516 = vadd.f32 0.0, %v1515
    %v1517 = vpop.f32.mrb[0].mxu0
    %v1518 = vpop.f32.mrb[0].mxu0
    %v1519 = vpop.f32.mrb[0].mxu0
    %1520 = vdwg.mxu0
    %1521 = vrot.lane.b32.xlu0 %v1034, 96
    %v1522 = vpop.permute.xlu0 %1521
    %v1524 = vsel %vm1042, %v1034, 0
    %v1527 = vsel %vm1042, %v1522, 0
    %1529 = vmatprep.subr.bf16.mxu0 0
    %1530 = vmatpush1.bf16.xpose.msra.mxu0 %v1527
    %1531 = vmatprep.subr.bf16.mxu0 0
    %1532 = vmatpush1.bf16.xpose.msra.mxu0 0
    %1533 = vmatprep.subr.bf16.mxu0 0
    %1534 = vmatpush1.bf16.xpose.msra.mxu0 0
    %1535 = vmatprep.subr.bf16.mxu0 0
    %1536 = vmatpush1.bf16.xpose.msra.mxu0 0
    %1537 = vmatprep.subr.bf16.mxu0 0
    %1538 = vmatpush1.bf16.xpose.msra.mxu0 0
    %1539 = vmatprep.subr.bf16.mxu0 0
    %1540 = vmatpush1.bf16.xpose.msra.mxu0 0
    %1541 = vmatprep.subr.bf16.mxu0 0
    %1542 = vmatpush1.bf16.xpose.msra.mxu0 0
    %1543 = vmatprep.subr.bf16.mxu0 0
    %1544 = vmatpush1.bf16.xpose.msra.mxu0 0
    %1545 = vmatprep.subr.bf16.mxu0 0
    %1546 = vmatpush1.bf16.xpose.msra.mxu0 0
    %1547 = vmatprep.subr.bf16.mxu0 0
    %1548 = vmatpush1.bf16.xpose.msra.mxu0 0
    %1549 = vmatprep.subr.bf16.mxu0 0
    %1550 = vmatpush1.bf16.xpose.msra.mxu0 0
    %1551 = vmatprep.subr.bf16.mxu0 0
    %1552 = vmatpush1.bf16.xpose.msra.mxu0 0
    %1553 = vmatprep.subr.bf16.mxu0 0
    %1554 = vmatpush1.bf16.xpose.msra.mxu0 0
    %1555 = vmatprep.subr.bf16.mxu0 0
    %1556 = vmatpush1.bf16.xpose.msra.mxu0 0
    %1557 = vmatprep.subr.bf16.mxu0 0
    %1558 = vmatpush1.bf16.xpose.msra.mxu0 0
    %1559 = vmatprep.subr.bf16.mxu0 0
    %1560 = vmatpush1.bf16.xpose.msra.mxu0 0
    %1561 = vmatprep.mubr.bf16.mxu0 0
    %1562 = vmatmul.mubr.bf16.gmra.mrb[0].mxu0 %v1524
    %v1563 = vpop.f32.mrb[0].mxu0
    %v1564 = vadd.f32 0.0, %v1563
    %v1565 = vpop.f32.mrb[0].mxu0
    %v1566 = vpop.f32.mrb[0].mxu0
    %v1567 = vpop.f32.mrb[0].mxu0
    %1568 = vdwg.mxu0
    %1569 = vrot.lane.b32.xlu0 %v1035, 96
    %v1570 = vpop.permute.xlu0 %1569
    %v1572 = vsel %vm1042, %v1035, 0
    %v1575 = vsel %vm1042, %v1570, 0
    %1577 = vmatprep.subr.bf16.mxu0 0
    %1578 = vmatpush1.bf16.xpose.msra.mxu0 %v1575
    %1579 = vmatprep.subr.bf16.mxu0 0
    %1580 = vmatpush1.bf16.xpose.msra.mxu0 0
    %1581 = vmatprep.subr.bf16.mxu0 0
    %1582 = vmatpush1.bf16.xpose.msra.mxu0 0
    %1583 = vmatprep.subr.bf16.mxu0 0
    %1584 = vmatpush1.bf16.xpose.msra.mxu0 0
    %1585 = vmatprep.subr.bf16.mxu0 0
    %1586 = vmatpush1.bf16.xpose.msra.mxu0 0
    %1587 = vmatprep.subr.bf16.mxu0 0
    %1588 = vmatpush1.bf16.xpose.msra.mxu0 0
    %1589 = vmatprep.subr.bf16.mxu0 0
    %1590 = vmatpush1.bf16.xpose.msra.mxu0 0
    %1591 = vmatprep.subr.bf16.mxu0 0
    %1592 = vmatpush1.bf16.xpose.msra.mxu0 0
    %1593 = vmatprep.subr.bf16.mxu0 0
    %1594 = vmatpush1.bf16.xpose.msra.mxu0 0
    %1595 = vmatprep.subr.bf16.mxu0 0
    %1596 = vmatpush1.bf16.xpose.msra.mxu0 0
    %1597 = vmatprep.subr.bf16.mxu0 0
    %1598 = vmatpush1.bf16.xpose.msra.mxu0 0
    %1599 = vmatprep.subr.bf16.mxu0 0
    %1600 = vmatpush1.bf16.xpose.msra.mxu0 0
    %1601 = vmatprep.subr.bf16.mxu0 0
    %1602 = vmatpush1.bf16.xpose.msra.mxu0 0
    %1603 = vmatprep.subr.bf16.mxu0 0
    %1604 = vmatpush1.bf16.xpose.msra.mxu0 0
    %1605 = vmatprep.subr.bf16.mxu0 0
    %1606 = vmatpush1.bf16.xpose.msra.mxu0 0
    %1607 = vmatprep.subr.bf16.mxu0 0
    %1608 = vmatpush1.bf16.xpose.msra.mxu0 0
    %1609 = vmatprep.mubr.bf16.mxu0 0
    %1610 = vmatmul.mubr.bf16.gmra.mrb[0].mxu0 %v1572
    %v1611 = vpop.f32.mrb[0].mxu0
    %v1612 = vadd.f32 0.0, %v1611
    %v1613 = vpop.f32.mrb[0].mxu0
    %v1614 = vpop.f32.mrb[0].mxu0
    %v1615 = vpop.f32.mrb[0].mxu0
    %1616 = vdwg.mxu0
    %1617 = vrot.lane.b32.xlu0 %v1036, 96
    %v1618 = vpop.permute.xlu0 %1617
    %v1620 = vsel %vm1042, %v1036, 0
    %v1623 = vsel %vm1042, %v1618, 0
    %1625 = vmatprep.subr.bf16.mxu0 0
    %1626 = vmatpush1.bf16.xpose.msra.mxu0 %v1623
    %1627 = vmatprep.subr.bf16.mxu0 0
    %1628 = vmatpush1.bf16.xpose.msra.mxu0 0
    %1629 = vmatprep.subr.bf16.mxu0 0
    %1630 = vmatpush1.bf16.xpose.msra.mxu0 0
    %1631 = vmatprep.subr.bf16.mxu0 0
    %1632 = vmatpush1.bf16.xpose.msra.mxu0 0
    %1633 = vmatprep.subr.bf16.mxu0 0
    %1634 = vmatpush1.bf16.xpose.msra.mxu0 0
    %1635 = vmatprep.subr.bf16.mxu0 0
    %1636 = vmatpush1.bf16.xpose.msra.mxu0 0
    %1637 = vmatprep.subr.bf16.mxu0 0
    %1638 = vmatpush1.bf16.xpose.msra.mxu0 0
    %1639 = vmatprep.subr.bf16.mxu0 0
    %1640 = vmatpush1.bf16.xpose.msra.mxu0 0
    %1641 = vmatprep.subr.bf16.mxu0 0
    %1642 = vmatpush1.bf16.xpose.msra.mxu0 0
    %1643 = vmatprep.subr.bf16.mxu0 0
    %1644 = vmatpush1.bf16.xpose.msra.mxu0 0
    %1645 = vmatprep.subr.bf16.mxu0 0
    %1646 = vmatpush1.bf16.xpose.msra.mxu0 0
    %1647 = vmatprep.subr.bf16.mxu0 0
    %1648 = vmatpush1.bf16.xpose.msra.mxu0 0
    %1649 = vmatprep.subr.bf16.mxu0 0
    %1650 = vmatpush1.bf16.xpose.msra.mxu0 0
    %1651 = vmatprep.subr.bf16.mxu0 0
    %1652 = vmatpush1.bf16.xpose.msra.mxu0 0
    %1653 = vmatprep.subr.bf16.mxu0 0
    %1654 = vmatpush1.bf16.xpose.msra.mxu0 0
    %1655 = vmatprep.subr.bf16.mxu0 0
    %1656 = vmatpush1.bf16.xpose.msra.mxu0 0
    %1657 = vmatprep.mubr.bf16.mxu0 0
    %1658 = vmatmul.mubr.bf16.gmra.mrb[0].mxu0 %v1620
    %v1659 = vpop.f32.mrb[0].mxu0
    %v1660 = vadd.f32 0.0, %v1659
    %v1661 = vpop.f32.mrb[0].mxu0
    %v1662 = vpop.f32.mrb[0].mxu0
    %v1663 = vpop.f32.mrb[0].mxu0
    %1664 = vdwg.mxu0
    %1665 = vrot.lane.b32.xlu0 %v1037, 96
    %v1666 = vpop.permute.xlu0 %1665
    %v1668 = vsel %vm1042, %v1037, 0
    %v1671 = vsel %vm1042, %v1666, 0
    %1673 = vmatprep.subr.bf16.mxu0 0
    %1674 = vmatpush1.bf16.xpose.msra.mxu0 %v1671
    %1675 = vmatprep.subr.bf16.mxu0 0
    %1676 = vmatpush1.bf16.xpose.msra.mxu0 0
    %1677 = vmatprep.subr.bf16.mxu0 0
    %1678 = vmatpush1.bf16.xpose.msra.mxu0 0
    %1679 = vmatprep.subr.bf16.mxu0 0
    %1680 = vmatpush1.bf16.xpose.msra.mxu0 0
    %1681 = vmatprep.subr.bf16.mxu0 0
    %1682 = vmatpush1.bf16.xpose.msra.mxu0 0
    %1683 = vmatprep.subr.bf16.mxu0 0
    %1684 = vmatpush1.bf16.xpose.msra.mxu0 0
    %1685 = vmatprep.subr.bf16.mxu0 0
    %1686 = vmatpush1.bf16.xpose.msra.mxu0 0
    %1687 = vmatprep.subr.bf16.mxu0 0
    %1688 = vmatpush1.bf16.xpose.msra.mxu0 0
    %1689 = vmatprep.subr.bf16.mxu0 0
    %1690 = vmatpush1.bf16.xpose.msra.mxu0 0
    %1691 = vmatprep.subr.bf16.mxu0 0
    %1692 = vmatpush1.bf16.xpose.msra.mxu0 0
    %1693 = vmatprep.subr.bf16.mxu0 0
    %1694 = vmatpush1.bf16.xpose.msra.mxu0 0
    %1695 = vmatprep.subr.bf16.mxu0 0
    %1696 = vmatpush1.bf16.xpose.msra.mxu0 0
    %1697 = vmatprep.subr.bf16.mxu0 0
    %1698 = vmatpush1.bf16.xpose.msra.mxu0 0
    %1699 = vmatprep.subr.bf16.mxu0 0
    %1700 = vmatpush1.bf16.xpose.msra.mxu0 0
    %1701 = vmatprep.subr.bf16.mxu0 0
    %1702 = vmatpush1.bf16.xpose.msra.mxu0 0
    %1703 = vmatprep.subr.bf16.mxu0 0
    %1704 = vmatpush1.bf16.xpose.msra.mxu0 0
    %1705 = vmatprep.mubr.bf16.mxu0 0
    %1706 = vmatmul.mubr.bf16.gmra.mrb[0].mxu0 %v1668
    %v1707 = vpop.f32.mrb[0].mxu0
    %v1708 = vadd.f32 0.0, %v1707
    %v1709 = vpop.f32.mrb[0].mxu0
    %v1710 = vpop.f32.mrb[0].mxu0
    %v1711 = vpop.f32.mrb[0].mxu0
    %1712 = vdwg.mxu0
    %1713 = vrot.lane.b32.xlu0 %v1038, 96
    %v1714 = vpop.permute.xlu0 %1713
    %v1716 = vsel %vm1042, %v1038, 0
    %v1719 = vsel %vm1042, %v1714, 0
    %1721 = vmatprep.subr.bf16.mxu0 0
    %1722 = vmatpush1.bf16.xpose.msra.mxu0 %v1719
    %1723 = vmatprep.subr.bf16.mxu0 0
    %1724 = vmatpush1.bf16.xpose.msra.mxu0 0
    %1725 = vmatprep.subr.bf16.mxu0 0
    %1726 = vmatpush1.bf16.xpose.msra.mxu0 0
    %1727 = vmatprep.subr.bf16.mxu0 0
    %1728 = vmatpush1.bf16.xpose.msra.mxu0 0
    %1729 = vmatprep.subr.bf16.mxu0 0
    %1730 = vmatpush1.bf16.xpose.msra.mxu0 0
    %1731 = vmatprep.subr.bf16.mxu0 0
    %1732 = vmatpush1.bf16.xpose.msra.mxu0 0
    %1733 = vmatprep.subr.bf16.mxu0 0
    %1734 = vmatpush1.bf16.xpose.msra.mxu0 0
    %1735 = vmatprep.subr.bf16.mxu0 0
    %1736 = vmatpush1.bf16.xpose.msra.mxu0 0
    %1737 = vmatprep.subr.bf16.mxu0 0
    %1738 = vmatpush1.bf16.xpose.msra.mxu0 0
    %1739 = vmatprep.subr.bf16.mxu0 0
    %1740 = vmatpush1.bf16.xpose.msra.mxu0 0
    %1741 = vmatprep.subr.bf16.mxu0 0
    %1742 = vmatpush1.bf16.xpose.msra.mxu0 0
    %1743 = vmatprep.subr.bf16.mxu0 0
    %1744 = vmatpush1.bf16.xpose.msra.mxu0 0
    %1745 = vmatprep.subr.bf16.mxu0 0
    %1746 = vmatpush1.bf16.xpose.msra.mxu0 0
    %1747 = vmatprep.subr.bf16.mxu0 0
    %1748 = vmatpush1.bf16.xpose.msra.mxu0 0
    %1749 = vmatprep.subr.bf16.mxu0 0
    %1750 = vmatpush1.bf16.xpose.msra.mxu0 0
    %1751 = vmatprep.subr.bf16.mxu0 0
    %1752 = vmatpush1.bf16.xpose.msra.mxu0 0
    %1753 = vmatprep.mubr.bf16.mxu0 0
    %1754 = vmatmul.mubr.bf16.gmra.mrb[0].mxu0 %v1716
    %v1755 = vpop.f32.mrb[0].mxu0
    %v1756 = vadd.f32 0.0, %v1755
    %v1757 = vpop.f32.mrb[0].mxu0
    %v1758 = vpop.f32.mrb[0].mxu0
    %v1759 = vpop.f32.mrb[0].mxu0
    %1760 = vdwg.mxu0
    %1761 = vrot.lane.b32.xlu0 %v1039, 96
    %v1762 = vpop.permute.xlu0 %1761
    %v1764 = vsel %vm1042, %v1039, 0
    %v1767 = vsel %vm1042, %v1762, 0
    %1769 = vmatprep.subr.bf16.mxu0 0
    %1770 = vmatpush1.bf16.xpose.msra.mxu0 %v1767
    %1771 = vmatprep.subr.bf16.mxu0 0
    %1772 = vmatpush1.bf16.xpose.msra.mxu0 0
    %1773 = vmatprep.subr.bf16.mxu0 0
    %1774 = vmatpush1.bf16.xpose.msra.mxu0 0
    %1775 = vmatprep.subr.bf16.mxu0 0
    %1776 = vmatpush1.bf16.xpose.msra.mxu0 0
    %1777 = vmatprep.subr.bf16.mxu0 0
    %1778 = vmatpush1.bf16.xpose.msra.mxu0 0
    %1779 = vmatprep.subr.bf16.mxu0 0
    %1780 = vmatpush1.bf16.xpose.msra.mxu0 0
    %1781 = vmatprep.subr.bf16.mxu0 0
    %1782 = vmatpush1.bf16.xpose.msra.mxu0 0
    %1783 = vmatprep.subr.bf16.mxu0 0
    %1784 = vmatpush1.bf16.xpose.msra.mxu0 0
    %1785 = vmatprep.subr.bf16.mxu0 0
    %1786 = vmatpush1.bf16.xpose.msra.mxu0 0
    %1787 = vmatprep.subr.bf16.mxu0 0
    %1788 = vmatpush1.bf16.xpose.msra.mxu0 0
    %1789 = vmatprep.subr.bf16.mxu0 0
    %1790 = vmatpush1.bf16.xpose.msra.mxu0 0
    %1791 = vmatprep.subr.bf16.mxu0 0
    %1792 = vmatpush1.bf16.xpose.msra.mxu0 0
    %1793 = vmatprep.subr.bf16.mxu0 0
    %1794 = vmatpush1.bf16.xpose.msra.mxu0 0
    %1795 = vmatprep.subr.bf16.mxu0 0
    %1796 = vmatpush1.bf16.xpose.msra.mxu0 0
    %1797 = vmatprep.subr.bf16.mxu0 0
    %1798 = vmatpush1.bf16.xpose.msra.mxu0 0
    %1799 = vmatprep.subr.bf16.mxu0 0
    %1800 = vmatpush1.bf16.xpose.msra.mxu0 0
    %1801 = vmatprep.mubr.bf16.mxu0 0
    %1802 = vmatmul.mubr.bf16.gmra.mrb[0].mxu0 %v1764
    %v1803 = vpop.f32.mrb[0].mxu0
    %v1804 = vadd.f32 0.0, %v1803
    %v1805 = vpop.f32.mrb[0].mxu0
    %v1806 = vpop.f32.mrb[0].mxu0
    %v1807 = vpop.f32.mrb[0].mxu0
    %1808 = vdwg.mxu0
    %vm1809 = vcmask 64512
    %v1810 = vsel %vm1809, %v1084, -inf
    %1811 = vmax.xlane.f32.xlu0 %v1810
    %v1812 = vpop.xlane.xlu0 %1811
    %v1813 = vsel %vm1809, %v1132, -inf
    %1814 = vmax.xlane.f32.xlu0 %v1813
    %v1815 = vpop.xlane.xlu0 %1814
    %v1816 = vsel %vm1809, %v1180, -inf
    %1817 = vmax.xlane.f32.xlu0 %v1816
    %v1818 = vpop.xlane.xlu0 %1817
    %v1819 = vsel %vm1809, %v1228, -inf
    %1820 = vmax.xlane.f32.xlu0 %v1819
    %v1821 = vpop.xlane.xlu0 %1820
    %v1822 = vsel %vm1809, %v1276, -inf
    %1823 = vmax.xlane.f32.xlu0 %v1822
    %v1824 = vpop.xlane.xlu0 %1823
    %v1825 = vsel %vm1809, %v1324, -inf
    %1826 = vmax.xlane.f32.xlu0 %v1825
    %v1827 = vpop.xlane.xlu0 %1826
    %v1828 = vsel %vm1809, %v1372, -inf
    %1829 = vmax.xlane.f32.xlu0 %v1828
    %v1830 = vpop.xlane.xlu0 %1829
    %v1831 = vsel %vm1809, %v1420, -inf
    %1832 = vmax.xlane.f32.xlu0 %v1831
    %v1833 = vpop.xlane.xlu0 %1832
    %v1834 = vsel %vm1809, %v1468, -inf
    %1835 = vmax.xlane.f32.xlu0 %v1834
    %v1836 = vpop.xlane.xlu0 %1835
    %v1837 = vsel %vm1809, %v1516, -inf
    %1838 = vmax.xlane.f32.xlu0 %v1837
    %v1839 = vpop.xlane.xlu0 %1838
    %v1840 = vsel %vm1809, %v1564, -inf
    %1841 = vmax.xlane.f32.xlu0 %v1840
    %v1842 = vpop.xlane.xlu0 %1841
    %v1843 = vsel %vm1809, %v1612, -inf
    %1844 = vmax.xlane.f32.xlu0 %v1843
    %v1845 = vpop.xlane.xlu0 %1844
    %v1846 = vsel %vm1809, %v1660, -inf
    %1847 = vmax.xlane.f32.xlu0 %v1846
    %v1848 = vpop.xlane.xlu0 %1847
    %v1849 = vsel %vm1809, %v1708, -inf
    %1850 = vmax.xlane.f32.xlu0 %v1849
    %v1851 = vpop.xlane.xlu0 %1850
    %v1852 = vsel %vm1809, %v1756, -inf
    %1853 = vmax.xlane.f32.xlu0 %v1852
    %v1854 = vpop.xlane.xlu0 %1853
    %v1855 = vsel %vm1809, %v1804, -inf
    %1856 = vmax.xlane.f32.xlu0 %v1855
    %v1857 = vpop.xlane.xlu0 %1856
    %v1858 = vsub.f32 %v1084, %v1812
    %v1859 = vsub.f32 %v1132, %v1815
    %v1860 = vsub.f32 %v1180, %v1818
    %v1861 = vsub.f32 %v1228, %v1821
    %v1862 = vsub.f32 %v1276, %v1824
    %v1863 = vsub.f32 %v1324, %v1827
    %v1864 = vsub.f32 %v1372, %v1830
    %v1865 = vsub.f32 %v1420, %v1833
    %v1866 = vsub.f32 %v1468, %v1836
    %v1867 = vsub.f32 %v1516, %v1839
    %v1868 = vsub.f32 %v1564, %v1842
    %v1869 = vsub.f32 %v1612, %v1845
    %v1870 = vsub.f32 %v1660, %v1848
    %v1871 = vsub.f32 %v1708, %v1851
    %v1872 = vsub.f32 %v1756, %v1854
    %v1873 = vsub.f32 %v1804, %v1857
    %v1874 = vmul.f32 %v1858, 1.442695
    %v1875 = vpow.pop %v1874
    %v1876 = vmul.f32 %v1859, 1.442695
    %v1877 = vpow.pop %v1876
    %v1878 = vmul.f32 %v1860, 1.442695
    %v1879 = vpow.pop %v1878
    %v1880 = vmul.f32 %v1861, 1.442695
    %v1881 = vpow.pop %v1880
    %v1882 = vmul.f32 %v1862, 1.442695
    %v1883 = vpow.pop %v1882
    %v1884 = vmul.f32 %v1863, 1.442695
    %v1885 = vpow.pop %v1884
    %v1886 = vmul.f32 %v1864, 1.442695
    %v1887 = vpow.pop %v1886
    %v1888 = vmul.f32 %v1865, 1.442695
    %v1889 = vpow.pop %v1888
    %v1890 = vmul.f32 %v1866, 1.442695
    %v1891 = vpow.pop %v1890
    %v1892 = vmul.f32 %v1867, 1.442695
    %v1893 = vpow.pop %v1892
    %v1894 = vmul.f32 %v1868, 1.442695
    %v1895 = vpow.pop %v1894
    %v1896 = vmul.f32 %v1869, 1.442695
    %v1897 = vpow.pop %v1896
    %v1898 = vmul.f32 %v1870, 1.442695
    %v1899 = vpow.pop %v1898
    %v1900 = vmul.f32 %v1871, 1.442695
    %v1901 = vpow.pop %v1900
    %v1902 = vmul.f32 %v1872, 1.442695
    %v1903 = vpow.pop %v1902
    %v1904 = vmul.f32 %v1873, 1.442695
    %v1905 = vpow.pop %v1904
    %v1906 = vsel %vm1809, %v1875, 0.0
    %1907 = vadd.xlane.f32.xlu0 %v1906
    %v1908 = vpop.xlane.xlu0 %1907
    %v1909 = vsel %vm1809, %v1877, 0.0
    %1910 = vadd.xlane.f32.xlu0 %v1909
    %v1911 = vpop.xlane.xlu0 %1910
    %v1912 = vsel %vm1809, %v1879, 0.0
    %1913 = vadd.xlane.f32.xlu0 %v1912
    %v1914 = vpop.xlane.xlu0 %1913
    %v1915 = vsel %vm1809, %v1881, 0.0
    %1916 = vadd.xlane.f32.xlu0 %v1915
    %v1917 = vpop.xlane.xlu0 %1916
    %v1918 = vsel %vm1809, %v1883, 0.0
    %1919 = vadd.xlane.f32.xlu0 %v1918
    %v1920 = vpop.xlane.xlu0 %1919
    %v1921 = vsel %vm1809, %v1885, 0.0
    %1922 = vadd.xlane.f32.xlu0 %v1921
    %v1923 = vpop.xlane.xlu0 %1922
    %v1924 = vsel %vm1809, %v1887, 0.0
    %1925 = vadd.xlane.f32.xlu0 %v1924
    %v1926 = vpop.xlane.xlu0 %1925
    %v1927 = vsel %vm1809, %v1889, 0.0
    %1928 = vadd.xlane.f32.xlu0 %v1927
    %v1929 = vpop.xlane.xlu0 %1928
    %v1930 = vsel %vm1809, %v1891, 0.0
    %1931 = vadd.xlane.f32.xlu0 %v1930
    %v1932 = vpop.xlane.xlu0 %1931
    %v1933 = vsel %vm1809, %v1893, 0.0
    %1934 = vadd.xlane.f32.xlu0 %v1933
    %v1935 = vpop.xlane.xlu0 %1934
    %v1936 = vsel %vm1809, %v1895, 0.0
    %1937 = vadd.xlane.f32.xlu0 %v1936
    %v1938 = vpop.xlane.xlu0 %1937
    %v1939 = vsel %vm1809, %v1897, 0.0
    %1940 = vadd.xlane.f32.xlu0 %v1939
    %v1941 = vpop.xlane.xlu0 %1940
    %v1942 = vsel %vm1809, %v1899, 0.0
    %1943 = vadd.xlane.f32.xlu0 %v1942
    %v1944 = vpop.xlane.xlu0 %1943
    %v1945 = vsel %vm1809, %v1901, 0.0
    %1946 = vadd.xlane.f32.xlu0 %v1945
    %v1947 = vpop.xlane.xlu0 %1946
    %v1948 = vsel %vm1809, %v1903, 0.0
    %1949 = vadd.xlane.f32.xlu0 %v1948
    %v1950 = vpop.xlane.xlu0 %1949
    %v1951 = vsel %vm1809, %v1905, 0.0
    %1952 = vadd.xlane.f32.xlu0 %v1951
    %v1953 = vpop.xlane.xlu0 %1952
    %v1954 = vrcp.pop %v1908
    %v1955 = vrcp.pop %v1911
    %v1956 = vrcp.pop %v1914
    %v1957 = vrcp.pop %v1917
    %v1958 = vrcp.pop %v1920
    %v1959 = vrcp.pop %v1923
    %v1960 = vrcp.pop %v1926
    %v1961 = vrcp.pop %v1929
    %v1962 = vrcp.pop %v1932
    %v1963 = vrcp.pop %v1935
    %v1964 = vrcp.pop %v1938
    %v1965 = vrcp.pop %v1941
    %v1966 = vrcp.pop %v1944
    %v1967 = vrcp.pop %v1947
    %v1968 = vrcp.pop %v1950
    %v1969 = vrcp.pop %v1953
    %v1970 = vmul.f32 %v1875, %v1954
    %v1971 = vmul.f32 %v1877, %v1955
    %v1972 = vmul.f32 %v1879, %v1956
    %v1973 = vmul.f32 %v1881, %v1957
    %v1974 = vmul.f32 %v1883, %v1958
    %v1975 = vmul.f32 %v1885, %v1959
    %v1976 = vmul.f32 %v1887, %v1960
    %v1977 = vmul.f32 %v1889, %v1961
    %v1978 = vmul.f32 %v1891, %v1962
    %v1979 = vmul.f32 %v1893, %v1963
    %v1980 = vmul.f32 %v1895, %v1964
    %v1981 = vmul.f32 %v1897, %v1965
    %v1982 = vmul.f32 %v1899, %v1966
    %v1983 = vmul.f32 %v1901, %v1967
    %v1984 = vmul.f32 %v1903, %v1968
    %v1985 = vmul.f32 %v1905, %v1969
    %v1986 = vpack.c.bf16 %v1970, %v1970
    %v1987 = vpack.c.bf16 %v1971, %v1971
    %v1988 = vpack.c.bf16 %v1972, %v1972
    %v1989 = vpack.c.bf16 %v1973, %v1973
    %v1990 = vpack.c.bf16 %v1974, %v1974
    %v1991 = vpack.c.bf16 %v1975, %v1975
    %v1992 = vpack.c.bf16 %v1976, %v1976
    %v1993 = vpack.c.bf16 %v1977, %v1977
    %v1994 = vpack.c.bf16 %v1978, %v1978
    %v1995 = vpack.c.bf16 %v1979, %v1979
    %v1996 = vpack.c.bf16 %v1980, %v1980
    %v1997 = vpack.c.bf16 %v1981, %v1981
    %v1998 = vpack.c.bf16 %v1982, %v1982
    %v1999 = vpack.c.bf16 %v1983, %v1983
    %v2000 = vpack.c.bf16 %v1984, %v1984
    %v2001 = vpack.c.bf16 %v1985, %v1985
    %2002 = vrot.lane.b32.xlu0 %v1024, 64
    %v2003 = vpop.permute.xlu0 %2002
    %v2005 = vsel %vm1809, %v1986, 0
    %vm2007 = vcmask 1043456
    %v2009 = vsel %vm2007, %v2003, 0
    %2011 = vmatprep.subr.bf16.mxu0 0
    %2012 = vmatpush1.bf16.msra.mxu0 %v2009
    %2013 = vmatprep.subr.bf16.mxu0 0
    %2014 = vmatpush1.bf16.msra.mxu0 0
    %2015 = vmatprep.subr.bf16.mxu0 0
    %2016 = vmatpush1.bf16.msra.mxu0 0
    %2017 = vmatprep.subr.bf16.mxu0 0
    %2018 = vmatpush1.bf16.msra.mxu0 0
    %2019 = vmatprep.subr.bf16.mxu0 0
    %2020 = vmatpush1.bf16.msra.mxu0 0
    %2021 = vmatprep.subr.bf16.mxu0 0
    %2022 = vmatpush1.bf16.msra.mxu0 0
    %2023 = vmatprep.subr.bf16.mxu0 0
    %2024 = vmatpush1.bf16.msra.mxu0 0
    %2025 = vmatprep.subr.bf16.mxu0 0
    %2026 = vmatpush1.bf16.msra.mxu0 0
    %2027 = vmatprep.subr.bf16.mxu0 0
    %2028 = vmatpush1.bf16.msra.mxu0 0
    %2029 = vmatprep.subr.bf16.mxu0 0
    %2030 = vmatpush1.bf16.msra.mxu0 0
    %2031 = vmatprep.subr.bf16.mxu0 0
    %2032 = vmatpush1.bf16.msra.mxu0 0
    %2033 = vmatprep.subr.bf16.mxu0 0
    %2034 = vmatpush1.bf16.msra.mxu0 0
    %2035 = vmatprep.subr.bf16.mxu0 0
    %2036 = vmatpush1.bf16.msra.mxu0 0
    %2037 = vmatprep.subr.bf16.mxu0 0
    %2038 = vmatpush1.bf16.msra.mxu0 0
    %2039 = vmatprep.subr.bf16.mxu0 0
    %2040 = vmatpush1.bf16.msra.mxu0 0
    %2041 = vmatprep.subr.bf16.mxu0 0
    %2042 = vmatpush1.bf16.msra.mxu0 0
    %2043 = vmatprep.mubr.bf16.mxu0 0
    %2044 = vmatmul.mubr.bf16.gmra.mrb[0].mxu0 %v2005
    %v2045 = vpop.f32.mrb[0].mxu0
    %v2046 = vadd.f32 0.0, %v2045
    %v2047 = vpop.f32.mrb[0].mxu0
    %v2048 = vpop.f32.mrb[0].mxu0
    %v2049 = vpop.f32.mrb[0].mxu0
    %2050 = vdwg.mxu0
    %2051 = vrot.lane.b32.xlu0 %v1025, 64
    %v2052 = vpop.permute.xlu0 %2051
    %v2054 = vsel %vm1809, %v1987, 0
    %v2057 = vsel %vm2007, %v2052, 0
    %2059 = vmatprep.subr.bf16.mxu0 0
    %2060 = vmatpush1.bf16.msra.mxu0 %v2057
    %2061 = vmatprep.subr.bf16.mxu0 0
    %2062 = vmatpush1.bf16.msra.mxu0 0
    %2063 = vmatprep.subr.bf16.mxu0 0
    %2064 = vmatpush1.bf16.msra.mxu0 0
    %2065 = vmatprep.subr.bf16.mxu0 0
    %2066 = vmatpush1.bf16.msra.mxu0 0
    %2067 = vmatprep.subr.bf16.mxu0 0
    %2068 = vmatpush1.bf16.msra.mxu0 0
    %2069 = vmatprep.subr.bf16.mxu0 0
    %2070 = vmatpush1.bf16.msra.mxu0 0
    %2071 = vmatprep.subr.bf16.mxu0 0
    %2072 = vmatpush1.bf16.msra.mxu0 0
    %2073 = vmatprep.subr.bf16.mxu0 0
    %2074 = vmatpush1.bf16.msra.mxu0 0
    %2075 = vmatprep.subr.bf16.mxu0 0
    %2076 = vmatpush1.bf16.msra.mxu0 0
    %2077 = vmatprep.subr.bf16.mxu0 0
    %2078 = vmatpush1.bf16.msra.mxu0 0
    %2079 = vmatprep.subr.bf16.mxu0 0
    %2080 = vmatpush1.bf16.msra.mxu0 0
    %2081 = vmatprep.subr.bf16.mxu0 0
    %2082 = vmatpush1.bf16.msra.mxu0 0
    %2083 = vmatprep.subr.bf16.mxu0 0
    %2084 = vmatpush1.bf16.msra.mxu0 0
    %2085 = vmatprep.subr.bf16.mxu0 0
    %2086 = vmatpush1.bf16.msra.mxu0 0
    %2087 = vmatprep.subr.bf16.mxu0 0
    %2088 = vmatpush1.bf16.msra.mxu0 0
    %2089 = vmatprep.subr.bf16.mxu0 0
    %2090 = vmatpush1.bf16.msra.mxu0 0
    %2091 = vmatprep.mubr.bf16.mxu0 0
    %2092 = vmatmul.mubr.bf16.gmra.mrb[0].mxu0 %v2054
    %v2093 = vpop.f32.mrb[0].mxu0
    %v2094 = vadd.f32 0.0, %v2093
    %v2095 = vpop.f32.mrb[0].mxu0
    %v2096 = vpop.f32.mrb[0].mxu0
    %v2097 = vpop.f32.mrb[0].mxu0
    %2098 = vdwg.mxu0
    %2099 = vrot.lane.b32.xlu0 %v1026, 64
    %v2100 = vpop.permute.xlu0 %2099
    %v2102 = vsel %vm1809, %v1988, 0
    %v2105 = vsel %vm2007, %v2100, 0
    %2107 = vmatprep.subr.bf16.mxu0 0
    %2108 = vmatpush1.bf16.msra.mxu0 %v2105
    %2109 = vmatprep.subr.bf16.mxu0 0
    %2110 = vmatpush1.bf16.msra.mxu0 0
    %2111 = vmatprep.subr.bf16.mxu0 0
    %2112 = vmatpush1.bf16.msra.mxu0 0
    %2113 = vmatprep.subr.bf16.mxu0 0
    %2114 = vmatpush1.bf16.msra.mxu0 0
    %2115 = vmatprep.subr.bf16.mxu0 0
    %2116 = vmatpush1.bf16.msra.mxu0 0
    %2117 = vmatprep.subr.bf16.mxu0 0
    %2118 = vmatpush1.bf16.msra.mxu0 0
    %2119 = vmatprep.subr.bf16.mxu0 0
    %2120 = vmatpush1.bf16.msra.mxu0 0
    %2121 = vmatprep.subr.bf16.mxu0 0
    %2122 = vmatpush1.bf16.msra.mxu0 0
    %2123 = vmatprep.subr.bf16.mxu0 0
    %2124 = vmatpush1.bf16.msra.mxu0 0
    %2125 = vmatprep.subr.bf16.mxu0 0
    %2126 = vmatpush1.bf16.msra.mxu0 0
    %2127 = vmatprep.subr.bf16.mxu0 0
    %2128 = vmatpush1.bf16.msra.mxu0 0
    %2129 = vmatprep.subr.bf16.mxu0 0
    %2130 = vmatpush1.bf16.msra.mxu0 0
    %2131 = vmatprep.subr.bf16.mxu0 0
    %2132 = vmatpush1.bf16.msra.mxu0 0
    %2133 = vmatprep.subr.bf16.mxu0 0
    %2134 = vmatpush1.bf16.msra.mxu0 0
    %2135 = vmatprep.subr.bf16.mxu0 0
    %2136 = vmatpush1.bf16.msra.mxu0 0
    %2137 = vmatprep.subr.bf16.mxu0 0
    %2138 = vmatpush1.bf16.msra.mxu0 0
    %2139 = vmatprep.mubr.bf16.mxu0 0
    %2140 = vmatmul.mubr.bf16.gmra.mrb[0].mxu0 %v2102
    %v2141 = vpop.f32.mrb[0].mxu0
    %v2142 = vadd.f32 0.0, %v2141
    %v2143 = vpop.f32.mrb[0].mxu0
    %v2144 = vpop.f32.mrb[0].mxu0
    %v2145 = vpop.f32.mrb[0].mxu0
    %2146 = vdwg.mxu0
    %2147 = vrot.lane.b32.xlu0 %v1027, 64
    %v2148 = vpop.permute.xlu0 %2147
    %v2150 = vsel %vm1809, %v1989, 0
    %v2153 = vsel %vm2007, %v2148, 0
    %2155 = vmatprep.subr.bf16.mxu0 0
    %2156 = vmatpush1.bf16.msra.mxu0 %v2153
    %2157 = vmatprep.subr.bf16.mxu0 0
    %2158 = vmatpush1.bf16.msra.mxu0 0
    %2159 = vmatprep.subr.bf16.mxu0 0
    %2160 = vmatpush1.bf16.msra.mxu0 0
    %2161 = vmatprep.subr.bf16.mxu0 0
    %2162 = vmatpush1.bf16.msra.mxu0 0
    %2163 = vmatprep.subr.bf16.mxu0 0
    %2164 = vmatpush1.bf16.msra.mxu0 0
    %2165 = vmatprep.subr.bf16.mxu0 0
    %2166 = vmatpush1.bf16.msra.mxu0 0
    %2167 = vmatprep.subr.bf16.mxu0 0
    %2168 = vmatpush1.bf16.msra.mxu0 0
    %2169 = vmatprep.subr.bf16.mxu0 0
    %2170 = vmatpush1.bf16.msra.mxu0 0
    %2171 = vmatprep.subr.bf16.mxu0 0
    %2172 = vmatpush1.bf16.msra.mxu0 0
    %2173 = vmatprep.subr.bf16.mxu0 0
    %2174 = vmatpush1.bf16.msra.mxu0 0
    %2175 = vmatprep.subr.bf16.mxu0 0
    %2176 = vmatpush1.bf16.msra.mxu0 0
    %2177 = vmatprep.subr.bf16.mxu0 0
    %2178 = vmatpush1.bf16.msra.mxu0 0
    %2179 = vmatprep.subr.bf16.mxu0 0
    %2180 = vmatpush1.bf16.msra.mxu0 0
    %2181 = vmatprep.subr.bf16.mxu0 0
    %2182 = vmatpush1.bf16.msra.mxu0 0
    %2183 = vmatprep.subr.bf16.mxu0 0
    %2184 = vmatpush1.bf16.msra.mxu0 0
    %2185 = vmatprep.subr.bf16.mxu0 0
    %2186 = vmatpush1.bf16.msra.mxu0 0
    %2187 = vmatprep.mubr.bf16.mxu0 0
    %2188 = vmatmul.mubr.bf16.gmra.mrb[0].mxu0 %v2150
    %v2189 = vpop.f32.mrb[0].mxu0
    %v2190 = vadd.f32 0.0, %v2189
    %v2191 = vpop.f32.mrb[0].mxu0
    %v2192 = vpop.f32.mrb[0].mxu0
    %v2193 = vpop.f32.mrb[0].mxu0
    %2194 = vdwg.mxu0
    %2195 = vrot.lane.b32.xlu0 %v1028, 64
    %v2196 = vpop.permute.xlu0 %2195
    %v2198 = vsel %vm1809, %v1990, 0
    %v2201 = vsel %vm2007, %v2196, 0
    %2203 = vmatprep.subr.bf16.mxu0 0
    %2204 = vmatpush1.bf16.msra.mxu0 %v2201
    %2205 = vmatprep.subr.bf16.mxu0 0
    %2206 = vmatpush1.bf16.msra.mxu0 0
    %2207 = vmatprep.subr.bf16.mxu0 0
    %2208 = vmatpush1.bf16.msra.mxu0 0
    %2209 = vmatprep.subr.bf16.mxu0 0
    %2210 = vmatpush1.bf16.msra.mxu0 0
    %2211 = vmatprep.subr.bf16.mxu0 0
    %2212 = vmatpush1.bf16.msra.mxu0 0
    %2213 = vmatprep.subr.bf16.mxu0 0
    %2214 = vmatpush1.bf16.msra.mxu0 0
    %2215 = vmatprep.subr.bf16.mxu0 0
    %2216 = vmatpush1.bf16.msra.mxu0 0
    %2217 = vmatprep.subr.bf16.mxu0 0
    %2218 = vmatpush1.bf16.msra.mxu0 0
    %2219 = vmatprep.subr.bf16.mxu0 0
    %2220 = vmatpush1.bf16.msra.mxu0 0
    %2221 = vmatprep.subr.bf16.mxu0 0
    %2222 = vmatpush1.bf16.msra.mxu0 0
    %2223 = vmatprep.subr.bf16.mxu0 0
    %2224 = vmatpush1.bf16.msra.mxu0 0
    %2225 = vmatprep.subr.bf16.mxu0 0
    %2226 = vmatpush1.bf16.msra.mxu0 0
    %2227 = vmatprep.subr.bf16.mxu0 0
    %2228 = vmatpush1.bf16.msra.mxu0 0
    %2229 = vmatprep.subr.bf16.mxu0 0
    %2230 = vmatpush1.bf16.msra.mxu0 0
    %2231 = vmatprep.subr.bf16.mxu0 0
    %2232 = vmatpush1.bf16.msra.mxu0 0
    %2233 = vmatprep.subr.bf16.mxu0 0
    %2234 = vmatpush1.bf16.msra.mxu0 0
    %2235 = vmatprep.mubr.bf16.mxu0 0
    %2236 = vmatmul.mubr.bf16.gmra.mrb[0].mxu0 %v2198
    %v2237 = vpop.f32.mrb[0].mxu0
    %v2238 = vadd.f32 0.0, %v2237
    %v2239 = vpop.f32.mrb[0].mxu0
    %v2240 = vpop.f32.mrb[0].mxu0
    %v2241 = vpop.f32.mrb[0].mxu0
    %2242 = vdwg.mxu0
    %2243 = vrot.lane.b32.xlu0 %v1029, 64
    %v2244 = vpop.permute.xlu0 %2243
    %v2246 = vsel %vm1809, %v1991, 0
    %v2249 = vsel %vm2007, %v2244, 0
    %2251 = vmatprep.subr.bf16.mxu0 0
    %2252 = vmatpush1.bf16.msra.mxu0 %v2249
    %2253 = vmatprep.subr.bf16.mxu0 0
    %2254 = vmatpush1.bf16.msra.mxu0 0
    %2255 = vmatprep.subr.bf16.mxu0 0
    %2256 = vmatpush1.bf16.msra.mxu0 0
    %2257 = vmatprep.subr.bf16.mxu0 0
    %2258 = vmatpush1.bf16.msra.mxu0 0
    %2259 = vmatprep.subr.bf16.mxu0 0
    %2260 = vmatpush1.bf16.msra.mxu0 0
    %2261 = vmatprep.subr.bf16.mxu0 0
    %2262 = vmatpush1.bf16.msra.mxu0 0
    %2263 = vmatprep.subr.bf16.mxu0 0
    %2264 = vmatpush1.bf16.msra.mxu0 0
    %2265 = vmatprep.subr.bf16.mxu0 0
    %2266 = vmatpush1.bf16.msra.mxu0 0
    %2267 = vmatprep.subr.bf16.mxu0 0
    %2268 = vmatpush1.bf16.msra.mxu0 0
    %2269 = vmatprep.subr.bf16.mxu0 0
    %2270 = vmatpush1.bf16.msra.mxu0 0
    %2271 = vmatprep.subr.bf16.mxu0 0
    %2272 = vmatpush1.bf16.msra.mxu0 0
    %2273 = vmatprep.subr.bf16.mxu0 0
    %2274 = vmatpush1.bf16.msra.mxu0 0
    %2275 = vmatprep.subr.bf16.mxu0 0
    %2276 = vmatpush1.bf16.msra.mxu0 0
    %2277 = vmatprep.subr.bf16.mxu0 0
    %2278 = vmatpush1.bf16.msra.mxu0 0
    %2279 = vmatprep.subr.bf16.mxu0 0
    %2280 = vmatpush1.bf16.msra.mxu0 0
    %2281 = vmatprep.subr.bf16.mxu0 0
    %2282 = vmatpush1.bf16.msra.mxu0 0
    %2283 = vmatprep.mubr.bf16.mxu0 0
    %2284 = vmatmul.mubr.bf16.gmra.mrb[0].mxu0 %v2246
    %v2285 = vpop.f32.mrb[0].mxu0
    %v2286 = vadd.f32 0.0, %v2285
    %v2287 = vpop.f32.mrb[0].mxu0
    %v2288 = vpop.f32.mrb[0].mxu0
    %v2289 = vpop.f32.mrb[0].mxu0
    %2290 = vdwg.mxu0
    %2291 = vrot.lane.b32.xlu0 %v1030, 64
    %v2292 = vpop.permute.xlu0 %2291
    %v2294 = vsel %vm1809, %v1992, 0
    %v2297 = vsel %vm2007, %v2292, 0
    %2299 = vmatprep.subr.bf16.mxu0 0
    %2300 = vmatpush1.bf16.msra.mxu0 %v2297
    %2301 = vmatprep.subr.bf16.mxu0 0
    %2302 = vmatpush1.bf16.msra.mxu0 0
    %2303 = vmatprep.subr.bf16.mxu0 0
    %2304 = vmatpush1.bf16.msra.mxu0 0
    %2305 = vmatprep.subr.bf16.mxu0 0
    %2306 = vmatpush1.bf16.msra.mxu0 0
    %2307 = vmatprep.subr.bf16.mxu0 0
    %2308 = vmatpush1.bf16.msra.mxu0 0
    %2309 = vmatprep.subr.bf16.mxu0 0
    %2310 = vmatpush1.bf16.msra.mxu0 0
    %2311 = vmatprep.subr.bf16.mxu0 0
    %2312 = vmatpush1.bf16.msra.mxu0 0
    %2313 = vmatprep.subr.bf16.mxu0 0
    %2314 = vmatpush1.bf16.msra.mxu0 0
    %2315 = vmatprep.subr.bf16.mxu0 0
    %2316 = vmatpush1.bf16.msra.mxu0 0
    %2317 = vmatprep.subr.bf16.mxu0 0
    %2318 = vmatpush1.bf16.msra.mxu0 0
    %2319 = vmatprep.subr.bf16.mxu0 0
    %2320 = vmatpush1.bf16.msra.mxu0 0
    %2321 = vmatprep.subr.bf16.mxu0 0
    %2322 = vmatpush1.bf16.msra.mxu0 0
    %2323 = vmatprep.subr.bf16.mxu0 0
    %2324 = vmatpush1.bf16.msra.mxu0 0
    %2325 = vmatprep.subr.bf16.mxu0 0
    %2326 = vmatpush1.bf16.msra.mxu0 0
    %2327 = vmatprep.subr.bf16.mxu0 0
    %2328 = vmatpush1.bf16.msra.mxu0 0
    %2329 = vmatprep.subr.bf16.mxu0 0
    %2330 = vmatpush1.bf16.msra.mxu0 0
    %2331 = vmatprep.mubr.bf16.mxu0 0
    %2332 = vmatmul.mubr.bf16.gmra.mrb[0].mxu0 %v2294
    %v2333 = vpop.f32.mrb[0].mxu0
    %v2334 = vadd.f32 0.0, %v2333
    %v2335 = vpop.f32.mrb[0].mxu0
    %v2336 = vpop.f32.mrb[0].mxu0
    %v2337 = vpop.f32.mrb[0].mxu0
    %2338 = vdwg.mxu0
    %2339 = vrot.lane.b32.xlu0 %v1031, 64
    %v2340 = vpop.permute.xlu0 %2339
    %v2342 = vsel %vm1809, %v1993, 0
    %v2345 = vsel %vm2007, %v2340, 0
    %2347 = vmatprep.subr.bf16.mxu0 0
    %2348 = vmatpush1.bf16.msra.mxu0 %v2345
    %2349 = vmatprep.subr.bf16.mxu0 0
    %2350 = vmatpush1.bf16.msra.mxu0 0
    %2351 = vmatprep.subr.bf16.mxu0 0
    %2352 = vmatpush1.bf16.msra.mxu0 0
    %2353 = vmatprep.subr.bf16.mxu0 0
    %2354 = vmatpush1.bf16.msra.mxu0 0
    %2355 = vmatprep.subr.bf16.mxu0 0
    %2356 = vmatpush1.bf16.msra.mxu0 0
    %2357 = vmatprep.subr.bf16.mxu0 0
    %2358 = vmatpush1.bf16.msra.mxu0 0
    %2359 = vmatprep.subr.bf16.mxu0 0
    %2360 = vmatpush1.bf16.msra.mxu0 0
    %2361 = vmatprep.subr.bf16.mxu0 0
    %2362 = vmatpush1.bf16.msra.mxu0 0
    %2363 = vmatprep.subr.bf16.mxu0 0
    %2364 = vmatpush1.bf16.msra.mxu0 0
    %2365 = vmatprep.subr.bf16.mxu0 0
    %2366 = vmatpush1.bf16.msra.mxu0 0
    %2367 = vmatprep.subr.bf16.mxu0 0
    %2368 = vmatpush1.bf16.msra.mxu0 0
    %2369 = vmatprep.subr.bf16.mxu0 0
    %2370 = vmatpush1.bf16.msra.mxu0 0
    %2371 = vmatprep.subr.bf16.mxu0 0
    %2372 = vmatpush1.bf16.msra.mxu0 0
    %2373 = vmatprep.subr.bf16.mxu0 0
    %2374 = vmatpush1.bf16.msra.mxu0 0
    %2375 = vmatprep.subr.bf16.mxu0 0
    %2376 = vmatpush1.bf16.msra.mxu0 0
    %2377 = vmatprep.subr.bf16.mxu0 0
    %2378 = vmatpush1.bf16.msra.mxu0 0
    %2379 = vmatprep.mubr.bf16.mxu0 0
    %2380 = vmatmul.mubr.bf16.gmra.mrb[0].mxu0 %v2342
    %v2381 = vpop.f32.mrb[0].mxu0
    %v2382 = vadd.f32 0.0, %v2381
    %v2383 = vpop.f32.mrb[0].mxu0
    %v2384 = vpop.f32.mrb[0].mxu0
    %v2385 = vpop.f32.mrb[0].mxu0
    %2386 = vdwg.mxu0
    %2387 = vrot.lane.b32.xlu0 %v1032, 64
    %v2388 = vpop.permute.xlu0 %2387
    %v2390 = vsel %vm1809, %v1994, 0
    %v2393 = vsel %vm2007, %v2388, 0
    %2395 = vmatprep.subr.bf16.mxu0 0
    %2396 = vmatpush1.bf16.msra.mxu0 %v2393
    %2397 = vmatprep.subr.bf16.mxu0 0
    %2398 = vmatpush1.bf16.msra.mxu0 0
    %2399 = vmatprep.subr.bf16.mxu0 0
    %2400 = vmatpush1.bf16.msra.mxu0 0
    %2401 = vmatprep.subr.bf16.mxu0 0
    %2402 = vmatpush1.bf16.msra.mxu0 0
    %2403 = vmatprep.subr.bf16.mxu0 0
    %2404 = vmatpush1.bf16.msra.mxu0 0
    %2405 = vmatprep.subr.bf16.mxu0 0
    %2406 = vmatpush1.bf16.msra.mxu0 0
    %2407 = vmatprep.subr.bf16.mxu0 0
    %2408 = vmatpush1.bf16.msra.mxu0 0
    %2409 = vmatprep.subr.bf16.mxu0 0
    %2410 = vmatpush1.bf16.msra.mxu0 0
    %2411 = vmatprep.subr.bf16.mxu0 0
    %2412 = vmatpush1.bf16.msra.mxu0 0
    %2413 = vmatprep.subr.bf16.mxu0 0
    %2414 = vmatpush1.bf16.msra.mxu0 0
    %2415 = vmatprep.subr.bf16.mxu0 0
    %2416 = vmatpush1.bf16.msra.mxu0 0
    %2417 = vmatprep.subr.bf16.mxu0 0
    %2418 = vmatpush1.bf16.msra.mxu0 0
    %2419 = vmatprep.subr.bf16.mxu0 0
    %2420 = vmatpush1.bf16.msra.mxu0 0
    %2421 = vmatprep.subr.bf16.mxu0 0
    %2422 = vmatpush1.bf16.msra.mxu0 0
    %2423 = vmatprep.subr.bf16.mxu0 0
    %2424 = vmatpush1.bf16.msra.mxu0 0
    %2425 = vmatprep.subr.bf16.mxu0 0
    %2426 = vmatpush1.bf16.msra.mxu0 0
    %2427 = vmatprep.mubr.bf16.mxu0 0
    %2428 = vmatmul.mubr.bf16.gmra.mrb[0].mxu0 %v2390
    %v2429 = vpop.f32.mrb[0].mxu0
    %v2430 = vadd.f32 0.0, %v2429
    %v2431 = vpop.f32.mrb[0].mxu0
    %v2432 = vpop.f32.mrb[0].mxu0
    %v2433 = vpop.f32.mrb[0].mxu0
    %2434 = vdwg.mxu0
    %2435 = vrot.lane.b32.xlu0 %v1033, 64
    %v2436 = vpop.permute.xlu0 %2435
    %v2438 = vsel %vm1809, %v1995, 0
    %v2441 = vsel %vm2007, %v2436, 0
    %2443 = vmatprep.subr.bf16.mxu0 0
    %2444 = vmatpush1.bf16.msra.mxu0 %v2441
    %2445 = vmatprep.subr.bf16.mxu0 0
    %2446 = vmatpush1.bf16.msra.mxu0 0
    %2447 = vmatprep.subr.bf16.mxu0 0
    %2448 = vmatpush1.bf16.msra.mxu0 0
    %2449 = vmatprep.subr.bf16.mxu0 0
    %2450 = vmatpush1.bf16.msra.mxu0 0
    %2451 = vmatprep.subr.bf16.mxu0 0
    %2452 = vmatpush1.bf16.msra.mxu0 0
    %2453 = vmatprep.subr.bf16.mxu0 0
    %2454 = vmatpush1.bf16.msra.mxu0 0
    %2455 = vmatprep.subr.bf16.mxu0 0
    %2456 = vmatpush1.bf16.msra.mxu0 0
    %2457 = vmatprep.subr.bf16.mxu0 0
    %2458 = vmatpush1.bf16.msra.mxu0 0
    %2459 = vmatprep.subr.bf16.mxu0 0
    %2460 = vmatpush1.bf16.msra.mxu0 0
    %2461 = vmatprep.subr.bf16.mxu0 0
    %2462 = vmatpush1.bf16.msra.mxu0 0
    %2463 = vmatprep.subr.bf16.mxu0 0
    %2464 = vmatpush1.bf16.msra.mxu0 0
    %2465 = vmatprep.subr.bf16.mxu0 0
    %2466 = vmatpush1.bf16.msra.mxu0 0
    %2467 = vmatprep.subr.bf16.mxu0 0
    %2468 = vmatpush1.bf16.msra.mxu0 0
    %2469 = vmatprep.subr.bf16.mxu0 0
    %2470 = vmatpush1.bf16.msra.mxu0 0
    %2471 = vmatprep.subr.bf16.mxu0 0
    %2472 = vmatpush1.bf16.msra.mxu0 0
    %2473 = vmatprep.subr.bf16.mxu0 0
    %2474 = vmatpush1.bf16.msra.mxu0 0
    %2475 = vmatprep.mubr.bf16.mxu0 0
    %2476 = vmatmul.mubr.bf16.gmra.mrb[0].mxu0 %v2438
    %v2477 = vpop.f32.mrb[0].mxu0
    %v2478 = vadd.f32 0.0, %v2477
    %v2479 = vpop.f32.mrb[0].mxu0
    %v2480 = vpop.f32.mrb[0].mxu0
    %v2481 = vpop.f32.mrb[0].mxu0
    %2482 = vdwg.mxu0
    %2483 = vrot.lane.b32.xlu0 %v1034, 64
    %v2484 = vpop.permute.xlu0 %2483
    %v2486 = vsel %vm1809, %v1996, 0
    %v2489 = vsel %vm2007, %v2484, 0
    %2491 = vmatprep.subr.bf16.mxu0 0
    %2492 = vmatpush1.bf16.msra.mxu0 %v2489
    %2493 = vmatprep.subr.bf16.mxu0 0
    %2494 = vmatpush1.bf16.msra.mxu0 0
    %2495 = vmatprep.subr.bf16.mxu0 0
    %2496 = vmatpush1.bf16.msra.mxu0 0
    %2497 = vmatprep.subr.bf16.mxu0 0
    %2498 = vmatpush1.bf16.msra.mxu0 0
    %2499 = vmatprep.subr.bf16.mxu0 0
    %2500 = vmatpush1.bf16.msra.mxu0 0
    %2501 = vmatprep.subr.bf16.mxu0 0
    %2502 = vmatpush1.bf16.msra.mxu0 0
    %2503 = vmatprep.subr.bf16.mxu0 0
    %2504 = vmatpush1.bf16.msra.mxu0 0
    %2505 = vmatprep.subr.bf16.mxu0 0
    %2506 = vmatpush1.bf16.msra.mxu0 0
    %2507 = vmatprep.subr.bf16.mxu0 0
    %2508 = vmatpush1.bf16.msra.mxu0 0
    %2509 = vmatprep.subr.bf16.mxu0 0
    %2510 = vmatpush1.bf16.msra.mxu0 0
    %2511 = vmatprep.subr.bf16.mxu0 0
    %2512 = vmatpush1.bf16.msra.mxu0 0
    %2513 = vmatprep.subr.bf16.mxu0 0
    %2514 = vmatpush1.bf16.msra.mxu0 0
    %2515 = vmatprep.subr.bf16.mxu0 0
    %2516 = vmatpush1.bf16.msra.mxu0 0
    %2517 = vmatprep.subr.bf16.mxu0 0
    %2518 = vmatpush1.bf16.msra.mxu0 0
    %2519 = vmatprep.subr.bf16.mxu0 0
    %2520 = vmatpush1.bf16.msra.mxu0 0
    %2521 = vmatprep.subr.bf16.mxu0 0
    %2522 = vmatpush1.bf16.msra.mxu0 0
    %2523 = vmatprep.mubr.bf16.mxu0 0
    %2524 = vmatmul.mubr.bf16.gmra.mrb[0].mxu0 %v2486
    %v2525 = vpop.f32.mrb[0].mxu0
    %v2526 = vadd.f32 0.0, %v2525
    %v2527 = vpop.f32.mrb[0].mxu0
    %v2528 = vpop.f32.mrb[0].mxu0
    %v2529 = vpop.f32.mrb[0].mxu0
    %2530 = vdwg.mxu0
    %2531 = vrot.lane.b32.xlu0 %v1035, 64
    %v2532 = vpop.permute.xlu0 %2531
    %v2534 = vsel %vm1809, %v1997, 0
    %v2537 = vsel %vm2007, %v2532, 0
    %2539 = vmatprep.subr.bf16.mxu0 0
    %2540 = vmatpush1.bf16.msra.mxu0 %v2537
    %2541 = vmatprep.subr.bf16.mxu0 0
    %2542 = vmatpush1.bf16.msra.mxu0 0
    %2543 = vmatprep.subr.bf16.mxu0 0
    %2544 = vmatpush1.bf16.msra.mxu0 0
    %2545 = vmatprep.subr.bf16.mxu0 0
    %2546 = vmatpush1.bf16.msra.mxu0 0
    %2547 = vmatprep.subr.bf16.mxu0 0
    %2548 = vmatpush1.bf16.msra.mxu0 0
    %2549 = vmatprep.subr.bf16.mxu0 0
    %2550 = vmatpush1.bf16.msra.mxu0 0
    %2551 = vmatprep.subr.bf16.mxu0 0
    %2552 = vmatpush1.bf16.msra.mxu0 0
    %2553 = vmatprep.subr.bf16.mxu0 0
    %2554 = vmatpush1.bf16.msra.mxu0 0
    %2555 = vmatprep.subr.bf16.mxu0 0
    %2556 = vmatpush1.bf16.msra.mxu0 0
    %2557 = vmatprep.subr.bf16.mxu0 0
    %2558 = vmatpush1.bf16.msra.mxu0 0
    %2559 = vmatprep.subr.bf16.mxu0 0
    %2560 = vmatpush1.bf16.msra.mxu0 0
    %2561 = vmatprep.subr.bf16.mxu0 0
    %2562 = vmatpush1.bf16.msra.mxu0 0
    %2563 = vmatprep.subr.bf16.mxu0 0
    %2564 = vmatpush1.bf16.msra.mxu0 0
    %2565 = vmatprep.subr.bf16.mxu0 0
    %2566 = vmatpush1.bf16.msra.mxu0 0
    %2567 = vmatprep.subr.bf16.mxu0 0
    %2568 = vmatpush1.bf16.msra.mxu0 0
    %2569 = vmatprep.subr.bf16.mxu0 0
    %2570 = vmatpush1.bf16.msra.mxu0 0
    %2571 = vmatprep.mubr.bf16.mxu0 0
    %2572 = vmatmul.mubr.bf16.gmra.mrb[0].mxu0 %v2534
    %v2573 = vpop.f32.mrb[0].mxu0
    %v2574 = vadd.f32 0.0, %v2573
    %v2575 = vpop.f32.mrb[0].mxu0
    %v2576 = vpop.f32.mrb[0].mxu0
    %v2577 = vpop.f32.mrb[0].mxu0
    %2578 = vdwg.mxu0
    %2579 = vrot.lane.b32.xlu0 %v1036, 64
    %v2580 = vpop.permute.xlu0 %2579
    %v2582 = vsel %vm1809, %v1998, 0
    %v2585 = vsel %vm2007, %v2580, 0
    %2587 = vmatprep.subr.bf16.mxu0 0
    %2588 = vmatpush1.bf16.msra.mxu0 %v2585
    %2589 = vmatprep.subr.bf16.mxu0 0
    %2590 = vmatpush1.bf16.msra.mxu0 0
    %2591 = vmatprep.subr.bf16.mxu0 0
    %2592 = vmatpush1.bf16.msra.mxu0 0
    %2593 = vmatprep.subr.bf16.mxu0 0
    %2594 = vmatpush1.bf16.msra.mxu0 0
    %2595 = vmatprep.subr.bf16.mxu0 0
    %2596 = vmatpush1.bf16.msra.mxu0 0
    %2597 = vmatprep.subr.bf16.mxu0 0
    %2598 = vmatpush1.bf16.msra.mxu0 0
    %2599 = vmatprep.subr.bf16.mxu0 0
    %2600 = vmatpush1.bf16.msra.mxu0 0
    %2601 = vmatprep.subr.bf16.mxu0 0
    %2602 = vmatpush1.bf16.msra.mxu0 0
    %2603 = vmatprep.subr.bf16.mxu0 0
    %2604 = vmatpush1.bf16.msra.mxu0 0
    %2605 = vmatprep.subr.bf16.mxu0 0
    %2606 = vmatpush1.bf16.msra.mxu0 0
    %2607 = vmatprep.subr.bf16.mxu0 0
    %2608 = vmatpush1.bf16.msra.mxu0 0
    %2609 = vmatprep.subr.bf16.mxu0 0
    %2610 = vmatpush1.bf16.msra.mxu0 0
    %2611 = vmatprep.subr.bf16.mxu0 0
    %2612 = vmatpush1.bf16.msra.mxu0 0
    %2613 = vmatprep.subr.bf16.mxu0 0
    %2614 = vmatpush1.bf16.msra.mxu0 0
    %2615 = vmatprep.subr.bf16.mxu0 0
    %2616 = vmatpush1.bf16.msra.mxu0 0
    %2617 = vmatprep.subr.bf16.mxu0 0
    %2618 = vmatpush1.bf16.msra.mxu0 0
    %2619 = vmatprep.mubr.bf16.mxu0 0
    %2620 = vmatmul.mubr.bf16.gmra.mrb[0].mxu0 %v2582
    %v2621 = vpop.f32.mrb[0].mxu0
    %v2622 = vadd.f32 0.0, %v2621
    %v2623 = vpop.f32.mrb[0].mxu0
    %v2624 = vpop.f32.mrb[0].mxu0
    %v2625 = vpop.f32.mrb[0].mxu0
    %2626 = vdwg.mxu0
    %2627 = vrot.lane.b32.xlu0 %v1037, 64
    %v2628 = vpop.permute.xlu0 %2627
    %v2630 = vsel %vm1809, %v1999, 0
    %v2633 = vsel %vm2007, %v2628, 0
    %2635 = vmatprep.subr.bf16.mxu0 0
    %2636 = vmatpush1.bf16.msra.mxu0 %v2633
    %2637 = vmatprep.subr.bf16.mxu0 0
    %2638 = vmatpush1.bf16.msra.mxu0 0
    %2639 = vmatprep.subr.bf16.mxu0 0
    %2640 = vmatpush1.bf16.msra.mxu0 0
    %2641 = vmatprep.subr.bf16.mxu0 0
    %2642 = vmatpush1.bf16.msra.mxu0 0
    %2643 = vmatprep.subr.bf16.mxu0 0
    %2644 = vmatpush1.bf16.msra.mxu0 0
    %2645 = vmatprep.subr.bf16.mxu0 0
    %2646 = vmatpush1.bf16.msra.mxu0 0
    %2647 = vmatprep.subr.bf16.mxu0 0
    %2648 = vmatpush1.bf16.msra.mxu0 0
    %2649 = vmatprep.subr.bf16.mxu0 0
    %2650 = vmatpush1.bf16.msra.mxu0 0
    %2651 = vmatprep.subr.bf16.mxu0 0
    %2652 = vmatpush1.bf16.msra.mxu0 0
    %2653 = vmatprep.subr.bf16.mxu0 0
    %2654 = vmatpush1.bf16.msra.mxu0 0
    %2655 = vmatprep.subr.bf16.mxu0 0
    %2656 = vmatpush1.bf16.msra.mxu0 0
    %2657 = vmatprep.subr.bf16.mxu0 0
    %2658 = vmatpush1.bf16.msra.mxu0 0
    %2659 = vmatprep.subr.bf16.mxu0 0
    %2660 = vmatpush1.bf16.msra.mxu0 0
    %2661 = vmatprep.subr.bf16.mxu0 0
    %2662 = vmatpush1.bf16.msra.mxu0 0
    %2663 = vmatprep.subr.bf16.mxu0 0
    %2664 = vmatpush1.bf16.msra.mxu0 0
    %2665 = vmatprep.subr.bf16.mxu0 0
    %2666 = vmatpush1.bf16.msra.mxu0 0
    %2667 = vmatprep.mubr.bf16.mxu0 0
    %2668 = vmatmul.mubr.bf16.gmra.mrb[0].mxu0 %v2630
    %v2669 = vpop.f32.mrb[0].mxu0
    %v2670 = vadd.f32 0.0, %v2669
    %v2671 = vpop.f32.mrb[0].mxu0
    %v2672 = vpop.f32.mrb[0].mxu0
    %v2673 = vpop.f32.mrb[0].mxu0
    %2674 = vdwg.mxu0
    %2675 = vrot.lane.b32.xlu0 %v1038, 64
    %v2676 = vpop.permute.xlu0 %2675
    %v2678 = vsel %vm1809, %v2000, 0
    %v2681 = vsel %vm2007, %v2676, 0
    %2683 = vmatprep.subr.bf16.mxu0 0
    %2684 = vmatpush1.bf16.msra.mxu0 %v2681
    %2685 = vmatprep.subr.bf16.mxu0 0
    %2686 = vmatpush1.bf16.msra.mxu0 0
    %2687 = vmatprep.subr.bf16.mxu0 0
    %2688 = vmatpush1.bf16.msra.mxu0 0
    %2689 = vmatprep.subr.bf16.mxu0 0
    %2690 = vmatpush1.bf16.msra.mxu0 0
    %2691 = vmatprep.subr.bf16.mxu0 0
    %2692 = vmatpush1.bf16.msra.mxu0 0
    %2693 = vmatprep.subr.bf16.mxu0 0
    %2694 = vmatpush1.bf16.msra.mxu0 0
    %2695 = vmatprep.subr.bf16.mxu0 0
    %2696 = vmatpush1.bf16.msra.mxu0 0
    %2697 = vmatprep.subr.bf16.mxu0 0
    %2698 = vmatpush1.bf16.msra.mxu0 0
    %2699 = vmatprep.subr.bf16.mxu0 0
    %2700 = vmatpush1.bf16.msra.mxu0 0
    %2701 = vmatprep.subr.bf16.mxu0 0
    %2702 = vmatpush1.bf16.msra.mxu0 0
    %2703 = vmatprep.subr.bf16.mxu0 0
    %2704 = vmatpush1.bf16.msra.mxu0 0
    %2705 = vmatprep.subr.bf16.mxu0 0
    %2706 = vmatpush1.bf16.msra.mxu0 0
    %2707 = vmatprep.subr.bf16.mxu0 0
    %2708 = vmatpush1.bf16.msra.mxu0 0
    %2709 = vmatprep.subr.bf16.mxu0 0
    %2710 = vmatpush1.bf16.msra.mxu0 0
    %2711 = vmatprep.subr.bf16.mxu0 0
    %2712 = vmatpush1.bf16.msra.mxu0 0
    %2713 = vmatprep.subr.bf16.mxu0 0
    %2714 = vmatpush1.bf16.msra.mxu0 0
    %2715 = vmatprep.mubr.bf16.mxu0 0
    %2716 = vmatmul.mubr.bf16.gmra.mrb[0].mxu0 %v2678
    %v2717 = vpop.f32.mrb[0].mxu0
    %v2718 = vadd.f32 0.0, %v2717
    %v2719 = vpop.f32.mrb[0].mxu0
    %v2720 = vpop.f32.mrb[0].mxu0
    %v2721 = vpop.f32.mrb[0].mxu0
    %2722 = vdwg.mxu0
    %2723 = vrot.lane.b32.xlu0 %v1039, 64
    %v2724 = vpop.permute.xlu0 %2723
    %v2726 = vsel %vm1809, %v2001, 0
    %v2729 = vsel %vm2007, %v2724, 0
    %2731 = vmatprep.subr.bf16.mxu0 0
    %2732 = vmatpush1.bf16.msra.mxu0 %v2729
    %2733 = vmatprep.subr.bf16.mxu0 0
    %2734 = vmatpush1.bf16.msra.mxu0 0
    %2735 = vmatprep.subr.bf16.mxu0 0
    %2736 = vmatpush1.bf16.msra.mxu0 0
    %2737 = vmatprep.subr.bf16.mxu0 0
    %2738 = vmatpush1.bf16.msra.mxu0 0
    %2739 = vmatprep.subr.bf16.mxu0 0
    %2740 = vmatpush1.bf16.msra.mxu0 0
    %2741 = vmatprep.subr.bf16.mxu0 0
    %2742 = vmatpush1.bf16.msra.mxu0 0
    %2743 = vmatprep.subr.bf16.mxu0 0
    %2744 = vmatpush1.bf16.msra.mxu0 0
    %2745 = vmatprep.subr.bf16.mxu0 0
    %2746 = vmatpush1.bf16.msra.mxu0 0
    %2747 = vmatprep.subr.bf16.mxu0 0
    %2748 = vmatpush1.bf16.msra.mxu0 0
    %2749 = vmatprep.subr.bf16.mxu0 0
    %2750 = vmatpush1.bf16.msra.mxu0 0
    %2751 = vmatprep.subr.bf16.mxu0 0
    %2752 = vmatpush1.bf16.msra.mxu0 0
    %2753 = vmatprep.subr.bf16.mxu0 0
    %2754 = vmatpush1.bf16.msra.mxu0 0
    %2755 = vmatprep.subr.bf16.mxu0 0
    %2756 = vmatpush1.bf16.msra.mxu0 0
    %2757 = vmatprep.subr.bf16.mxu0 0
    %2758 = vmatpush1.bf16.msra.mxu0 0
    %2759 = vmatprep.subr.bf16.mxu0 0
    %2760 = vmatpush1.bf16.msra.mxu0 0
    %2761 = vmatprep.subr.bf16.mxu0 0
    %2762 = vmatpush1.bf16.msra.mxu0 0
    %2763 = vmatprep.mubr.bf16.mxu0 0
    %2764 = vmatmul.mubr.bf16.gmra.mrb[0].mxu0 %v2726
    %v2765 = vpop.f32.mrb[0].mxu0
    %v2766 = vadd.f32 0.0, %v2765
    %v2767 = vpop.f32.mrb[0].mxu0
    %v2768 = vpop.f32.mrb[0].mxu0
    %v2769 = vpop.f32.mrb[0].mxu0
    %2770 = vdwg.mxu0
    %v2771 = vpack.c.bf16 %v2046, %v2046
    %v2772 = vpack.c.bf16 %v2094, %v2094
    %v2773 = vpack.c.bf16 %v2142, %v2142
    %v2774 = vpack.c.bf16 %v2190, %v2190
    %v2775 = vpack.c.bf16 %v2238, %v2238
    %v2776 = vpack.c.bf16 %v2286, %v2286
    %v2777 = vpack.c.bf16 %v2334, %v2334
    %v2778 = vpack.c.bf16 %v2382, %v2382
    %v2779 = vpack.c.bf16 %v2430, %v2430
    %v2780 = vpack.c.bf16 %v2478, %v2478
    %v2781 = vpack.c.bf16 %v2526, %v2526
    %v2782 = vpack.c.bf16 %v2574, %v2574
    %v2783 = vpack.c.bf16 %v2622, %v2622
    %v2784 = vpack.c.bf16 %v2670, %v2670
    %v2785 = vpack.c.bf16 %v2718, %v2718
    %v2786 = vpack.c.bf16 %v2766, %v2766
    %v2789 = vunpack.c.l.b16 %v2771
    %v2790 = vunpack.c.l.b16 %v2772
    %v2791 = vpack.c.b16 %v2790, %v2789
    %v2794 = vunpack.c.l.b16 %v2773
    %v2795 = vunpack.c.l.b16 %v2774
    %v2796 = vpack.c.b16 %v2795, %v2794
    %2797 = vrot.lane.b32.xlu0 %v2796, 32
    %v2798 = vpop.permute.xlu0 %2797
    %v2801 = vunpack.c.l.b16 %v2775
    %v2802 = vunpack.c.l.b16 %v2776
    %v2803 = vpack.c.b16 %v2802, %v2801
    %2804 = vrot.lane.b32.xlu0 %v2803, 64
    %v2805 = vpop.permute.xlu0 %2804
    %v2808 = vunpack.c.l.b16 %v2777
    %v2809 = vunpack.c.l.b16 %v2778
    %v2810 = vpack.c.b16 %v2809, %v2808
    %2811 = vrot.lane.b32.xlu0 %v2810, 96
    %v2812 = vpop.permute.xlu0 %2811
    %v2815 = vunpack.c.l.b16 %v2779
    %v2816 = vunpack.c.l.b16 %v2780
    %v2817 = vpack.c.b16 %v2816, %v2815
    %v2820 = vunpack.c.l.b16 %v2781
    %v2821 = vunpack.c.l.b16 %v2782
    %v2822 = vpack.c.b16 %v2821, %v2820
    %2823 = vrot.lane.b32.xlu0 %v2822, 32
    %v2824 = vpop.permute.xlu0 %2823
    %v2827 = vunpack.c.l.b16 %v2783
    %v2828 = vunpack.c.l.b16 %v2784
    %v2829 = vpack.c.b16 %v2828, %v2827
    %2830 = vrot.lane.b32.xlu0 %v2829, 64
    %v2831 = vpop.permute.xlu0 %2830
    %v2834 = vunpack.c.l.b16 %v2785
    %v2835 = vunpack.c.l.b16 %v2786
    %v2836 = vpack.c.b16 %v2835, %v2834
    %2837 = vrot.lane.b32.xlu0 %v2836, 96
    %v2838 = vpop.permute.xlu0 %2837
    %v2841 = vsel %vm1042, %v2791, %v2798
    %vm2842 = vcmask 523264
    %v2844 = vsel %vm2842, %v2841, %v2805
    %vm2845 = vcmask 785408
    %v2847 = vsel %vm2845, %v2844, %v2812
    %v2851 = vsel %vm1042, %v2817, %v2824
    %v2853 = vsel %vm2842, %v2851, %v2831
    %v2855 = vsel %vm2845, %v2853, %v2838
    %s2857 = smul.u32 4, 32
    %s2858 = smul.u32 %s2857, 2
    %s2859 = sshll.u32 %s2858, 4
    %2860 = dma.done [#allocation5], %s2859
    %v2861 = vld [vmem:[#allocation2] sm:$0xff]
    %v2862 = vld [vmem:[#allocation2 + $0x8] sm:$0xff]
    %v2863 = vld [vmem:[#allocation2 + $0x10] sm:$0xff]
    %v2864 = vld [vmem:[#allocation2 + $0x18] sm:$0xff]
    %v2865 = vld [vmem:[#allocation2 + $0x20] sm:$0xff]
    %v2866 = vld [vmem:[#allocation2 + $0x28] sm:$0xff]
    %v2867 = vld [vmem:[#allocation2 + $0x30] sm:$0xff]
    %v2868 = vld [vmem:[#allocation2 + $0x38] sm:$0xff]
    %v2869 = vld [vmem:[#allocation2 + $0x40] sm:$0xff]
    %v2870 = vld [vmem:[#allocation2 + $0x48] sm:$0xff]
    %v2871 = vld [vmem:[#allocation2 + $0x50] sm:$0xff]
    %v2872 = vld [vmem:[#allocation2 + $0x58] sm:$0xff]
    %v2873 = vld [vmem:[#allocation2 + $0x60] sm:$0xff]
    %v2874 = vld [vmem:[#allocation2 + $0x68] sm:$0xff]
    %v2875 = vld [vmem:[#allocation2 + $0x70] sm:$0xff]
    %v2876 = vld [vmem:[#allocation2 + $0x78] sm:$0xff]
    %v2877 = vld [vmem:[#allocation2 + $0x80] sm:$0xff]
    %v2878 = vld [vmem:[#allocation2 + $0x88] sm:$0xff]
    %v2879 = vld [vmem:[#allocation2 + $0x90] sm:$0xff]
    %v2880 = vld [vmem:[#allocation2 + $0x98] sm:$0xff]
    %v2881 = vld [vmem:[#allocation2 + $0xa0] sm:$0xff]
    %v2882 = vld [vmem:[#allocation2 + $0xa8] sm:$0xff]
    %v2883 = vld [vmem:[#allocation2 + $0xb0] sm:$0xff]
    %v2884 = vld [vmem:[#allocation2 + $0xb8] sm:$0xff]
    %v2885 = vld [vmem:[#allocation2 + $0xc0] sm:$0xff]
    %v2886 = vld [vmem:[#allocation2 + $0xc8] sm:$0xff]
    %v2887 = vld [vmem:[#allocation2 + $0xd0] sm:$0xff]
    %v2888 = vld [vmem:[#allocation2 + $0xd8] sm:$0xff]
    %v2889 = vld [vmem:[#allocation2 + $0xe0] sm:$0xff]
    %v2890 = vld [vmem:[#allocation2 + $0xe8] sm:$0xff]
    %v2891 = vld [vmem:[#allocation2 + $0xf0] sm:$0xff]
    %v2892 = vld [vmem:[#allocation2 + $0xf8] sm:$0xff]
    %v2893 = vld [vmem:[%s8] sm:$0x3]
    %v2895 = vlaneseq
    %v2896 = vshrl.u32 %v2895, 7
    %v2897 = vsub.s32 0, %v2896
    %v2898 = vrot.slane %v2893, %v2897
    %v2899 = vlaneseq
    %v2900 = vshrl.u32 %v2899, 7
    %v2901 = vsub.s32 1, %v2900
    %v2902 = vrot.slane %v2893, %v2901
    %2905 = vmatprep.subr.bf16.mxu0 %v2862
    %2906 = vmatpush1.bf16.msra.mxu0 %v2861
    %2907 = vmatprep.subr.bf16.mxu0 %v2864
    %2908 = vmatpush1.bf16.msra.mxu0 %v2863
    %2909 = vmatprep.subr.bf16.mxu0 %v2866
    %2910 = vmatpush1.bf16.msra.mxu0 %v2865
    %2911 = vmatprep.subr.bf16.mxu0 %v2868
    %2912 = vmatpush1.bf16.msra.mxu0 %v2867
    %2913 = vmatprep.subr.bf16.mxu0 %v2870
    %2914 = vmatpush1.bf16.msra.mxu0 %v2869
    %2915 = vmatprep.subr.bf16.mxu0 %v2872
    %2916 = vmatpush1.bf16.msra.mxu0 %v2871
    %2917 = vmatprep.subr.bf16.mxu0 %v2874
    %2918 = vmatpush1.bf16.msra.mxu0 %v2873
    %2919 = vmatprep.subr.bf16.mxu0 %v2876
    %2920 = vmatpush1.bf16.msra.mxu0 %v2875
    %2921 = vmatprep.subr.bf16.mxu0 %v2878
    %2922 = vmatpush1.bf16.msra.mxu0 %v2877
    %2923 = vmatprep.subr.bf16.mxu0 %v2880
    %2924 = vmatpush1.bf16.msra.mxu0 %v2879
    %2925 = vmatprep.subr.bf16.mxu0 %v2882
    %2926 = vmatpush1.bf16.msra.mxu0 %v2881
    %2927 = vmatprep.subr.bf16.mxu0 %v2884
    %2928 = vmatpush1.bf16.msra.mxu0 %v2883
    %2929 = vmatprep.subr.bf16.mxu0 %v2886
    %2930 = vmatpush1.bf16.msra.mxu0 %v2885
    %2931 = vmatprep.subr.bf16.mxu0 %v2888
    %2932 = vmatpush1.bf16.msra.mxu0 %v2887
    %2933 = vmatprep.subr.bf16.mxu0 %v2890
    %2934 = vmatpush1.bf16.msra.mxu0 %v2889
    %2935 = vmatprep.subr.bf16.mxu0 %v2892
    %2936 = vmatpush1.bf16.msra.mxu0 %v2891
    %2937 = vmatprep.mubr.bf16.mxu0 %v2855
    %2938 = vmatmul.mubr.bf16.gmra.mrb[0].mxu0 %v2847
    %v2939 = vpop.f32.mrb[0].mxu0
    %v2940 = vadd.f32 %v2898, %v2939
    %v2941 = vpop.f32.mrb[0].mxu0
    %v2942 = vadd.f32 %v2902, %v2941
    %v2943 = vpop.f32.mrb[0].mxu0
    %v2944 = vadd.f32 %v2898, %v2943
    %v2945 = vpop.f32.mrb[0].mxu0
    %v2946 = vadd.f32 %v2902, %v2945
    %2947 = vdwg.mxu0
    %v2948 = vadd.f32 %v158, %v2940
    %v2949 = vadd.f32 %v159, %v2942
    %v2950 = vadd.f32 %v160, %v2944
    %v2951 = vadd.f32 %v161, %v2946
    %v2952 = vld [vmem:[%s3] sm:$0x3]
    %v2953 = vld [vmem:[%s4] sm:$0x3]
    %v2954 = vadd.f32 %v2948, %v2949
    %2955 = vadd.xlane.f32.xlu0 %v2954
    %v2956 = vpop.xlane.xlu0 %2955
    %v2957 = vadd.f32 %v2950, %v2951
    %2958 = vadd.xlane.f32.xlu0 %v2957
    %v2959 = vpop.xlane.xlu0 %2958
    %v2960 = vmul.f32 %v2956, %v170
    %v2961 = vmul.f32 %v2959, %v170
    %v2962 = vmul.f32 %v2948, %v2948
    %v2963 = vmul.f32 %v2949, %v2949
    %v2964 = vmul.f32 %v2950, %v2950
    %v2965 = vmul.f32 %v2951, %v2951
    %v2966 = vadd.f32 %v2962, %v2963
    %2967 = vadd.xlane.f32.xlu0 %v2966
    %v2968 = vpop.xlane.xlu0 %2967
    %v2969 = vadd.f32 %v2964, %v2965
    %2970 = vadd.xlane.f32.xlu0 %v2969
    %v2971 = vpop.xlane.xlu0 %2970
    %v2972 = vmul.f32 %v2968, %v170
    %v2973 = vmul.f32 %v2971, %v170
    %v2974 = vmul.f32 %v2960, %v2960
    %v2975 = vmul.f32 %v2961, %v2961
    %v2976 = vsub.f32 %v2972, %v2974
    %v2977 = vsub.f32 %v2973, %v2975
    %v2978 = vadd.f32 %v2976, 1e-05
    %v2979 = vadd.f32 %v2977, 1e-05
    %v2980 = vrsqrt.pop %v2978
    %v2981 = vrsqrt.pop %v2979
    %v2982 = vsub.f32 %v2948, %v2960
    %v2983 = vsub.f32 %v2949, %v2960
    %v2984 = vsub.f32 %v2950, %v2961
    %v2985 = vsub.f32 %v2951, %v2961
    %v2986 = vmul.f32 %v2982, %v2980
    %v2987 = vmul.f32 %v2983, %v2980
    %v2988 = vmul.f32 %v2984, %v2981
    %v2989 = vmul.f32 %v2985, %v2981
    %v2991 = vlaneseq
    %v2992 = vshrl.u32 %v2991, 7
    %v2993 = vsub.s32 0, %v2992
    %v2994 = vrot.slane %v2952, %v2993
    %v2995 = vlaneseq
    %v2996 = vshrl.u32 %v2995, 7
    %v2997 = vsub.s32 1, %v2996
    %v2998 = vrot.slane %v2952, %v2997
    %v3001 = vmul.f32 %v2986, %v2994
    %v3002 = vmul.f32 %v2987, %v2998
    %v3003 = vmul.f32 %v2988, %v2994
    %v3004 = vmul.f32 %v2989, %v2998
    %v3006 = vlaneseq
    %v3007 = vshrl.u32 %v3006, 7
    %v3008 = vsub.s32 0, %v3007
    %v3009 = vrot.slane %v2953, %v3008
    %v3010 = vlaneseq
    %v3011 = vshrl.u32 %v3010, 7
    %v3012 = vsub.s32 1, %v3011
    %v3013 = vrot.slane %v2953, %v3012
    %v3016 = vadd.f32 %v3001, %v3009
    %v3017 = vadd.f32 %v3002, %v3013
    %v3018 = vadd.f32 %v3003, %v3009
    %v3019 = vadd.f32 %v3004, %v3013
    %v3020 = vpack.c.bf16 %v3018, %v3016
    %v3021 = vpack.c.bf16 %v3019, %v3017
    %s3022 = smul.u32 %s2857, 8
    %s3023 = sshll.u32 %s3022, 4
    %3024 = dma.done %s88, %s3023
    %v3025 = vld [vmem:[#allocation3] sm:$0xff]
    %v3026 = vld [vmem:[#allocation3 + $0x8] sm:$0xff]
    %v3027 = vld [vmem:[#allocation3 + $0x10] sm:$0xff]
    %v3028 = vld [vmem:[#allocation3 + $0x18] sm:$0xff]
    %v3029 = vld [vmem:[#allocation3 + $0x20] sm:$0xff]
    %v3030 = vld [vmem:[#allocation3 + $0x28] sm:$0xff]
    %v3031 = vld [vmem:[#allocation3 + $0x30] sm:$0xff]
    %v3032 = vld [vmem:[#allocation3 + $0x38] sm:$0xff]
    %v3033 = vld [vmem:[#allocation3 + $0x40] sm:$0xff]
    %v3034 = vld [vmem:[#allocation3 + $0x48] sm:$0xff]
    %v3035 = vld [vmem:[#allocation3 + $0x50] sm:$0xff]
    %v3036 = vld [vmem:[#allocation3 + $0x58] sm:$0xff]
    %v3037 = vld [vmem:[#allocation3 + $0x60] sm:$0xff]
    %v3038 = vld [vmem:[#allocation3 + $0x68] sm:$0xff]
    %v3039 = vld [vmem:[#allocation3 + $0x70] sm:$0xff]
    %v3040 = vld [vmem:[#allocation3 + $0x78] sm:$0xff]
    %v3041 = vld [vmem:[#allocation3 + $0x80] sm:$0xff]
    %v3042 = vld [vmem:[#allocation3 + $0x88] sm:$0xff]
    %v3043 = vld [vmem:[#allocation3 + $0x90] sm:$0xff]
    %v3044 = vld [vmem:[#allocation3 + $0x98] sm:$0xff]
    %v3045 = vld [vmem:[#allocation3 + $0xa0] sm:$0xff]
    %v3046 = vld [vmem:[#allocation3 + $0xa8] sm:$0xff]
    %v3047 = vld [vmem:[#allocation3 + $0xb0] sm:$0xff]
    %v3048 = vld [vmem:[#allocation3 + $0xb8] sm:$0xff]
    %v3049 = vld [vmem:[#allocation3 + $0xc0] sm:$0xff]
    %v3050 = vld [vmem:[#allocation3 + $0xc8] sm:$0xff]
    %v3051 = vld [vmem:[#allocation3 + $0xd0] sm:$0xff]
    %v3052 = vld [vmem:[#allocation3 + $0xd8] sm:$0xff]
    %v3053 = vld [vmem:[#allocation3 + $0xe0] sm:$0xff]
    %v3054 = vld [vmem:[#allocation3 + $0xe8] sm:$0xff]
    %v3055 = vld [vmem:[#allocation3 + $0xf0] sm:$0xff]
    %v3056 = vld [vmem:[#allocation3 + $0xf8] sm:$0xff]
    %v3057 = vld [vmem:[#allocation3 + $0x100] sm:$0xff]
    %v3058 = vld [vmem:[#allocation3 + $0x108] sm:$0xff]
    %v3059 = vld [vmem:[#allocation3 + $0x110] sm:$0xff]
    %v3060 = vld [vmem:[#allocation3 + $0x118] sm:$0xff]
    %v3061 = vld [vmem:[#allocation3 + $0x120] sm:$0xff]
    %v3062 = vld [vmem:[#allocation3 + $0x128] sm:$0xff]
    %v3063 = vld [vmem:[#allocation3 + $0x130] sm:$0xff]
    %v3064 = vld [vmem:[#allocation3 + $0x138] sm:$0xff]
    %v3065 = vld [vmem:[#allocation3 + $0x140] sm:$0xff]
    %v3066 = vld [vmem:[#allocation3 + $0x148] sm:$0xff]
    %v3067 = vld [vmem:[#allocation3 + $0x150] sm:$0xff]
    %v3068 = vld [vmem:[#allocation3 + $0x158] sm:$0xff]
    %v3069 = vld [vmem:[#allocation3 + $0x160] sm:$0xff]
    %v3070 = vld [vmem:[#allocation3 + $0x168] sm:$0xff]
    %v3071 = vld [vmem:[#allocation3 + $0x170] sm:$0xff]
    %v3072 = vld [vmem:[#allocation3 + $0x178] sm:$0xff]
    %v3073 = vld [vmem:[#allocation3 + $0x180] sm:$0xff]
    %v3074 = vld [vmem:[#allocation3 + $0x188] sm:$0xff]
    %v3075 = vld [vmem:[#allocation3 + $0x190] sm:$0xff]
    %v3076 = vld [vmem:[#allocation3 + $0x198] sm:$0xff]
    %v3077 = vld [vmem:[#allocation3 + $0x1a0] sm:$0xff]
    %v3078 = vld [vmem:[#allocation3 + $0x1a8] sm:$0xff]
    %v3079 = vld [vmem:[#allocation3 + $0x1b0] sm:$0xff]
    %v3080 = vld [vmem:[#allocation3 + $0x1b8] sm:$0xff]
    %v3081 = vld [vmem:[#allocation3 + $0x1c0] sm:$0xff]
    %v3082 = vld [vmem:[#allocation3 + $0x1c8] sm:$0xff]
    %v3083 = vld [vmem:[#allocation3 + $0x1d0] sm:$0xff]
    %v3084 = vld [vmem:[#allocation3 + $0x1d8] sm:$0xff]
    %v3085 = vld [vmem:[#allocation3 + $0x1e0] sm:$0xff]
    %v3086 = vld [vmem:[#allocation3 + $0x1e8] sm:$0xff]
    %v3087 = vld [vmem:[#allocation3 + $0x1f0] sm:$0xff]
    %v3088 = vld [vmem:[#allocation3 + $0x1f8] sm:$0xff]
    %v3089 = vld [vmem:[#allocation3 + $0x200] sm:$0xff]
    %v3090 = vld [vmem:[#allocation3 + $0x208] sm:$0xff]
    %v3091 = vld [vmem:[#allocation3 + $0x210] sm:$0xff]
    %v3092 = vld [vmem:[#allocation3 + $0x218] sm:$0xff]
    %v3093 = vld [vmem:[#allocation3 + $0x220] sm:$0xff]
    %v3094 = vld [vmem:[#allocation3 + $0x228] sm:$0xff]
    %v3095 = vld [vmem:[#allocation3 + $0x230] sm:$0xff]
    %v3096 = vld [vmem:[#allocation3 + $0x238] sm:$0xff]
    %v3097 = vld [vmem:[#allocation3 + $0x240] sm:$0xff]
    %v3098 = vld [vmem:[#allocation3 + $0x248] sm:$0xff]
    %v3099 = vld [vmem:[#allocation3 + $0x250] sm:$0xff]
    %v3100 = vld [vmem:[#allocation3 + $0x258] sm:$0xff]
    %v3101 = vld [vmem:[#allocation3 + $0x260] sm:$0xff]
    %v3102 = vld [vmem:[#allocation3 + $0x268] sm:$0xff]
    %v3103 = vld [vmem:[#allocation3 + $0x270] sm:$0xff]
    %v3104 = vld [vmem:[#allocation3 + $0x278] sm:$0xff]
    %v3105 = vld [vmem:[#allocation3 + $0x280] sm:$0xff]
    %v3106 = vld [vmem:[#allocation3 + $0x288] sm:$0xff]
    %v3107 = vld [vmem:[#allocation3 + $0x290] sm:$0xff]
    %v3108 = vld [vmem:[#allocation3 + $0x298] sm:$0xff]
    %v3109 = vld [vmem:[#allocation3 + $0x2a0] sm:$0xff]
    %v3110 = vld [vmem:[#allocation3 + $0x2a8] sm:$0xff]
    %v3111 = vld [vmem:[#allocation3 + $0x2b0] sm:$0xff]
    %v3112 = vld [vmem:[#allocation3 + $0x2b8] sm:$0xff]
    %v3113 = vld [vmem:[#allocation3 + $0x2c0] sm:$0xff]
    %v3114 = vld [vmem:[#allocation3 + $0x2c8] sm:$0xff]
    %v3115 = vld [vmem:[#allocation3 + $0x2d0] sm:$0xff]
    %v3116 = vld [vmem:[#allocation3 + $0x2d8] sm:$0xff]
    %v3117 = vld [vmem:[#allocation3 + $0x2e0] sm:$0xff]
    %v3118 = vld [vmem:[#allocation3 + $0x2e8] sm:$0xff]
    %v3119 = vld [vmem:[#allocation3 + $0x2f0] sm:$0xff]
    %v3120 = vld [vmem:[#allocation3 + $0x2f8] sm:$0xff]
    %v3121 = vld [vmem:[#allocation3 + $0x300] sm:$0xff]
    %v3122 = vld [vmem:[#allocation3 + $0x308] sm:$0xff]
    %v3123 = vld [vmem:[#allocation3 + $0x310] sm:$0xff]
    %v3124 = vld [vmem:[#allocation3 + $0x318] sm:$0xff]
    %v3125 = vld [vmem:[#allocation3 + $0x320] sm:$0xff]
    %v3126 = vld [vmem:[#allocation3 + $0x328] sm:$0xff]
    %v3127 = vld [vmem:[#allocation3 + $0x330] sm:$0xff]
    %v3128 = vld [vmem:[#allocation3 + $0x338] sm:$0xff]
    %v3129 = vld [vmem:[#allocation3 + $0x340] sm:$0xff]
    %v3130 = vld [vmem:[#allocation3 + $0x348] sm:$0xff]
    %v3131 = vld [vmem:[#allocation3 + $0x350] sm:$0xff]
    %v3132 = vld [vmem:[#allocation3 + $0x358] sm:$0xff]
    %v3133 = vld [vmem:[#allocation3 + $0x360] sm:$0xff]
    %v3134 = vld [vmem:[#allocation3 + $0x368] sm:$0xff]
    %v3135 = vld [vmem:[#allocation3 + $0x370] sm:$0xff]
    %v3136 = vld [vmem:[#allocation3 + $0x378] sm:$0xff]
    %v3137 = vld [vmem:[#allocation3 + $0x380] sm:$0xff]
    %v3138 = vld [vmem:[#allocation3 + $0x388] sm:$0xff]
    %v3139 = vld [vmem:[#allocation3 + $0x390] sm:$0xff]
    %v3140 = vld [vmem:[#allocation3 + $0x398] sm:$0xff]
    %v3141 = vld [vmem:[#allocation3 + $0x3a0] sm:$0xff]
    %v3142 = vld [vmem:[#allocation3 + $0x3a8] sm:$0xff]
    %v3143 = vld [vmem:[#allocation3 + $0x3b0] sm:$0xff]
    %v3144 = vld [vmem:[#allocation3 + $0x3b8] sm:$0xff]
    %v3145 = vld [vmem:[#allocation3 + $0x3c0] sm:$0xff]
    %v3146 = vld [vmem:[#allocation3 + $0x3c8] sm:$0xff]
    %v3147 = vld [vmem:[#allocation3 + $0x3d0] sm:$0xff]
    %v3148 = vld [vmem:[#allocation3 + $0x3d8] sm:$0xff]
    %v3149 = vld [vmem:[#allocation3 + $0x3e0] sm:$0xff]
    %v3150 = vld [vmem:[#allocation3 + $0x3e8] sm:$0xff]
    %v3151 = vld [vmem:[#allocation3 + $0x3f0] sm:$0xff]
    %v3152 = vld [vmem:[#allocation3 + $0x3f8] sm:$0xff]
    %v3153 = vld [vmem:[%s10] sm:$0xff]
    %v3155 = vlaneseq
    %v3156 = vshrl.u32 %v3155, 7
    %v3157 = vsub.s32 0, %v3156
    %v3158 = vrot.slane %v3153, %v3157
    %v3159 = vlaneseq
    %v3160 = vshrl.u32 %v3159, 7
    %v3161 = vsub.s32 1, %v3160
    %v3162 = vrot.slane %v3153, %v3161
    %v3163 = vlaneseq
    %v3164 = vshrl.u32 %v3163, 7
    %v3165 = vsub.s32 2, %v3164
    %v3166 = vrot.slane %v3153, %v3165
    %v3167 = vlaneseq
    %v3168 = vshrl.u32 %v3167, 7
    %v3169 = vsub.s32 3, %v3168
    %v3170 = vrot.slane %v3153, %v3169
    %v3171 = vlaneseq
    %v3172 = vshrl.u32 %v3171, 7
    %v3173 = vsub.s32 4, %v3172
    %v3174 = vrot.slane %v3153, %v3173
    %v3175 = vlaneseq
    %v3176 = vshrl.u32 %v3175, 7
    %v3177 = vsub.s32 5, %v3176
    %v3178 = vrot.slane %v3153, %v3177
    %v3179 = vlaneseq
    %v3180 = vshrl.u32 %v3179, 7
    %v3181 = vsub.s32 6, %v3180
    %v3182 = vrot.slane %v3153, %v3181
    %v3183 = vlaneseq
    %v3184 = vshrl.u32 %v3183, 7
    %v3185 = vsub.s32 7, %v3184
    %v3186 = vrot.slane %v3153, %v3185
    %3195 = vmatprep.subr.bf16.mxu0 %v3026
    %3196 = vmatpush1.bf16.msra.mxu0 %v3025
    %3197 = vmatprep.subr.bf16.mxu0 %v3034
    %3198 = vmatpush1.bf16.msra.mxu0 %v3033
    %3199 = vmatprep.subr.bf16.mxu0 %v3042
    %3200 = vmatpush1.bf16.msra.mxu0 %v3041
    %3201 = vmatprep.subr.bf16.mxu0 %v3050
    %3202 = vmatpush1.bf16.msra.mxu0 %v3049
    %3203 = vmatprep.subr.bf16.mxu0 %v3058
    %3204 = vmatpush1.bf16.msra.mxu0 %v3057
    %3205 = vmatprep.subr.bf16.mxu0 %v3066
    %3206 = vmatpush1.bf16.msra.mxu0 %v3065
    %3207 = vmatprep.subr.bf16.mxu0 %v3074
    %3208 = vmatpush1.bf16.msra.mxu0 %v3073
    %3209 = vmatprep.subr.bf16.mxu0 %v3082
    %3210 = vmatpush1.bf16.msra.mxu0 %v3081
    %3211 = vmatprep.subr.bf16.mxu0 %v3090
    %3212 = vmatpush1.bf16.msra.mxu0 %v3089
    %3213 = vmatprep.subr.bf16.mxu0 %v3098
    %3214 = vmatpush1.bf16.msra.mxu0 %v3097
    %3215 = vmatprep.subr.bf16.mxu0 %v3106
    %3216 = vmatpush1.bf16.msra.mxu0 %v3105
    %3217 = vmatprep.subr.bf16.mxu0 %v3114
    %3218 = vmatpush1.bf16.msra.mxu0 %v3113
    %3219 = vmatprep.subr.bf16.mxu0 %v3122
    %3220 = vmatpush1.bf16.msra.mxu0 %v3121
    %3221 = vmatprep.subr.bf16.mxu0 %v3130
    %3222 = vmatpush1.bf16.msra.mxu0 %v3129
    %3223 = vmatprep.subr.bf16.mxu0 %v3138
    %3224 = vmatpush1.bf16.msra.mxu0 %v3137
    %3225 = vmatprep.subr.bf16.mxu0 %v3146
    %3226 = vmatpush1.bf16.msra.mxu0 %v3145
    %3227 = vmatprep.mubr.bf16.mxu0 %v3021
    %3228 = vmatmul.mubr.bf16.gmra.mrb[0].mxu0 %v3020
    %v3229 = vpop.f32.mrb[0].mxu0
    %v3230 = vadd.f32 %v3158, %v3229
    %v3231 = vpop.f32.mrb[0].mxu0
    %v3232 = vadd.f32 %v3162, %v3231
    %v3233 = vpop.f32.mrb[0].mxu0
    %v3234 = vadd.f32 %v3158, %v3233
    %v3235 = vpop.f32.mrb[0].mxu0
    %v3236 = vadd.f32 %v3162, %v3235
    %3237 = vdwg.mxu0
    %3238 = vmatprep.subr.bf16.mxu0 %v3028
    %3239 = vmatpush1.bf16.msra.mxu0 %v3027
    %3240 = vmatprep.subr.bf16.mxu0 %v3036
    %3241 = vmatpush1.bf16.msra.mxu0 %v3035
    %3242 = vmatprep.subr.bf16.mxu0 %v3044
    %3243 = vmatpush1.bf16.msra.mxu0 %v3043
    %3244 = vmatprep.subr.bf16.mxu0 %v3052
    %3245 = vmatpush1.bf16.msra.mxu0 %v3051
    %3246 = vmatprep.subr.bf16.mxu0 %v3060
    %3247 = vmatpush1.bf16.msra.mxu0 %v3059
    %3248 = vmatprep.subr.bf16.mxu0 %v3068
    %3249 = vmatpush1.bf16.msra.mxu0 %v3067
    %3250 = vmatprep.subr.bf16.mxu0 %v3076
    %3251 = vmatpush1.bf16.msra.mxu0 %v3075
    %3252 = vmatprep.subr.bf16.mxu0 %v3084
    %3253 = vmatpush1.bf16.msra.mxu0 %v3083
    %3254 = vmatprep.subr.bf16.mxu0 %v3092
    %3255 = vmatpush1.bf16.msra.mxu0 %v3091
    %3256 = vmatprep.subr.bf16.mxu0 %v3100
    %3257 = vmatpush1.bf16.msra.mxu0 %v3099
    %3258 = vmatprep.subr.bf16.mxu0 %v3108
    %3259 = vmatpush1.bf16.msra.mxu0 %v3107
    %3260 = vmatprep.subr.bf16.mxu0 %v3116
    %3261 = vmatpush1.bf16.msra.mxu0 %v3115
    %3262 = vmatprep.subr.bf16.mxu0 %v3124
    %3263 = vmatpush1.bf16.msra.mxu0 %v3123
    %3264 = vmatprep.subr.bf16.mxu0 %v3132
    %3265 = vmatpush1.bf16.msra.mxu0 %v3131
    %3266 = vmatprep.subr.bf16.mxu0 %v3140
    %3267 = vmatpush1.bf16.msra.mxu0 %v3139
    %3268 = vmatprep.subr.bf16.mxu0 %v3148
    %3269 = vmatpush1.bf16.msra.mxu0 %v3147
    %3270 = vmatprep.mubr.bf16.mxu0 %v3021
    %3271 = vmatmul.mubr.bf16.gmra.mrb[0].mxu0 %v3020
    %v3272 = vpop.f32.mrb[0].mxu0
    %v3273 = vadd.f32 %v3166, %v3272
    %v3274 = vpop.f32.mrb[0].mxu0
    %v3275 = vadd.f32 %v3170, %v3274
    %v3276 = vpop.f32.mrb[0].mxu0
    %v3277 = vadd.f32 %v3166, %v3276
    %v3278 = vpop.f32.mrb[0].mxu0
    %v3279 = vadd.f32 %v3170, %v3278
    %3280 = vdwg.mxu0
    %3281 = vmatprep.subr.bf16.mxu0 %v3030
    %3282 = vmatpush1.bf16.msra.mxu0 %v3029
    %3283 = vmatprep.subr.bf16.mxu0 %v3038
    %3284 = vmatpush1.bf16.msra.mxu0 %v3037
    %3285 = vmatprep.subr.bf16.mxu0 %v3046
    %3286 = vmatpush1.bf16.msra.mxu0 %v3045
    %3287 = vmatprep.subr.bf16.mxu0 %v3054
    %3288 = vmatpush1.bf16.msra.mxu0 %v3053
    %3289 = vmatprep.subr.bf16.mxu0 %v3062
    %3290 = vmatpush1.bf16.msra.mxu0 %v3061
    %3291 = vmatprep.subr.bf16.mxu0 %v3070
    %3292 = vmatpush1.bf16.msra.mxu0 %v3069
    %3293 = vmatprep.subr.bf16.mxu0 %v3078
    %3294 = vmatpush1.bf16.msra.mxu0 %v3077
    %3295 = vmatprep.subr.bf16.mxu0 %v3086
    %3296 = vmatpush1.bf16.msra.mxu0 %v3085
    %3297 = vmatprep.subr.bf16.mxu0 %v3094
    %3298 = vmatpush1.bf16.msra.mxu0 %v3093
    %3299 = vmatprep.subr.bf16.mxu0 %v3102
    %3300 = vmatpush1.bf16.msra.mxu0 %v3101
    %3301 = vmatprep.subr.bf16.mxu0 %v3110
    %3302 = vmatpush1.bf16.msra.mxu0 %v3109
    %3303 = vmatprep.subr.bf16.mxu0 %v3118
    %3304 = vmatpush1.bf16.msra.mxu0 %v3117
    %3305 = vmatprep.subr.bf16.mxu0 %v3126
    %3306 = vmatpush1.bf16.msra.mxu0 %v3125
    %3307 = vmatprep.subr.bf16.mxu0 %v3134
    %3308 = vmatpush1.bf16.msra.mxu0 %v3133
    %3309 = vmatprep.subr.bf16.mxu0 %v3142
    %3310 = vmatpush1.bf16.msra.mxu0 %v3141
    %3311 = vmatprep.subr.bf16.mxu0 %v3150
    %3312 = vmatpush1.bf16.msra.mxu0 %v3149
    %3313 = vmatprep.mubr.bf16.mxu0 %v3021
    %3314 = vmatmul.mubr.bf16.gmra.mrb[0].mxu0 %v3020
    %v3315 = vpop.f32.mrb[0].mxu0
    %v3316 = vadd.f32 %v3174, %v3315
    %v3317 = vpop.f32.mrb[0].mxu0
    %v3318 = vadd.f32 %v3178, %v3317
    %v3319 = vpop.f32.mrb[0].mxu0
    %v3320 = vadd.f32 %v3174, %v3319
    %v3321 = vpop.f32.mrb[0].mxu0
    %v3322 = vadd.f32 %v3178, %v3321
    %3323 = vdwg.mxu0
    %3324 = vmatprep.subr.bf16.mxu0 %v3032
    %3325 = vmatpush1.bf16.msra.mxu0 %v3031
    %3326 = vmatprep.subr.bf16.mxu0 %v3040
    %3327 = vmatpush1.bf16.msra.mxu0 %v3039
    %3328 = vmatprep.subr.bf16.mxu0 %v3048
    %3329 = vmatpush1.bf16.msra.mxu0 %v3047
    %3330 = vmatprep.subr.bf16.mxu0 %v3056
    %3331 = vmatpush1.bf16.msra.mxu0 %v3055
    %3332 = vmatprep.subr.bf16.mxu0 %v3064
    %3333 = vmatpush1.bf16.msra.mxu0 %v3063
    %3334 = vmatprep.subr.bf16.mxu0 %v3072
    %3335 = vmatpush1.bf16.msra.mxu0 %v3071
    %3336 = vmatprep.subr.bf16.mxu0 %v3080
    %3337 = vmatpush1.bf16.msra.mxu0 %v3079
    %3338 = vmatprep.subr.bf16.mxu0 %v3088
    %3339 = vmatpush1.bf16.msra.mxu0 %v3087
    %3340 = vmatprep.subr.bf16.mxu0 %v3096
    %3341 = vmatpush1.bf16.msra.mxu0 %v3095
    %3342 = vmatprep.subr.bf16.mxu0 %v3104
    %3343 = vmatpush1.bf16.msra.mxu0 %v3103
    %3344 = vmatprep.subr.bf16.mxu0 %v3112
    %3345 = vmatpush1.bf16.msra.mxu0 %v3111
    %3346 = vmatprep.subr.bf16.mxu0 %v3120
    %3347 = vmatpush1.bf16.msra.mxu0 %v3119
    %3348 = vmatprep.subr.bf16.mxu0 %v3128
    %3349 = vmatpush1.bf16.msra.mxu0 %v3127
    %3350 = vmatprep.subr.bf16.mxu0 %v3136
    %3351 = vmatpush1.bf16.msra.mxu0 %v3135
    %3352 = vmatprep.subr.bf16.mxu0 %v3144
    %3353 = vmatpush1.bf16.msra.mxu0 %v3143
    %3354 = vmatprep.subr.bf16.mxu0 %v3152
    %3355 = vmatpush1.bf16.msra.mxu0 %v3151
    %3356 = vmatprep.mubr.bf16.mxu0 %v3021
    %3357 = vmatmul.mubr.bf16.gmra.mrb[0].mxu0 %v3020
    %v3358 = vpop.f32.mrb[0].mxu0
    %v3359 = vadd.f32 %v3182, %v3358
    %v3360 = vpop.f32.mrb[0].mxu0
    %v3361 = vadd.f32 %v3186, %v3360
    %v3362 = vpop.f32.mrb[0].mxu0
    %v3363 = vadd.f32 %v3182, %v3362
    %v3364 = vpop.f32.mrb[0].mxu0
    %v3365 = vadd.f32 %v3186, %v3364
    %3366 = vdwg.mxu0
    %v3367 = vmul.f32 %v3230, 0.5
    %v3368 = vmul.f32 %v3232, 0.5
    %v3369 = vmul.f32 %v3273, 0.5
    %v3370 = vmul.f32 %v3275, 0.5
    %v3371 = vmul.f32 %v3316, 0.5
    %v3372 = vmul.f32 %v3318, 0.5
    %v3373 = vmul.f32 %v3359, 0.5
    %v3374 = vmul.f32 %v3361, 0.5
    %v3375 = vmul.f32 %v3234, 0.5
    %v3376 = vmul.f32 %v3236, 0.5
    %v3377 = vmul.f32 %v3277, 0.5
    %v3378 = vmul.f32 %v3279, 0.5
    %v3379 = vmul.f32 %v3320, 0.5
    %v3380 = vmul.f32 %v3322, 0.5
    %v3381 = vmul.f32 %v3363, 0.5
    %v3382 = vmul.f32 %v3365, 0.5
    %v3383 = vmul.f32 %v3230, 0.70710677
    %v3384 = vmul.f32 %v3232, 0.70710677
    %v3385 = vmul.f32 %v3273, 0.70710677
    %v3386 = vmul.f32 %v3275, 0.70710677
    %v3387 = vmul.f32 %v3316, 0.70710677
    %v3388 = vmul.f32 %v3318, 0.70710677
    %v3389 = vmul.f32 %v3359, 0.70710677
    %v3390 = vmul.f32 %v3361, 0.70710677
    %v3391 = vmul.f32 %v3234, 0.70710677
    %v3392 = vmul.f32 %v3236, 0.70710677
    %v3393 = vmul.f32 %v3277, 0.70710677
    %v3394 = vmul.f32 %v3279, 0.70710677
    %v3395 = vmul.f32 %v3320, 0.70710677
    %v3396 = vmul.f32 %v3322, 0.70710677
    %v3397 = vmul.f32 %v3363, 0.70710677
    %v3398 = vmul.f32 %v3365, 0.70710677
    %v3399 = verf.f32.pop %v3383
    %v3400 = verf.f32.pop %v3384
    %v3401 = verf.f32.pop %v3385
    %v3402 = verf.f32.pop %v3386
    %v3403 = verf.f32.pop %v3387
    %v3404 = verf.f32.pop %v3388
    %v3405 = verf.f32.pop %v3389
    %v3406 = verf.f32.pop %v3390
    %v3407 = verf.f32.pop %v3391
    %v3408 = verf.f32.pop %v3392
    %v3409 = verf.f32.pop %v3393
    %v3410 = verf.f32.pop %v3394
    %v3411 = verf.f32.pop %v3395
    %v3412 = verf.f32.pop %v3396
    %v3413 = verf.f32.pop %v3397
    %v3414 = verf.f32.pop %v3398
    %v3415 = vadd.f32 %v3399, 1.0
    %v3416 = vadd.f32 %v3400, 1.0
    %v3417 = vadd.f32 %v3401, 1.0
    %v3418 = vadd.f32 %v3402, 1.0
    %v3419 = vadd.f32 %v3403, 1.0
    %v3420 = vadd.f32 %v3404, 1.0
    %v3421 = vadd.f32 %v3405, 1.0
    %v3422 = vadd.f32 %v3406, 1.0
    %v3423 = vadd.f32 %v3407, 1.0
    %v3424 = vadd.f32 %v3408, 1.0
    %v3425 = vadd.f32 %v3409, 1.0
    %v3426 = vadd.f32 %v3410, 1.0
    %v3427 = vadd.f32 %v3411, 1.0
    %v3428 = vadd.f32 %v3412, 1.0
    %v3429 = vadd.f32 %v3413, 1.0
    %v3430 = vadd.f32 %v3414, 1.0
    %v3431 = vmul.f32 %v3367, %v3415
    %v3432 = vmul.f32 %v3368, %v3416
    %v3433 = vmul.f32 %v3369, %v3417
    %v3434 = vmul.f32 %v3370, %v3418
    %v3435 = vmul.f32 %v3371, %v3419
    %v3436 = vmul.f32 %v3372, %v3420
    %v3437 = vmul.f32 %v3373, %v3421
    %v3438 = vmul.f32 %v3374, %v3422
    %v3439 = vmul.f32 %v3375, %v3423
    %v3440 = vmul.f32 %v3376, %v3424
    %v3441 = vmul.f32 %v3377, %v3425
    %v3442 = vmul.f32 %v3378, %v3426
    %v3443 = vmul.f32 %v3379, %v3427
    %v3444 = vmul.f32 %v3380, %v3428
    %v3445 = vmul.f32 %v3381, %v3429
    %v3446 = vmul.f32 %v3382, %v3430
    %s3447 = smul.u32 4, 128
    %s3448 = smul.u32 %s3447, 2
    %s3449 = sshll.u32 %s3448, 4
    %3450 = dma.done %s123, %s3449
    %v3451 = vpack.c.bf16 %v3439, %v3431
    %v3452 = vpack.c.bf16 %v3440, %v3432
    %v3453 = vpack.c.bf16 %v3441, %v3433
    %v3454 = vpack.c.bf16 %v3442, %v3434
    %v3455 = vpack.c.bf16 %v3443, %v3435
    %v3456 = vpack.c.bf16 %v3444, %v3436
    %v3457 = vpack.c.bf16 %v3445, %v3437
    %v3458 = vpack.c.bf16 %v3446, %v3438
    %v3459 = vld [vmem:[#allocation4] sm:$0xff]
    %v3460 = vld [vmem:[#allocation4 + $0x8] sm:$0xff]
    %v3461 = vld [vmem:[#allocation4 + $0x10] sm:$0xff]
    %v3462 = vld [vmem:[#allocation4 + $0x18] sm:$0xff]
    %v3463 = vld [vmem:[#allocation4 + $0x20] sm:$0xff]
    %v3464 = vld [vmem:[#allocation4 + $0x28] sm:$0xff]
    %v3465 = vld [vmem:[#allocation4 + $0x30] sm:$0xff]
    %v3466 = vld [vmem:[#allocation4 + $0x38] sm:$0xff]
    %v3467 = vld [vmem:[#allocation4 + $0x40] sm:$0xff]
    %v3468 = vld [vmem:[#allocation4 + $0x48] sm:$0xff]
    %v3469 = vld [vmem:[#allocation4 + $0x50] sm:$0xff]
    %v3470 = vld [vmem:[#allocation4 + $0x58] sm:$0xff]
    %v3471 = vld [vmem:[#allocation4 + $0x60] sm:$0xff]
    %v3472 = vld [vmem:[#allocation4 + $0x68] sm:$0xff]
    %v3473 = vld [vmem:[#allocation4 + $0x70] sm:$0xff]
    %v3474 = vld [vmem:[#allocation4 + $0x78] sm:$0xff]
    %v3475 = vld [vmem:[#allocation4 + $0x80] sm:$0xff]
    %v3476 = vld [vmem:[#allocation4 + $0x88] sm:$0xff]
    %v3477 = vld [vmem:[#allocation4 + $0x90] sm:$0xff]
    %v3478 = vld [vmem:[#allocation4 + $0x98] sm:$0xff]
    %v3479 = vld [vmem:[#allocation4 + $0xa0] sm:$0xff]
    %v3480 = vld [vmem:[#allocation4 + $0xa8] sm:$0xff]
    %v3481 = vld [vmem:[#allocation4 + $0xb0] sm:$0xff]
    %v3482 = vld [vmem:[#allocation4 + $0xb8] sm:$0xff]
    %v3483 = vld [vmem:[#allocation4 + $0xc0] sm:$0xff]
    %v3484 = vld [vmem:[#allocation4 + $0xc8] sm:$0xff]
    %v3485 = vld [vmem:[#allocation4 + $0xd0] sm:$0xff]
    %v3486 = vld [vmem:[#allocation4 + $0xd8] sm:$0xff]
    %v3487 = vld [vmem:[#allocation4 + $0xe0] sm:$0xff]
    %v3488 = vld [vmem:[#allocation4 + $0xe8] sm:$0xff]
    %v3489 = vld [vmem:[#allocation4 + $0xf0] sm:$0xff]
    %v3490 = vld [vmem:[#allocation4 + $0xf8] sm:$0xff]
    %v3491 = vld [vmem:[#allocation4 + $0x100] sm:$0xff]
    %v3492 = vld [vmem:[#allocation4 + $0x108] sm:$0xff]
    %v3493 = vld [vmem:[#allocation4 + $0x110] sm:$0xff]
    %v3494 = vld [vmem:[#allocation4 + $0x118] sm:$0xff]
    %v3495 = vld [vmem:[#allocation4 + $0x120] sm:$0xff]
    %v3496 = vld [vmem:[#allocation4 + $0x128] sm:$0xff]
    %v3497 = vld [vmem:[#allocation4 + $0x130] sm:$0xff]
    %v3498 = vld [vmem:[#allocation4 + $0x138] sm:$0xff]
    %v3499 = vld [vmem:[#allocation4 + $0x140] sm:$0xff]
    %v3500 = vld [vmem:[#allocation4 + $0x148] sm:$0xff]
    %v3501 = vld [vmem:[#allocation4 + $0x150] sm:$0xff]
    %v3502 = vld [vmem:[#allocation4 + $0x158] sm:$0xff]
    %v3503 = vld [vmem:[#allocation4 + $0x160] sm:$0xff]
    %v3504 = vld [vmem:[#allocation4 + $0x168] sm:$0xff]
    %v3505 = vld [vmem:[#allocation4 + $0x170] sm:$0xff]
    %v3506 = vld [vmem:[#allocation4 + $0x178] sm:$0xff]
    %v3507 = vld [vmem:[#allocation4 + $0x180] sm:$0xff]
    %v3508 = vld [vmem:[#allocation4 + $0x188] sm:$0xff]
    %v3509 = vld [vmem:[#allocation4 + $0x190] sm:$0xff]
    %v3510 = vld [vmem:[#allocation4 + $0x198] sm:$0xff]
    %v3511 = vld [vmem:[#allocation4 + $0x1a0] sm:$0xff]
    %v3512 = vld [vmem:[#allocation4 + $0x1a8] sm:$0xff]
    %v3513 = vld [vmem:[#allocation4 + $0x1b0] sm:$0xff]
    %v3514 = vld [vmem:[#allocation4 + $0x1b8] sm:$0xff]
    %v3515 = vld [vmem:[#allocation4 + $0x1c0] sm:$0xff]
    %v3516 = vld [vmem:[#allocation4 + $0x1c8] sm:$0xff]
    %v3517 = vld [vmem:[#allocation4 + $0x1d0] sm:$0xff]
    %v3518 = vld [vmem:[#allocation4 + $0x1d8] sm:$0xff]
    %v3519 = vld [vmem:[#allocation4 + $0x1e0] sm:$0xff]
    %v3520 = vld [vmem:[#allocation4 + $0x1e8] sm:$0xff]
    %v3521 = vld [vmem:[#allocation4 + $0x1f0] sm:$0xff]
    %v3522 = vld [vmem:[#allocation4 + $0x1f8] sm:$0xff]
    %v3523 = vld [vmem:[#allocation4 + $0x200] sm:$0xff]
    %v3524 = vld [vmem:[#allocation4 + $0x208] sm:$0xff]
    %v3525 = vld [vmem:[#allocation4 + $0x210] sm:$0xff]
    %v3526 = vld [vmem:[#allocation4 + $0x218] sm:$0xff]
    %v3527 = vld [vmem:[#allocation4 + $0x220] sm:$0xff]
    %v3528 = vld [vmem:[#allocation4 + $0x228] sm:$0xff]
    %v3529 = vld [vmem:[#allocation4 + $0x230] sm:$0xff]
    %v3530 = vld [vmem:[#allocation4 + $0x238] sm:$0xff]
    %v3531 = vld [vmem:[#allocation4 + $0x240] sm:$0xff]
    %v3532 = vld [vmem:[#allocation4 + $0x248] sm:$0xff]
    %v3533 = vld [vmem:[#allocation4 + $0x250] sm:$0xff]
    %v3534 = vld [vmem:[#allocation4 + $0x258] sm:$0xff]
    %v3535 = vld [vmem:[#allocation4 + $0x260] sm:$0xff]
    %v3536 = vld [vmem:[#allocation4 + $0x268] sm:$0xff]
    %v3537 = vld [vmem:[#allocation4 + $0x270] sm:$0xff]
    %v3538 = vld [vmem:[#allocation4 + $0x278] sm:$0xff]
    %v3539 = vld [vmem:[#allocation4 + $0x280] sm:$0xff]
    %v3540 = vld [vmem:[#allocation4 + $0x288] sm:$0xff]
    %v3541 = vld [vmem:[#allocation4 + $0x290] sm:$0xff]
    %v3542 = vld [vmem:[#allocation4 + $0x298] sm:$0xff]
    %v3543 = vld [vmem:[#allocation4 + $0x2a0] sm:$0xff]
    %v3544 = vld [vmem:[#allocation4 + $0x2a8] sm:$0xff]
    %v3545 = vld [vmem:[#allocation4 + $0x2b0] sm:$0xff]
    %v3546 = vld [vmem:[#allocation4 + $0x2b8] sm:$0xff]
    %v3547 = vld [vmem:[#allocation4 + $0x2c0] sm:$0xff]
    %v3548 = vld [vmem:[#allocation4 + $0x2c8] sm:$0xff]
    %v3549 = vld [vmem:[#allocation4 + $0x2d0] sm:$0xff]
    %v3550 = vld [vmem:[#allocation4 + $0x2d8] sm:$0xff]
    %v3551 = vld [vmem:[#allocation4 + $0x2e0] sm:$0xff]
    %v3552 = vld [vmem:[#allocation4 + $0x2e8] sm:$0xff]
    %v3553 = vld [vmem:[#allocation4 + $0x2f0] sm:$0xff]
    %v3554 = vld [vmem:[#allocation4 + $0x2f8] sm:$0xff]
    %v3555 = vld [vmem:[#allocation4 + $0x300] sm:$0xff]
    %v3556 = vld [vmem:[#allocation4 + $0x308] sm:$0xff]
    %v3557 = vld [vmem:[#allocation4 + $0x310] sm:$0xff]
    %v3558 = vld [vmem:[#allocation4 + $0x318] sm:$0xff]
    %v3559 = vld [vmem:[#allocation4 + $0x320] sm:$0xff]
    %v3560 = vld [vmem:[#allocation4 + $0x328] sm:$0xff]
    %v3561 = vld [vmem:[#allocation4 + $0x330] sm:$0xff]
    %v3562 = vld [vmem:[#allocation4 + $0x338] sm:$0xff]
    %v3563 = vld [vmem:[#allocation4 + $0x340] sm:$0xff]
    %v3564 = vld [vmem:[#allocation4 + $0x348] sm:$0xff]
    %v3565 = vld [vmem:[#allocation4 + $0x350] sm:$0xff]
    %v3566 = vld [vmem:[#allocation4 + $0x358] sm:$0xff]
    %v3567 = vld [vmem:[#allocation4 + $0x360] sm:$0xff]
    %v3568 = vld [vmem:[#allocation4 + $0x368] sm:$0xff]
    %v3569 = vld [vmem:[#allocation4 + $0x370] sm:$0xff]
    %v3570 = vld [vmem:[#allocation4 + $0x378] sm:$0xff]
    %v3571 = vld [vmem:[#allocation4 + $0x380] sm:$0xff]
    %v3572 = vld [vmem:[#allocation4 + $0x388] sm:$0xff]
    %v3573 = vld [vmem:[#allocation4 + $0x390] sm:$0xff]
    %v3574 = vld [vmem:[#allocation4 + $0x398] sm:$0xff]
    %v3575 = vld [vmem:[#allocation4 + $0x3a0] sm:$0xff]
    %v3576 = vld [vmem:[#allocation4 + $0x3a8] sm:$0xff]
    %v3577 = vld [vmem:[#allocation4 + $0x3b0] sm:$0xff]
    %v3578 = vld [vmem:[#allocation4 + $0x3b8] sm:$0xff]
    %v3579 = vld [vmem:[#allocation4 + $0x3c0] sm:$0xff]
    %v3580 = vld [vmem:[#allocation4 + $0x3c8] sm:$0xff]
    %v3581 = vld [vmem:[#allocation4 + $0x3d0] sm:$0xff]
    %v3582 = vld [vmem:[#allocation4 + $0x3d8] sm:$0xff]
    %v3583 = vld [vmem:[#allocation4 + $0x3e0] sm:$0xff]
    %v3584 = vld [vmem:[#allocation4 + $0x3e8] sm:$0xff]
    %v3585 = vld [vmem:[#allocation4 + $0x3f0] sm:$0xff]
    %v3586 = vld [vmem:[#allocation4 + $0x3f8] sm:$0xff]
    %v3587 = vld [vmem:[%s12] sm:$0x3]
    %v3589 = vlaneseq
    %v3590 = vshrl.u32 %v3589, 7
    %v3591 = vsub.s32 0, %v3590
    %v3592 = vrot.slane %v3587, %v3591
    %v3593 = vlaneseq
    %v3594 = vshrl.u32 %v3593, 7
    %v3595 = vsub.s32 1, %v3594
    %v3596 = vrot.slane %v3587, %v3595
    %3599 = vmatprep.subr.bf16.mxu0 %v3460
    %3600 = vmatpush1.bf16.msra.mxu0 %v3459
    %3601 = vmatprep.subr.bf16.mxu0 %v3462
    %3602 = vmatpush1.bf16.msra.mxu0 %v3461
    %3603 = vmatprep.subr.bf16.mxu0 %v3464
    %3604 = vmatpush1.bf16.msra.mxu0 %v3463
    %3605 = vmatprep.subr.bf16.mxu0 %v3466
    %3606 = vmatpush1.bf16.msra.mxu0 %v3465
    %3607 = vmatprep.subr.bf16.mxu0 %v3468
    %3608 = vmatpush1.bf16.msra.mxu0 %v3467
    %3609 = vmatprep.subr.bf16.mxu0 %v3470
    %3610 = vmatpush1.bf16.msra.mxu0 %v3469
    %3611 = vmatprep.subr.bf16.mxu0 %v3472
    %3612 = vmatpush1.bf16.msra.mxu0 %v3471
    %3613 = vmatprep.subr.bf16.mxu0 %v3474
    %3614 = vmatpush1.bf16.msra.mxu0 %v3473
    %3615 = vmatprep.subr.bf16.mxu0 %v3476
    %3616 = vmatpush1.bf16.msra.mxu0 %v3475
    %3617 = vmatprep.subr.bf16.mxu0 %v3478
    %3618 = vmatpush1.bf16.msra.mxu0 %v3477
    %3619 = vmatprep.subr.bf16.mxu0 %v3480
    %3620 = vmatpush1.bf16.msra.mxu0 %v3479
    %3621 = vmatprep.subr.bf16.mxu0 %v3482
    %3622 = vmatpush1.bf16.msra.mxu0 %v3481
    %3623 = vmatprep.subr.bf16.mxu0 %v3484
    %3624 = vmatpush1.bf16.msra.mxu0 %v3483
    %3625 = vmatprep.subr.bf16.mxu0 %v3486
    %3626 = vmatpush1.bf16.msra.mxu0 %v3485
    %3627 = vmatprep.subr.bf16.mxu0 %v3488
    %3628 = vmatpush1.bf16.msra.mxu0 %v3487
    %3629 = vmatprep.subr.bf16.mxu0 %v3490
    %3630 = vmatpush1.bf16.msra.mxu0 %v3489
    %3631 = vmatprep.mubr.bf16.mxu0 %v3452
    %3632 = vmatmul.mubr.bf16.gmra.mrb[0].mxu0 %v3451
    %v3633 = vpop.f32.mrb[0].mxu0
    %v3634 = vadd.f32 %v3592, %v3633
    %v3635 = vpop.f32.mrb[0].mxu0
    %v3636 = vadd.f32 %v3596, %v3635
    %v3637 = vpop.f32.mrb[0].mxu0
    %v3638 = vadd.f32 %v3592, %v3637
    %v3639 = vpop.f32.mrb[0].mxu0
    %v3640 = vadd.f32 %v3596, %v3639
    %3641 = vdwg.mxu0
    %3642 = vmatprep.subr.bf16.mxu0 %v3492
    %3643 = vmatpush1.bf16.msra.mxu0 %v3491
    %3644 = vmatprep.subr.bf16.mxu0 %v3494
    %3645 = vmatpush1.bf16.msra.mxu0 %v3493
    %3646 = vmatprep.subr.bf16.mxu0 %v3496
    %3647 = vmatpush1.bf16.msra.mxu0 %v3495
    %3648 = vmatprep.subr.bf16.mxu0 %v3498
    %3649 = vmatpush1.bf16.msra.mxu0 %v3497
    %3650 = vmatprep.subr.bf16.mxu0 %v3500
    %3651 = vmatpush1.bf16.msra.mxu0 %v3499
    %3652 = vmatprep.subr.bf16.mxu0 %v3502
    %3653 = vmatpush1.bf16.msra.mxu0 %v3501
    %3654 = vmatprep.subr.bf16.mxu0 %v3504
    %3655 = vmatpush1.bf16.msra.mxu0 %v3503
    %3656 = vmatprep.subr.bf16.mxu0 %v3506
    %3657 = vmatpush1.bf16.msra.mxu0 %v3505
    %3658 = vmatprep.subr.bf16.mxu0 %v3508
    %3659 = vmatpush1.bf16.msra.mxu0 %v3507
    %3660 = vmatprep.subr.bf16.mxu0 %v3510
    %3661 = vmatpush1.bf16.msra.mxu0 %v3509
    %3662 = vmatprep.subr.bf16.mxu0 %v3512
    %3663 = vmatpush1.bf16.msra.mxu0 %v3511
    %3664 = vmatprep.subr.bf16.mxu0 %v3514
    %3665 = vmatpush1.bf16.msra.mxu0 %v3513
    %3666 = vmatprep.subr.bf16.mxu0 %v3516
    %3667 = vmatpush1.bf16.msra.mxu0 %v3515
    %3668 = vmatprep.subr.bf16.mxu0 %v3518
    %3669 = vmatpush1.bf16.msra.mxu0 %v3517
    %3670 = vmatprep.subr.bf16.mxu0 %v3520
    %3671 = vmatpush1.bf16.msra.mxu0 %v3519
    %3672 = vmatprep.subr.bf16.mxu0 %v3522
    %3673 = vmatpush1.bf16.msra.mxu0 %v3521
    %3674 = vmatprep.mubr.bf16.mxu0 %v3454
    %3675 = vmatmul.mubr.bf16.gmra.mrb[0].mxu0 %v3453
    %v3676 = vpop.f32.mrb[0].mxu0
    %v3677 = vadd.f32 %v3634, %v3676
    %v3678 = vpop.f32.mrb[0].mxu0
    %v3679 = vadd.f32 %v3636, %v3678
    %v3680 = vpop.f32.mrb[0].mxu0
    %v3681 = vadd.f32 %v3638, %v3680
    %v3682 = vpop.f32.mrb[0].mxu0
    %v3683 = vadd.f32 %v3640, %v3682
    %3684 = vdwg.mxu0
    %3685 = vmatprep.subr.bf16.mxu0 %v3524
    %3686 = vmatpush1.bf16.msra.mxu0 %v3523
    %3687 = vmatprep.subr.bf16.mxu0 %v3526
    %3688 = vmatpush1.bf16.msra.mxu0 %v3525
    %3689 = vmatprep.subr.bf16.mxu0 %v3528
    %3690 = vmatpush1.bf16.msra.mxu0 %v3527
    %3691 = vmatprep.subr.bf16.mxu0 %v3530
    %3692 = vmatpush1.bf16.msra.mxu0 %v3529
    %3693 = vmatprep.subr.bf16.mxu0 %v3532
    %3694 = vmatpush1.bf16.msra.mxu0 %v3531
    %3695 = vmatprep.subr.bf16.mxu0 %v3534
    %3696 = vmatpush1.bf16.msra.mxu0 %v3533
    %3697 = vmatprep.subr.bf16.mxu0 %v3536
    %3698 = vmatpush1.bf16.msra.mxu0 %v3535
    %3699 = vmatprep.subr.bf16.mxu0 %v3538
    %3700 = vmatpush1.bf16.msra.mxu0 %v3537
    %3701 = vmatprep.subr.bf16.mxu0 %v3540
    %3702 = vmatpush1.bf16.msra.mxu0 %v3539
    %3703 = vmatprep.subr.bf16.mxu0 %v3542
    %3704 = vmatpush1.bf16.msra.mxu0 %v3541
    %3705 = vmatprep.subr.bf16.mxu0 %v3544
    %3706 = vmatpush1.bf16.msra.mxu0 %v3543
    %3707 = vmatprep.subr.bf16.mxu0 %v3546
    %3708 = vmatpush1.bf16.msra.mxu0 %v3545
    %3709 = vmatprep.subr.bf16.mxu0 %v3548
    %3710 = vmatpush1.bf16.msra.mxu0 %v3547
    %3711 = vmatprep.subr.bf16.mxu0 %v3550
    %3712 = vmatpush1.bf16.msra.mxu0 %v3549
    %3713 = vmatprep.subr.bf16.mxu0 %v3552
    %3714 = vmatpush1.bf16.msra.mxu0 %v3551
    %3715 = vmatprep.subr.bf16.mxu0 %v3554
    %3716 = vmatpush1.bf16.msra.mxu0 %v3553
    %3717 = vmatprep.mubr.bf16.mxu0 %v3456
    %3718 = vmatmul.mubr.bf16.gmra.mrb[0].mxu0 %v3455
    %v3719 = vpop.f32.mrb[0].mxu0
    %v3720 = vadd.f32 %v3677, %v3719
    %v3721 = vpop.f32.mrb[0].mxu0
    %v3722 = vadd.f32 %v3679, %v3721
    %v3723 = vpop.f32.mrb[0].mxu0
    %v3724 = vadd.f32 %v3681, %v3723
    %v3725 = vpop.f32.mrb[0].mxu0
    %v3726 = vadd.f32 %v3683, %v3725
    %3727 = vdwg.mxu0
    %3728 = vmatprep.subr.bf16.mxu0 %v3556
    %3729 = vmatpush1.bf16.msra.mxu0 %v3555
    %3730 = vmatprep.subr.bf16.mxu0 %v3558
    %3731 = vmatpush1.bf16.msra.mxu0 %v3557
    %3732 = vmatprep.subr.bf16.mxu0 %v3560
    %3733 = vmatpush1.bf16.msra.mxu0 %v3559
    %3734 = vmatprep.subr.bf16.mxu0 %v3562
    %3735 = vmatpush1.bf16.msra.mxu0 %v3561
    %3736 = vmatprep.subr.bf16.mxu0 %v3564
    %3737 = vmatpush1.bf16.msra.mxu0 %v3563
    %3738 = vmatprep.subr.bf16.mxu0 %v3566
    %3739 = vmatpush1.bf16.msra.mxu0 %v3565
    %3740 = vmatprep.subr.bf16.mxu0 %v3568
    %3741 = vmatpush1.bf16.msra.mxu0 %v3567
    %3742 = vmatprep.subr.bf16.mxu0 %v3570
    %3743 = vmatpush1.bf16.msra.mxu0 %v3569
    %3744 = vmatprep.subr.bf16.mxu0 %v3572
    %3745 = vmatpush1.bf16.msra.mxu0 %v3571
    %3746 = vmatprep.subr.bf16.mxu0 %v3574
    %3747 = vmatpush1.bf16.msra.mxu0 %v3573
    %3748 = vmatprep.subr.bf16.mxu0 %v3576
    %3749 = vmatpush1.bf16.msra.mxu0 %v3575
    %3750 = vmatprep.subr.bf16.mxu0 %v3578
    %3751 = vmatpush1.bf16.msra.mxu0 %v3577
    %3752 = vmatprep.subr.bf16.mxu0 %v3580
    %3753 = vmatpush1.bf16.msra.mxu0 %v3579
    %3754 = vmatprep.subr.bf16.mxu0 %v3582
    %3755 = vmatpush1.bf16.msra.mxu0 %v3581
    %3756 = vmatprep.subr.bf16.mxu0 %v3584
    %3757 = vmatpush1.bf16.msra.mxu0 %v3583
    %3758 = vmatprep.subr.bf16.mxu0 %v3586
    %3759 = vmatpush1.bf16.msra.mxu0 %v3585
    %3760 = vmatprep.mubr.bf16.mxu0 %v3458
    %3761 = vmatmul.mubr.bf16.gmra.mrb[0].mxu0 %v3457
    %v3762 = vpop.f32.mrb[0].mxu0
    %v3763 = vadd.f32 %v3720, %v3762
    %v3764 = vpop.f32.mrb[0].mxu0
    %v3765 = vadd.f32 %v3722, %v3764
    %v3766 = vpop.f32.mrb[0].mxu0
    %v3767 = vadd.f32 %v3724, %v3766
    %v3768 = vpop.f32.mrb[0].mxu0
    %v3769 = vadd.f32 %v3726, %v3768
    %3770 = vdwg.mxu0
    %v3771 = vadd.f32 %v2948, %v3763
    %v3772 = vadd.f32 %v2949, %v3765
    %v3773 = vadd.f32 %v2950, %v3767
    %v3774 = vadd.f32 %v2951, %v3769
    %3775 = vst [vmem:[%s13] sm:$0xff] %v3771
    %3776 = vst [vmem:[%s13 + $0x8] sm:$0xff] %v3772
    %3777 = vst [vmem:[%s13 + $0x10] sm:$0xff] %v3773
    %3778 = vst [vmem:[%s13 + $0x18] sm:$0xff] %v3774
    // Predicated region
    $region46: #{transformer_block.1} parent=1 // pred_check
      _
    $region47: #{transformer_block.1} parent=1 // pred_check_branch
      %3780 = sbr.rel (0) target = $region49
    $region48: #{transformer_block.1} parent=1 // pred_region
      _
    $region49: #{transformer_block.1} parent=1 // pred_fallthru
      _
    // Predicated region
    $region50: #{transformer_block.1} parent=1 // pred_check
      _
    $region51: #{transformer_block.1} parent=1 // pred_check_branch
      %3782 = sbr.rel (0) target = $region53
    $region52: #{transformer_block.1} parent=1 // pred_region
      _
    $region53: #{transformer_block.1} parent=1 // pred_fallthru
      _
    %3783 = vsyncpa [#allocation7], 1
  %3784 = vsyncmov [#allocation5]
  %s3785 = vpop.sfrf %3784
  %p3786 = scmp.eq.s32.totalorder %s3785, 0
  %p3787 = pneg %p3786
  %3789 = shalt.err (%p3787)
  %s3790 = scalar_lea.sflag [#allocation5], 1
  %3791 = vsyncmov %s3790
  %s3792 = vpop.sfrf %3791
  %p3793 = scmp.eq.s32.totalorder %s3792, 0
  %p3794 = pneg %p3793
  %3796 = shalt.err (%p3794)
  %s3797 = scalar_lea.sflag [#allocation5], 2
  %3798 = vsyncmov %s3797
  %s3799 = vpop.sfrf %3798
  %p3800 = scmp.eq.s32.totalorder %s3799, 0
  %p3801 = pneg %p3800
  %3803 = shalt.err (%p3801)

</llo_original>
